<compile_context>
chip_gen: v6e
topology: v6e:2x2x1
jax: 0.10.0
libtpu: 0.0.40
codegen_flags: <defaults>
</compile_context>

<pallas_src>
import functools

import jax
import jax.numpy as jnp
from jax.experimental import pallas as pl
from jax.experimental.pallas import tpu as pltpu

# ---- static configuration (small shapes consistent with the module) ----
B, CIN, T, H, W = 2, 8, 4, 8, 8
CE = 32                 # cfg.expanded_channels
COUT = 8                # cfg.out_channels (== CIN -> identity residual)
CS = 8                  # squeeze channels = _make_divisible(CE // 4, 8)
KT = KH = KW = 3        # deep kernel size
THW = T * H * W
# padded slab layout: W axis is the sublane axis; place the interior at sublane
# offset 8 so the interior store hits a whole (8,x) sublane tile (aligned), with
# zero columns on both sides for the +/-1 taps.
WOFF = 8
PW = 24                 # >= WOFF + W + 1, rounded to a sublane-tile multiple
# nn.Parameter alpha: PyTorch __init__ sets 0.0; a nonzero deterministic value is
# used so the whole bottleneck path actually contributes to the output.
ALPHA = 0.5


# ----------------------------- fused Pallas kernel -----------------------------

def _bneck_fused_kernel(x_ref, w_exp_ref, w_dw_ref, w_fc1_ref, b_fc1_ref,
                        w_fc2_ref, b_fc2_ref, w_pt_ref, o_ref, slab_ref, *, alpha):
    # x_ref:    (1, CIN, THW)  channels-first input block for this batch
    # w_exp:    (CIN, CE)      expand 1x1x1 weight (bias=False)
    # w_dw:     (KT, KH, KW, CE) depthwise 3x3x3 weight
    # w_fc1/b_fc1, w_fc2/b_fc2: SE 1x1x1 convs (bias=True)
    # w_pt:     (COUT, CE)     project 1x1x1 weight, pre-transposed (bias=False)
    # o_ref:    (1, COUT, THW) channels-first, lane-dense output block
    # slab_ref: VMEM (T+2, H+2, PW, CE) zero-padded expanded activations
    x_cf = x_ref[0]                                                     # (CIN, THW)

    # ---- expand: 1x1x1 conv == matmul over channels (MXU), channels-last result
    e = jnp.dot(x_cf.T, w_exp_ref[...],
                preferred_element_type=jnp.float32)                     # (THW, CE)

    # ---- zero-pad into the VMEM slab (no jnp.pad / HBM round trip).
    # Interior sits at [1:T+1, 1:H+1, WOFF:WOFF+W, :]; T/H offsets are on
    # untiled leading dims and the W offset is sublane-tile aligned.
    slab_ref[...] = jnp.zeros_like(slab_ref)
    slab_ref[1:T + 1, 1:H + 1, WOFF:WOFF + W, :] = e.reshape(T, H, W, CE)

    # ---- deep: 3x3x3 depthwise conv, stride 1, padding (1,1,1).
    # 27 shifted multiply-accumulates over the whole (T,H,W,CE) block (VPU);
    # each tap's weight vector is loaded/broadcast exactly once.
    acc = jnp.zeros((T, H, W, CE), jnp.float32)
    for kt in range(KT):
        for kh in range(KH):
            for kw in range(KW):
                wv = w_dw_ref[kt, kh, kw, :]                            # (CE,)
                v = slab_ref[kt:kt + T, kh:kh + H,
                             WOFF - 1 + kw:WOFF - 1 + kw + W, :]        # (T,H,W,CE)
                acc = acc + v * wv
    d2 = acc.reshape(THW, CE)                                           # (THW, CE)

    # ---- SE gate: adaptive_avg_pool3d(.,1) -> fc1(+b) -> Identity -> fc2(+b) -> sigmoid
    # pooled from the VMEM-resident depthwise output (no HBM re-read).
    pooled = jnp.sum(d2, axis=0, keepdims=True) * (1.0 / THW)           # (1, CE)
    h1 = jnp.dot(pooled, w_fc1_ref[...],
                 preferred_element_type=jnp.float32) + b_fc1_ref[...]   # (1, CS)
    g = jax.nn.sigmoid(
        jnp.dot(h1, w_fc2_ref[...],
                preferred_element_type=jnp.float32) + b_fc2_ref[...])   # (1, CE)

    # ---- SE scale + project (1x1x1 conv, bias=False) + alpha-scaled residual.
    # Project is computed channels-first: (COUT,CE) x (THW,CE)^T -> (COUT,THW),
    # so the stored last dim is THW=256 (unmasked lane-dense stores) and the
    # NCDHW output layout is a free reshape in the wrapper.
    scaled = d2 * g                                                     # (THW, CE)
    p_cf = jax.lax.dot_general(
        w_pt_ref[...], scaled,
        dimension_numbers=(((1,), (1,)), ((), ())),
        preferred_element_type=jnp.float32)                             # (COUT, THW)
    o_ref[0] = (x_cf + alpha * p_cf).astype(o_ref.dtype)


# ----------------------------- forward wrapper -----------------------------

@jax.jit
def basic_bneck_forward(x_ncdhw, params):
    # x_ncdhw: (B, CIN, T, H, W) float32 (PyTorch NCDHW convention).
    # Only trailing-dim reshapes in the wrapper (free); no pad / transpose ops.
    x3 = x_ncdhw.reshape(B, CIN, THW)

    out3 = pl.pallas_call(
        functools.partial(_bneck_fused_kernel, alpha=ALPHA),
        out_shape=jax.ShapeDtypeStruct((B, COUT, THW), x_ncdhw.dtype),
        grid=(B,),
        in_specs=[
            pl.BlockSpec((1, CIN, THW), lambda b: (b, 0, 0)),
            pl.BlockSpec((CIN, CE), lambda b: (0, 0)),
            pl.BlockSpec((KT, KH, KW, CE), lambda b: (0, 0, 0, 0)),
            pl.BlockSpec((CE, CS), lambda b: (0, 0)),
            pl.BlockSpec((1, CS), lambda b: (0, 0)),
            pl.BlockSpec((CS, CE), lambda b: (0, 0)),
            pl.BlockSpec((1, CE), lambda b: (0, 0)),
            pl.BlockSpec((COUT, CE), lambda b: (0, 0)),
        ],
        out_specs=pl.BlockSpec((1, COUT, THW), lambda b: (b, 0, 0)),
        scratch_shapes=[pltpu.VMEM((T + 2, H + 2, PW, CE), jnp.float32)],
        compiler_params=pltpu.CompilerParams(dimension_semantics=("parallel",)),
    )(x3, params["w_expand"], params["w_deep"],
      params["w_fc1"], params["b_fc1"], params["w_fc2"], params["b_fc2"],
      params["w_proj_t"])

    return out3.reshape(B, COUT, T, H, W)


# ----------------------------- pure-JAX reference -----------------------------

def ref_forward(x_ncdhw, params):
    e = jnp.einsum("bcthw,cd->bdthw", x_ncdhw, params["w_expand"])
    w_dw = jnp.transpose(params["w_deep"], (3, 0, 1, 2))[:, None]       # (CE,1,KT,KH,KW)
    d = jax.lax.conv_general_dilated(
        e, w_dw, window_strides=(1, 1, 1),
        padding=((1, 1), (1, 1), (1, 1)),
        feature_group_count=CE,
        dimension_numbers=("NCDHW", "OIDHW", "NCDHW"))
    pooled = jnp.mean(d, axis=(2, 3, 4))                                # (B, CE)
    h = pooled @ params["w_fc1"] + params["b_fc1"]
    g = jax.nn.sigmoid(h @ params["w_fc2"] + params["b_fc2"])
    p = jnp.einsum("bcthw,dc->bdthw", d * g[:, :, None, None, None], params["w_proj_t"])
    return x_ncdhw + ALPHA * p


# ----------------------------- main -----------------------------

if __name__ == "__main__":
    key = jax.random.PRNGKey(0)
    ks = jax.random.split(key, 8)
    params = {
        # expand 1x1x1 conv weight, channels-last (Cin, Cout); bias=False -> no bias
        "w_expand": jax.random.normal(ks[0], (CIN, CE), jnp.float32) / jnp.sqrt(CIN),
        # depthwise conv weight stored as (KT, KH, KW, CE)
        "w_deep": jax.random.normal(ks[1], (KT, KH, KW, CE), jnp.float32) / jnp.sqrt(KT * KH * KW),
        # SE fc1/fc2 are 1x1x1 convs with bias=True
        "w_fc1": jax.random.normal(ks[2], (CE, CS), jnp.float32) / jnp.sqrt(CE),
        "b_fc1": 0.1 * jax.random.normal(ks[3], (1, CS), jnp.float32),
        "w_fc2": jax.random.normal(ks[4], (CS, CE), jnp.float32) / jnp.sqrt(CS),
        "b_fc2": 0.1 * jax.random.normal(ks[5], (1, CE), jnp.float32),
        # project 1x1x1 conv weight pre-transposed to (Cout, Cin_expanded); bias=False
        "w_proj_t": jax.random.normal(ks[6], (COUT, CE), jnp.float32) / jnp.sqrt(CE),
    }
    x = jax.random.normal(ks[7], (B, CIN, T, H, W), jnp.float32)

    out = basic_bneck_forward(x, params)
    out = jax.block_until_ready(out)

    ref = ref_forward(x, params)
    assert out.shape == (B, COUT, T, H, W), out.shape
    err = float(jnp.max(jnp.abs(out - ref)))
    assert err < 1e-3, f"mismatch vs reference: max abs err = {err}"
    print("KERNEL_OK")
</pallas_src>

<mosaic_0001>
module attributes {stable_mosaic.version = 11 : i64} {
  func.func @_bneck_fused_kernel(%arg0: i32, %arg1: memref<1x8x256xf32, #tpu.memory_space<vmem>>, %arg2: memref<8x32xf32, #tpu.memory_space<vmem>>, %arg3: memref<3x3x3x32xf32, #tpu.memory_space<vmem>>, %arg4: memref<32x8xf32, #tpu.memory_space<vmem>>, %arg5: memref<1x8xf32, #tpu.memory_space<vmem>>, %arg6: memref<8x32xf32, #tpu.memory_space<vmem>>, %arg7: memref<1x32xf32, #tpu.memory_space<vmem>>, %arg8: memref<8x32xf32, #tpu.memory_space<vmem>>, %arg9: memref<1x8x256xf32, #tpu.memory_space<vmem>>, %arg10: memref<6x10x24x32xf32, #tpu.memory_space<vmem>>) attributes {dimension_semantics = [#tpu.dimension_semantics<parallel>], iteration_bounds = array<i64: 2>, scalar_prefetch = 0 : i64, scratch_operands = 1 : i64, tpu.core_type = #tpu.core_type<tc>, window_params = [{transform_indices = @transform_0, window_bounds = array<i64: 1, 8, 256>}, {pipeline_mode = #tpu.pipeline_mode<synchronous>, transform_indices = @transform_1, window_bounds = array<i64: 8, 32>}, {pipeline_mode = #tpu.pipeline_mode<synchronous>, transform_indices = @transform_2, window_bounds = array<i64: 3, 3, 3, 32>}, {pipeline_mode = #tpu.pipeline_mode<synchronous>, transform_indices = @transform_3, window_bounds = array<i64: 32, 8>}, {pipeline_mode = #tpu.pipeline_mode<synchronous>, transform_indices = @transform_4, window_bounds = array<i64: 1, 8>}, {pipeline_mode = #tpu.pipeline_mode<synchronous>, transform_indices = @transform_5, window_bounds = array<i64: 8, 32>}, {pipeline_mode = #tpu.pipeline_mode<synchronous>, transform_indices = @transform_6, window_bounds = array<i64: 1, 32>}, {pipeline_mode = #tpu.pipeline_mode<synchronous>, transform_indices = @transform_7, window_bounds = array<i64: 8, 32>}, {transform_indices = @transform_8, window_bounds = array<i64: 1, 8, 256>}]} {
    %c0 = arith.constant 0 : index
    %c0_0 = arith.constant 0 : index
    %c0_1 = arith.constant 0 : index
    %0 = vector.load %arg1[%c0, %c0_0, %c0_1] : memref<1x8x256xf32, #tpu.memory_space<vmem>>, vector<1x8x256xf32>
    %1 = vector.shape_cast %0 : vector<1x8x256xf32> to vector<8x256xf32>
    %2 = tpu.transpose %1, [1, 0] : vector<8x256xf32> -> vector<256x8xf32>
    %c0_2 = arith.constant 0 : index
    %c0_3 = arith.constant 0 : index
    %3 = vector.load %arg2[%c0_2, %c0_3] : memref<8x32xf32, #tpu.memory_space<vmem>>, vector<8x32xf32>
    %cst = arith.constant dense<0.000000e+00> : vector<256x32xf32>
    %4 = tpu.matmul %2, %3, %cst {dimension_numbers = #tpu.dot_dimension_numbers<[1], [0], [0], [1], [0, 0, 1, 1], [], []>} : vector<256x8xf32>, vector<8x32xf32>, vector<256x32xf32> -> vector<256x32xf32>
    %cst_4 = arith.constant 0.000000e+00 : f32
    %5 = vector.broadcast %cst_4 : f32 to vector<6x10x24x32xf32>
    %c0_5 = arith.constant 0 : index
    %c0_6 = arith.constant 0 : index
    %c0_7 = arith.constant 0 : index
    %c0_8 = arith.constant 0 : index
    %6 = vector.load %arg10[%c0_5, %c0_6, %c0_7, %c0_8] : memref<6x10x24x32xf32, #tpu.memory_space<vmem>>, vector<6x10x24x32xf32>
    tpu.vector_store %arg10[%c0_5, %c0_6, %c0_7, %c0_8], %5 {strides = array<i32>} : memref<6x10x24x32xf32, #tpu.memory_space<vmem>>, vector<6x10x24x32xf32>,
    %7 = vector.shape_cast %4 : vector<256x32xf32> to vector<4x8x8x32xf32>
    %c1 = arith.constant 1 : index
    %c1_9 = arith.constant 1 : index
    %c8 = arith.constant 8 : index
    %c0_10 = arith.constant 0 : index
    %8 = vector.load %arg10[%c1, %c1_9, %c8, %c0_10] : memref<6x10x24x32xf32, #tpu.memory_space<vmem>>, vector<4x8x8x32xf32>
    tpu.vector_store %arg10[%c1, %c1_9, %c8, %c0_10], %7 {strides = array<i32>} : memref<6x10x24x32xf32, #tpu.memory_space<vmem>>, vector<4x8x8x32xf32>,
    %cst_11 = arith.constant 0.000000e+00 : f32
    %9 = vector.broadcast %cst_11 : f32 to vector<4x8x8x32xf32>
    %c0_12 = arith.constant 0 : index
    %c0_13 = arith.constant 0 : index
    %c0_14 = arith.constant 0 : index
    %c0_15 = arith.constant 0 : index
    %10 = vector.load %arg3[%c0_12, %c0_13, %c0_14, %c0_15] : memref<3x3x3x32xf32, #tpu.memory_space<vmem>>, vector<1x1x1x32xf32>
    %11 = vector.shape_cast %10 : vector<1x1x1x32xf32> to vector<32xf32>
    %c0_16 = arith.constant 0 : index
    %c0_17 = arith.constant 0 : index
    %c7 = arith.constant 7 : index
    %c0_18 = arith.constant 0 : index
    %12 = vector.load %arg10[%c0_16, %c0_17, %c7, %c0_18] : memref<6x10x24x32xf32, #tpu.memory_space<vmem>>, vector<4x8x8x32xf32>
    %13 = vector.shape_cast %11 : vector<32xf32> to vector<1x1x1x32xf32>
    %14 = vector.broadcast %13 : vector<1x1x1x32xf32> to vector<4x8x8x32xf32>
    %15 = arith.mulf %12, %14 : vector<4x8x8x32xf32>
    %16 = arith.addf %9, %15 : vector<4x8x8x32xf32>
    %c0_19 = arith.constant 0 : index
    %c0_20 = arith.constant 0 : index
    %c1_21 = arith.constant 1 : index
    %c0_22 = arith.constant 0 : index
    %17 = vector.load %arg3[%c0_19, %c0_20, %c1_21, %c0_22] : memref<3x3x3x32xf32, #tpu.memory_space<vmem>>, vector<1x1x1x32xf32>
    %18 = vector.shape_cast %17 : vector<1x1x1x32xf32> to vector<32xf32>
    %c0_23 = arith.constant 0 : index
    %c0_24 = arith.constant 0 : index
    %c8_25 = arith.constant 8 : index
    %c0_26 = arith.constant 0 : index
    %19 = vector.load %arg10[%c0_23, %c0_24, %c8_25, %c0_26] : memref<6x10x24x32xf32, #tpu.memory_space<vmem>>, vector<4x8x8x32xf32>
    %20 = vector.shape_cast %18 : vector<32xf32> to vector<1x1x1x32xf32>
    %21 = vector.broadcast %20 : vector<1x1x1x32xf32> to vector<4x8x8x32xf32>
    %22 = arith.mulf %19, %21 : vector<4x8x8x32xf32>
    %23 = arith.addf %16, %22 : vector<4x8x8x32xf32>
    %c0_27 = arith.constant 0 : index
    %c0_28 = arith.constant 0 : index
    %c2 = arith.constant 2 : index
    %c0_29 = arith.constant 0 : index
    %24 = vector.load %arg3[%c0_27, %c0_28, %c2, %c0_29] : memref<3x3x3x32xf32, #tpu.memory_space<vmem>>, vector<1x1x1x32xf32>
    %25 = vector.shape_cast %24 : vector<1x1x1x32xf32> to vector<32xf32>
    %c0_30 = arith.constant 0 : index
    %c0_31 = arith.constant 0 : index
    %c9 = arith.constant 9 : index
    %c0_32 = arith.constant 0 : index
    %26 = vector.load %arg10[%c0_30, %c0_31, %c9, %c0_32] : memref<6x10x24x32xf32, #tpu.memory_space<vmem>>, vector<4x8x8x32xf32>
    %27 = vector.shape_cast %25 : vector<32xf32> to vector<1x1x1x32xf32>
    %28 = vector.broadcast %27 : vector<1x1x1x32xf32> to vector<4x8x8x32xf32>
    %29 = arith.mulf %26, %28 : vector<4x8x8x32xf32>
    %30 = arith.addf %23, %29 : vector<4x8x8x32xf32>
    %c0_33 = arith.constant 0 : index
    %c1_34 = arith.constant 1 : index
    %c0_35 = arith.constant 0 : index
    %c0_36 = arith.constant 0 : index
    %31 = vector.load %arg3[%c0_33, %c1_34, %c0_35, %c0_36] : memref<3x3x3x32xf32, #tpu.memory_space<vmem>>, vector<1x1x1x32xf32>
    %32 = vector.shape_cast %31 : vector<1x1x1x32xf32> to vector<32xf32>
    %c0_37 = arith.constant 0 : index
    %c1_38 = arith.constant 1 : index
    %c7_39 = arith.constant 7 : index
    %c0_40 = arith.constant 0 : index
    %33 = vector.load %arg10[%c0_37, %c1_38, %c7_39, %c0_40] : memref<6x10x24x32xf32, #tpu.memory_space<vmem>>, vector<4x8x8x32xf32>
    %34 = vector.shape_cast %32 : vector<32xf32> to vector<1x1x1x32xf32>
    %35 = vector.broadcast %34 : vector<1x1x1x32xf32> to vector<4x8x8x32xf32>
    %36 = arith.mulf %33, %35 : vector<4x8x8x32xf32>
    %37 = arith.addf %30, %36 : vector<4x8x8x32xf32>
    %c0_41 = arith.constant 0 : index
    %c1_42 = arith.constant 1 : index
    %c1_43 = arith.constant 1 : index
    %c0_44 = arith.constant 0 : index
    %38 = vector.load %arg3[%c0_41, %c1_42, %c1_43, %c0_44] : memref<3x3x3x32xf32, #tpu.memory_space<vmem>>, vector<1x1x1x32xf32>
    %39 = vector.shape_cast %38 : vector<1x1x1x32xf32> to vector<32xf32>
    %c0_45 = arith.constant 0 : index
    %c1_46 = arith.constant 1 : index
    %c8_47 = arith.constant 8 : index
    %c0_48 = arith.constant 0 : index
    %40 = vector.load %arg10[%c0_45, %c1_46, %c8_47, %c0_48] : memref<6x10x24x32xf32, #tpu.memory_space<vmem>>, vector<4x8x8x32xf32>
    %41 = vector.shape_cast %39 : vector<32xf32> to vector<1x1x1x32xf32>
    %42 = vector.broadcast %41 : vector<1x1x1x32xf32> to vector<4x8x8x32xf32>
    %43 = arith.mulf %40, %42 : vector<4x8x8x32xf32>
    %44 = arith.addf %37, %43 : vector<4x8x8x32xf32>
    %c0_49 = arith.constant 0 : index
    %c1_50 = arith.constant 1 : index
    %c2_51 = arith.constant 2 : index
    %c0_52 = arith.constant 0 : index
    %45 = vector.load %arg3[%c0_49, %c1_50, %c2_51, %c0_52] : memref<3x3x3x32xf32, #tpu.memory_space<vmem>>, vector<1x1x1x32xf32>
    %46 = vector.shape_cast %45 : vector<1x1x1x32xf32> to vector<32xf32>
    %c0_53 = arith.constant 0 : index
    %c1_54 = arith.constant 1 : index
    %c9_55 = arith.constant 9 : index
    %c0_56 = arith.constant 0 : index
    %47 = vector.load %arg10[%c0_53, %c1_54, %c9_55, %c0_56] : memref<6x10x24x32xf32, #tpu.memory_space<vmem>>, vector<4x8x8x32xf32>
    %48 = vector.shape_cast %46 : vector<32xf32> to vector<1x1x1x32xf32>
    %49 = vector.broadcast %48 : vector<1x1x1x32xf32> to vector<4x8x8x32xf32>
    %50 = arith.mulf %47, %49 : vector<4x8x8x32xf32>
    %51 = arith.addf %44, %50 : vector<4x8x8x32xf32>
    %c0_57 = arith.constant 0 : index
    %c2_58 = arith.constant 2 : index
    %c0_59 = arith.constant 0 : index
    %c0_60 = arith.constant 0 : index
    %52 = vector.load %arg3[%c0_57, %c2_58, %c0_59, %c0_60] : memref<3x3x3x32xf32, #tpu.memory_space<vmem>>, vector<1x1x1x32xf32>
    %53 = vector.shape_cast %52 : vector<1x1x1x32xf32> to vector<32xf32>
    %c0_61 = arith.constant 0 : index
    %c2_62 = arith.constant 2 : index
    %c7_63 = arith.constant 7 : index
    %c0_64 = arith.constant 0 : index
    %54 = vector.load %arg10[%c0_61, %c2_62, %c7_63, %c0_64] : memref<6x10x24x32xf32, #tpu.memory_space<vmem>>, vector<4x8x8x32xf32>
    %55 = vector.shape_cast %53 : vector<32xf32> to vector<1x1x1x32xf32>
    %56 = vector.broadcast %55 : vector<1x1x1x32xf32> to vector<4x8x8x32xf32>
    %57 = arith.mulf %54, %56 : vector<4x8x8x32xf32>
    %58 = arith.addf %51, %57 : vector<4x8x8x32xf32>
    %c0_65 = arith.constant 0 : index
    %c2_66 = arith.constant 2 : index
    %c1_67 = arith.constant 1 : index
    %c0_68 = arith.constant 0 : index
    %59 = vector.load %arg3[%c0_65, %c2_66, %c1_67, %c0_68] : memref<3x3x3x32xf32, #tpu.memory_space<vmem>>, vector<1x1x1x32xf32>
    %60 = vector.shape_cast %59 : vector<1x1x1x32xf32> to vector<32xf32>
    %c0_69 = arith.constant 0 : index
    %c2_70 = arith.constant 2 : index
    %c8_71 = arith.constant 8 : index
    %c0_72 = arith.constant 0 : index
    %61 = vector.load %arg10[%c0_69, %c2_70, %c8_71, %c0_72] : memref<6x10x24x32xf32, #tpu.memory_space<vmem>>, vector<4x8x8x32xf32>
    %62 = vector.shape_cast %60 : vector<32xf32> to vector<1x1x1x32xf32>
    %63 = vector.broadcast %62 : vector<1x1x1x32xf32> to vector<4x8x8x32xf32>
    %64 = arith.mulf %61, %63 : vector<4x8x8x32xf32>
    %65 = arith.addf %58, %64 : vector<4x8x8x32xf32>
    %c0_73 = arith.constant 0 : index
    %c2_74 = arith.constant 2 : index
    %c2_75 = arith.constant 2 : index
    %c0_76 = arith.constant 0 : index
    %66 = vector.load %arg3[%c0_73, %c2_74, %c2_75, %c0_76] : memref<3x3x3x32xf32, #tpu.memory_space<vmem>>, vector<1x1x1x32xf32>
    %67 = vector.shape_cast %66 : vector<1x1x1x32xf32> to vector<32xf32>
    %c0_77 = arith.constant 0 : index
    %c2_78 = arith.constant 2 : index
    %c9_79 = arith.constant 9 : index
    %c0_80 = arith.constant 0 : index
    %68 = vector.load %arg10[%c0_77, %c2_78, %c9_79, %c0_80] : memref<6x10x24x32xf32, #tpu.memory_space<vmem>>, vector<4x8x8x32xf32>
    %69 = vector.shape_cast %67 : vector<32xf32> to vector<1x1x1x32xf32>
    %70 = vector.broadcast %69 : vector<1x1x1x32xf32> to vector<4x8x8x32xf32>
    %71 = arith.mulf %68, %70 : vector<4x8x8x32xf32>
    %72 = arith.addf %65, %71 : vector<4x8x8x32xf32>
    %c1_81 = arith.constant 1 : index
    %c0_82 = arith.constant 0 : index
    %c0_83 = arith.constant 0 : index
    %c0_84 = arith.constant 0 : index
    %73 = vector.load %arg3[%c1_81, %c0_82, %c0_83, %c0_84] : memref<3x3x3x32xf32, #tpu.memory_space<vmem>>, vector<1x1x1x32xf32>
    %74 = vector.shape_cast %73 : vector<1x1x1x32xf32> to vector<32xf32>
    %c1_85 = arith.constant 1 : index
    %c0_86 = arith.constant 0 : index
    %c7_87 = arith.constant 7 : index
    %c0_88 = arith.constant 0 : index
    %75 = vector.load %arg10[%c1_85, %c0_86, %c7_87, %c0_88] : memref<6x10x24x32xf32, #tpu.memory_space<vmem>>, vector<4x8x8x32xf32>
    %76 = vector.shape_cast %74 : vector<32xf32> to vector<1x1x1x32xf32>
    %77 = vector.broadcast %76 : vector<1x1x1x32xf32> to vector<4x8x8x32xf32>
    %78 = arith.mulf %75, %77 : vector<4x8x8x32xf32>
    %79 = arith.addf %72, %78 : vector<4x8x8x32xf32>
    %c1_89 = arith.constant 1 : index
    %c0_90 = arith.constant 0 : index
    %c1_91 = arith.constant 1 : index
    %c0_92 = arith.constant 0 : index
    %80 = vector.load %arg3[%c1_89, %c0_90, %c1_91, %c0_92] : memref<3x3x3x32xf32, #tpu.memory_space<vmem>>, vector<1x1x1x32xf32>
    %81 = vector.shape_cast %80 : vector<1x1x1x32xf32> to vector<32xf32>
    %c1_93 = arith.constant 1 : index
    %c0_94 = arith.constant 0 : index
    %c8_95 = arith.constant 8 : index
    %c0_96 = arith.constant 0 : index
    %82 = vector.load %arg10[%c1_93, %c0_94, %c8_95, %c0_96] : memref<6x10x24x32xf32, #tpu.memory_space<vmem>>, vector<4x8x8x32xf32>
    %83 = vector.shape_cast %81 : vector<32xf32> to vector<1x1x1x32xf32>
    %84 = vector.broadcast %83 : vector<1x1x1x32xf32> to vector<4x8x8x32xf32>
    %85 = arith.mulf %82, %84 : vector<4x8x8x32xf32>
    %86 = arith.addf %79, %85 : vector<4x8x8x32xf32>
    %c1_97 = arith.constant 1 : index
    %c0_98 = arith.constant 0 : index
    %c2_99 = arith.constant 2 : index
    %c0_100 = arith.constant 0 : index
    %87 = vector.load %arg3[%c1_97, %c0_98, %c2_99, %c0_100] : memref<3x3x3x32xf32, #tpu.memory_space<vmem>>, vector<1x1x1x32xf32>
    %88 = vector.shape_cast %87 : vector<1x1x1x32xf32> to vector<32xf32>
    %c1_101 = arith.constant 1 : index
    %c0_102 = arith.constant 0 : index
    %c9_103 = arith.constant 9 : index
    %c0_104 = arith.constant 0 : index
    %89 = vector.load %arg10[%c1_101, %c0_102, %c9_103, %c0_104] : memref<6x10x24x32xf32, #tpu.memory_space<vmem>>, vector<4x8x8x32xf32>
    %90 = vector.shape_cast %88 : vector<32xf32> to vector<1x1x1x32xf32>
    %91 = vector.broadcast %90 : vector<1x1x1x32xf32> to vector<4x8x8x32xf32>
    %92 = arith.mulf %89, %91 : vector<4x8x8x32xf32>
    %93 = arith.addf %86, %92 : vector<4x8x8x32xf32>
    %c1_105 = arith.constant 1 : index
    %c1_106 = arith.constant 1 : index
    %c0_107 = arith.constant 0 : index
    %c0_108 = arith.constant 0 : index
    %94 = vector.load %arg3[%c1_105, %c1_106, %c0_107, %c0_108] : memref<3x3x3x32xf32, #tpu.memory_space<vmem>>, vector<1x1x1x32xf32>
    %95 = vector.shape_cast %94 : vector<1x1x1x32xf32> to vector<32xf32>
    %c1_109 = arith.constant 1 : index
    %c1_110 = arith.constant 1 : index
    %c7_111 = arith.constant 7 : index
    %c0_112 = arith.constant 0 : index
    %96 = vector.load %arg10[%c1_109, %c1_110, %c7_111, %c0_112] : memref<6x10x24x32xf32, #tpu.memory_space<vmem>>, vector<4x8x8x32xf32>
    %97 = vector.shape_cast %95 : vector<32xf32> to vector<1x1x1x32xf32>
    %98 = vector.broadcast %97 : vector<1x1x1x32xf32> to vector<4x8x8x32xf32>
    %99 = arith.mulf %96, %98 : vector<4x8x8x32xf32>
    %100 = arith.addf %93, %99 : vector<4x8x8x32xf32>
    %c1_113 = arith.constant 1 : index
    %c1_114 = arith.constant 1 : index
    %c1_115 = arith.constant 1 : index
    %c0_116 = arith.constant 0 : index
    %101 = vector.load %arg3[%c1_113, %c1_114, %c1_115, %c0_116] : memref<3x3x3x32xf32, #tpu.memory_space<vmem>>, vector<1x1x1x32xf32>
    %102 = vector.shape_cast %101 : vector<1x1x1x32xf32> to vector<32xf32>
    %c1_117 = arith.constant 1 : index
    %c1_118 = arith.constant 1 : index
    %c8_119 = arith.constant 8 : index
    %c0_120 = arith.constant 0 : index
    %103 = vector.load %arg10[%c1_117, %c1_118, %c8_119, %c0_120] : memref<6x10x24x32xf32, #tpu.memory_space<vmem>>, vector<4x8x8x32xf32>
    %104 = vector.shape_cast %102 : vector<32xf32> to vector<1x1x1x32xf32>
    %105 = vector.broadcast %104 : vector<1x1x1x32xf32> to vector<4x8x8x32xf32>
    %106 = arith.mulf %103, %105 : vector<4x8x8x32xf32>
    %107 = arith.addf %100, %106 : vector<4x8x8x32xf32>
    %c1_121 = arith.constant 1 : index
    %c1_122 = arith.constant 1 : index
    %c2_123 = arith.constant 2 : index
    %c0_124 = arith.constant 0 : index
    %108 = vector.load %arg3[%c1_121, %c1_122, %c2_123, %c0_124] : memref<3x3x3x32xf32, #tpu.memory_space<vmem>>, vector<1x1x1x32xf32>
    %109 = vector.shape_cast %108 : vector<1x1x1x32xf32> to vector<32xf32>
    %c1_125 = arith.constant 1 : index
    %c1_126 = arith.constant 1 : index
    %c9_127 = arith.constant 9 : index
    %c0_128 = arith.constant 0 : index
    %110 = vector.load %arg10[%c1_125, %c1_126, %c9_127, %c0_128] : memref<6x10x24x32xf32, #tpu.memory_space<vmem>>, vector<4x8x8x32xf32>
    %111 = vector.shape_cast %109 : vector<32xf32> to vector<1x1x1x32xf32>
    %112 = vector.broadcast %111 : vector<1x1x1x32xf32> to vector<4x8x8x32xf32>
    %113 = arith.mulf %110, %112 : vector<4x8x8x32xf32>
    %114 = arith.addf %107, %113 : vector<4x8x8x32xf32>
    %c1_129 = arith.constant 1 : index
    %c2_130 = arith.constant 2 : index
    %c0_131 = arith.constant 0 : index
    %c0_132 = arith.constant 0 : index
    %115 = vector.load %arg3[%c1_129, %c2_130, %c0_131, %c0_132] : memref<3x3x3x32xf32, #tpu.memory_space<vmem>>, vector<1x1x1x32xf32>
    %116 = vector.shape_cast %115 : vector<1x1x1x32xf32> to vector<32xf32>
    %c1_133 = arith.constant 1 : index
    %c2_134 = arith.constant 2 : index
    %c7_135 = arith.constant 7 : index
    %c0_136 = arith.constant 0 : index
    %117 = vector.load %arg10[%c1_133, %c2_134, %c7_135, %c0_136] : memref<6x10x24x32xf32, #tpu.memory_space<vmem>>, vector<4x8x8x32xf32>
    %118 = vector.shape_cast %116 : vector<32xf32> to vector<1x1x1x32xf32>
    %119 = vector.broadcast %118 : vector<1x1x1x32xf32> to vector<4x8x8x32xf32>
    %120 = arith.mulf %117, %119 : vector<4x8x8x32xf32>
    %121 = arith.addf %114, %120 : vector<4x8x8x32xf32>
    %c1_137 = arith.constant 1 : index
    %c2_138 = arith.constant 2 : index
    %c1_139 = arith.constant 1 : index
    %c0_140 = arith.constant 0 : index
    %122 = vector.load %arg3[%c1_137, %c2_138, %c1_139, %c0_140] : memref<3x3x3x32xf32, #tpu.memory_space<vmem>>, vector<1x1x1x32xf32>
    %123 = vector.shape_cast %122 : vector<1x1x1x32xf32> to vector<32xf32>
    %c1_141 = arith.constant 1 : index
    %c2_142 = arith.constant 2 : index
    %c8_143 = arith.constant 8 : index
    %c0_144 = arith.constant 0 : index
    %124 = vector.load %arg10[%c1_141, %c2_142, %c8_143, %c0_144] : memref<6x10x24x32xf32, #tpu.memory_space<vmem>>, vector<4x8x8x32xf32>
    %125 = vector.shape_cast %123 : vector<32xf32> to vector<1x1x1x32xf32>
    %126 = vector.broadcast %125 : vector<1x1x1x32xf32> to vector<4x8x8x32xf32>
    %127 = arith.mulf %124, %126 : vector<4x8x8x32xf32>
    %128 = arith.addf %121, %127 : vector<4x8x8x32xf32>
    %c1_145 = arith.constant 1 : index
    %c2_146 = arith.constant 2 : index
    %c2_147 = arith.constant 2 : index
    %c0_148 = arith.constant 0 : index
    %129 = vector.load %arg3[%c1_145, %c2_146, %c2_147, %c0_148] : memref<3x3x3x32xf32, #tpu.memory_space<vmem>>, vector<1x1x1x32xf32>
    %130 = vector.shape_cast %129 : vector<1x1x1x32xf32> to vector<32xf32>
    %c1_149 = arith.constant 1 : index
    %c2_150 = arith.constant 2 : index
    %c9_151 = arith.constant 9 : index
    %c0_152 = arith.constant 0 : index
    %131 = vector.load %arg10[%c1_149, %c2_150, %c9_151, %c0_152] : memref<6x10x24x32xf32, #tpu.memory_space<vmem>>, vector<4x8x8x32xf32>
    %132 = vector.shape_cast %130 : vector<32xf32> to vector<1x1x1x32xf32>
    %133 = vector.broadcast %132 : vector<1x1x1x32xf32> to vector<4x8x8x32xf32>
    %134 = arith.mulf %131, %133 : vector<4x8x8x32xf32>
    %135 = arith.addf %128, %134 : vector<4x8x8x32xf32>
    %c2_153 = arith.constant 2 : index
    %c0_154 = arith.constant 0 : index
    %c0_155 = arith.constant 0 : index
    %c0_156 = arith.constant 0 : index
    %136 = vector.load %arg3[%c2_153, %c0_154, %c0_155, %c0_156] : memref<3x3x3x32xf32, #tpu.memory_space<vmem>>, vector<1x1x1x32xf32>
    %137 = vector.shape_cast %136 : vector<1x1x1x32xf32> to vector<32xf32>
    %c2_157 = arith.constant 2 : index
    %c0_158 = arith.constant 0 : index
    %c7_159 = arith.constant 7 : index
    %c0_160 = arith.constant 0 : index
    %138 = vector.load %arg10[%c2_157, %c0_158, %c7_159, %c0_160] : memref<6x10x24x32xf32, #tpu.memory_space<vmem>>, vector<4x8x8x32xf32>
    %139 = vector.shape_cast %137 : vector<32xf32> to vector<1x1x1x32xf32>
    %140 = vector.broadcast %139 : vector<1x1x1x32xf32> to vector<4x8x8x32xf32>
    %141 = arith.mulf %138, %140 : vector<4x8x8x32xf32>
    %142 = arith.addf %135, %141 : vector<4x8x8x32xf32>
    %c2_161 = arith.constant 2 : index
    %c0_162 = arith.constant 0 : index
    %c1_163 = arith.constant 1 : index
    %c0_164 = arith.constant 0 : index
    %143 = vector.load %arg3[%c2_161, %c0_162, %c1_163, %c0_164] : memref<3x3x3x32xf32, #tpu.memory_space<vmem>>, vector<1x1x1x32xf32>
    %144 = vector.shape_cast %143 : vector<1x1x1x32xf32> to vector<32xf32>
    %c2_165 = arith.constant 2 : index
    %c0_166 = arith.constant 0 : index
    %c8_167 = arith.constant 8 : index
    %c0_168 = arith.constant 0 : index
    %145 = vector.load %arg10[%c2_165, %c0_166, %c8_167, %c0_168] : memref<6x10x24x32xf32, #tpu.memory_space<vmem>>, vector<4x8x8x32xf32>
    %146 = vector.shape_cast %144 : vector<32xf32> to vector<1x1x1x32xf32>
    %147 = vector.broadcast %146 : vector<1x1x1x32xf32> to vector<4x8x8x32xf32>
    %148 = arith.mulf %145, %147 : vector<4x8x8x32xf32>
    %149 = arith.addf %142, %148 : vector<4x8x8x32xf32>
    %c2_169 = arith.constant 2 : index
    %c0_170 = arith.constant 0 : index
    %c2_171 = arith.constant 2 : index
    %c0_172 = arith.constant 0 : index
    %150 = vector.load %arg3[%c2_169, %c0_170, %c2_171, %c0_172] : memref<3x3x3x32xf32, #tpu.memory_space<vmem>>, vector<1x1x1x32xf32>
    %151 = vector.shape_cast %150 : vector<1x1x1x32xf32> to vector<32xf32>
    %c2_173 = arith.constant 2 : index
    %c0_174 = arith.constant 0 : index
    %c9_175 = arith.constant 9 : index
    %c0_176 = arith.constant 0 : index
    %152 = vector.load %arg10[%c2_173, %c0_174, %c9_175, %c0_176] : memref<6x10x24x32xf32, #tpu.memory_space<vmem>>, vector<4x8x8x32xf32>
    %153 = vector.shape_cast %151 : vector<32xf32> to vector<1x1x1x32xf32>
    %154 = vector.broadcast %153 : vector<1x1x1x32xf32> to vector<4x8x8x32xf32>
    %155 = arith.mulf %152, %154 : vector<4x8x8x32xf32>
    %156 = arith.addf %149, %155 : vector<4x8x8x32xf32>
    %c2_177 = arith.constant 2 : index
    %c1_178 = arith.constant 1 : index
    %c0_179 = arith.constant 0 : index
    %c0_180 = arith.constant 0 : index
    %157 = vector.load %arg3[%c2_177, %c1_178, %c0_179, %c0_180] : memref<3x3x3x32xf32, #tpu.memory_space<vmem>>, vector<1x1x1x32xf32>
    %158 = vector.shape_cast %157 : vector<1x1x1x32xf32> to vector<32xf32>
    %c2_181 = arith.constant 2 : index
    %c1_182 = arith.constant 1 : index
    %c7_183 = arith.constant 7 : index
    %c0_184 = arith.constant 0 : index
    %159 = vector.load %arg10[%c2_181, %c1_182, %c7_183, %c0_184] : memref<6x10x24x32xf32, #tpu.memory_space<vmem>>, vector<4x8x8x32xf32>
    %160 = vector.shape_cast %158 : vector<32xf32> to vector<1x1x1x32xf32>
    %161 = vector.broadcast %160 : vector<1x1x1x32xf32> to vector<4x8x8x32xf32>
    %162 = arith.mulf %159, %161 : vector<4x8x8x32xf32>
    %163 = arith.addf %156, %162 : vector<4x8x8x32xf32>
    %c2_185 = arith.constant 2 : index
    %c1_186 = arith.constant 1 : index
    %c1_187 = arith.constant 1 : index
    %c0_188 = arith.constant 0 : index
    %164 = vector.load %arg3[%c2_185, %c1_186, %c1_187, %c0_188] : memref<3x3x3x32xf32, #tpu.memory_space<vmem>>, vector<1x1x1x32xf32>
    %165 = vector.shape_cast %164 : vector<1x1x1x32xf32> to vector<32xf32>
    %c2_189 = arith.constant 2 : index
    %c1_190 = arith.constant 1 : index
    %c8_191 = arith.constant 8 : index
    %c0_192 = arith.constant 0 : index
    %166 = vector.load %arg10[%c2_189, %c1_190, %c8_191, %c0_192] : memref<6x10x24x32xf32, #tpu.memory_space<vmem>>, vector<4x8x8x32xf32>
    %167 = vector.shape_cast %165 : vector<32xf32> to vector<1x1x1x32xf32>
    %168 = vector.broadcast %167 : vector<1x1x1x32xf32> to vector<4x8x8x32xf32>
    %169 = arith.mulf %166, %168 : vector<4x8x8x32xf32>
    %170 = arith.addf %163, %169 : vector<4x8x8x32xf32>
    %c2_193 = arith.constant 2 : index
    %c1_194 = arith.constant 1 : index
    %c2_195 = arith.constant 2 : index
    %c0_196 = arith.constant 0 : index
    %171 = vector.load %arg3[%c2_193, %c1_194, %c2_195, %c0_196] : memref<3x3x3x32xf32, #tpu.memory_space<vmem>>, vector<1x1x1x32xf32>
    %172 = vector.shape_cast %171 : vector<1x1x1x32xf32> to vector<32xf32>
    %c2_197 = arith.constant 2 : index
    %c1_198 = arith.constant 1 : index
    %c9_199 = arith.constant 9 : index
    %c0_200 = arith.constant 0 : index
    %173 = vector.load %arg10[%c2_197, %c1_198, %c9_199, %c0_200] : memref<6x10x24x32xf32, #tpu.memory_space<vmem>>, vector<4x8x8x32xf32>
    %174 = vector.shape_cast %172 : vector<32xf32> to vector<1x1x1x32xf32>
    %175 = vector.broadcast %174 : vector<1x1x1x32xf32> to vector<4x8x8x32xf32>
    %176 = arith.mulf %173, %175 : vector<4x8x8x32xf32>
    %177 = arith.addf %170, %176 : vector<4x8x8x32xf32>
    %c2_201 = arith.constant 2 : index
    %c2_202 = arith.constant 2 : index
    %c0_203 = arith.constant 0 : index
    %c0_204 = arith.constant 0 : index
    %178 = vector.load %arg3[%c2_201, %c2_202, %c0_203, %c0_204] : memref<3x3x3x32xf32, #tpu.memory_space<vmem>>, vector<1x1x1x32xf32>
    %179 = vector.shape_cast %178 : vector<1x1x1x32xf32> to vector<32xf32>
    %c2_205 = arith.constant 2 : index
    %c2_206 = arith.constant 2 : index
    %c7_207 = arith.constant 7 : index
    %c0_208 = arith.constant 0 : index
    %180 = vector.load %arg10[%c2_205, %c2_206, %c7_207, %c0_208] : memref<6x10x24x32xf32, #tpu.memory_space<vmem>>, vector<4x8x8x32xf32>
    %181 = vector.shape_cast %179 : vector<32xf32> to vector<1x1x1x32xf32>
    %182 = vector.broadcast %181 : vector<1x1x1x32xf32> to vector<4x8x8x32xf32>
    %183 = arith.mulf %180, %182 : vector<4x8x8x32xf32>
    %184 = arith.addf %177, %183 : vector<4x8x8x32xf32>
    %c2_209 = arith.constant 2 : index
    %c2_210 = arith.constant 2 : index
    %c1_211 = arith.constant 1 : index
    %c0_212 = arith.constant 0 : index
    %185 = vector.load %arg3[%c2_209, %c2_210, %c1_211, %c0_212] : memref<3x3x3x32xf32, #tpu.memory_space<vmem>>, vector<1x1x1x32xf32>
    %186 = vector.shape_cast %185 : vector<1x1x1x32xf32> to vector<32xf32>
    %c2_213 = arith.constant 2 : index
    %c2_214 = arith.constant 2 : index
    %c8_215 = arith.constant 8 : index
    %c0_216 = arith.constant 0 : index
    %187 = vector.load %arg10[%c2_213, %c2_214, %c8_215, %c0_216] : memref<6x10x24x32xf32, #tpu.memory_space<vmem>>, vector<4x8x8x32xf32>
    %188 = vector.shape_cast %186 : vector<32xf32> to vector<1x1x1x32xf32>
    %189 = vector.broadcast %188 : vector<1x1x1x32xf32> to vector<4x8x8x32xf32>
    %190 = arith.mulf %187, %189 : vector<4x8x8x32xf32>
    %191 = arith.addf %184, %190 : vector<4x8x8x32xf32>
    %c2_217 = arith.constant 2 : index
    %c2_218 = arith.constant 2 : index
    %c2_219 = arith.constant 2 : index
    %c0_220 = arith.constant 0 : index
    %192 = vector.load %arg3[%c2_217, %c2_218, %c2_219, %c0_220] : memref<3x3x3x32xf32, #tpu.memory_space<vmem>>, vector<1x1x1x32xf32>
    %193 = vector.shape_cast %192 : vector<1x1x1x32xf32> to vector<32xf32>
    %c2_221 = arith.constant 2 : index
    %c2_222 = arith.constant 2 : index
    %c9_223 = arith.constant 9 : index
    %c0_224 = arith.constant 0 : index
    %194 = vector.load %arg10[%c2_221, %c2_222, %c9_223, %c0_224] : memref<6x10x24x32xf32, #tpu.memory_space<vmem>>, vector<4x8x8x32xf32>
    %195 = vector.shape_cast %193 : vector<32xf32> to vector<1x1x1x32xf32>
    %196 = vector.broadcast %195 : vector<1x1x1x32xf32> to vector<4x8x8x32xf32>
    %197 = arith.mulf %194, %196 : vector<4x8x8x32xf32>
    %198 = arith.addf %191, %197 : vector<4x8x8x32xf32>
    %199 = vector.shape_cast %198 : vector<4x8x8x32xf32> to vector<256x32xf32>
    %cst_225 = arith.constant dense<0.000000e+00> : vector<32xf32>
    %200 = vector.multi_reduction <add>, %199, %cst_225 [0] : vector<256x32xf32> to vector<32xf32>
    %201 = vector.shape_cast %200 : vector<32xf32> to vector<1x32xf32>
    %cst_226 = arith.constant 3.906250e-03 : f32
    %202 = vector.broadcast %cst_226 : f32 to vector<1x32xf32>
    %203 = arith.mulf %201, %202 : vector<1x32xf32>
    %c0_227 = arith.constant 0 : index
    %c0_228 = arith.constant 0 : index
    %204 = vector.load %arg4[%c0_227, %c0_228] : memref<32x8xf32, #tpu.memory_space<vmem>>, vector<32x8xf32>
    %cst_229 = arith.constant dense<0.000000e+00> : vector<1x8xf32>
    %205 = tpu.matmul %203, %204, %cst_229 {dimension_numbers = #tpu.dot_dimension_numbers<[1], [0], [0], [1], [0, 0, 1, 1], [], []>} : vector<1x32xf32>, vector<32x8xf32>, vector<1x8xf32> -> vector<1x8xf32>
    %c0_230 = arith.constant 0 : index
    %c0_231 = arith.constant 0 : index
    %206 = vector.load %arg5[%c0_230, %c0_231] : memref<1x8xf32, #tpu.memory_space<vmem>>, vector<1x8xf32>
    %207 = arith.addf %205, %206 : vector<1x8xf32>
    %c0_232 = arith.constant 0 : index
    %c0_233 = arith.constant 0 : index
    %208 = vector.load %arg6[%c0_232, %c0_233] : memref<8x32xf32, #tpu.memory_space<vmem>>, vector<8x32xf32>
    %cst_234 = arith.constant dense<0.000000e+00> : vector<1x32xf32>
    %209 = tpu.matmul %207, %208, %cst_234 {dimension_numbers = #tpu.dot_dimension_numbers<[1], [0], [0], [1], [0, 0, 1, 1], [], []>} : vector<1x8xf32>, vector<8x32xf32>, vector<1x32xf32> -> vector<1x32xf32>
    %c0_235 = arith.constant 0 : index
    %c0_236 = arith.constant 0 : index
    %210 = vector.load %arg7[%c0_235, %c0_236] : memref<1x32xf32, #tpu.memory_space<vmem>>, vector<1x32xf32>
    %211 = arith.addf %209, %210 : vector<1x32xf32>
    %212 = arith.negf %211 : vector<1x32xf32>
    %213 = math.exp %212 : vector<1x32xf32>
    %cst_237 = arith.constant 1.000000e+00 : f32
    %214 = vector.broadcast %cst_237 : f32 to vector<1x32xf32>
    %215 = arith.addf %214, %213 : vector<1x32xf32>
    %216 = arith.divf %214, %215 : vector<1x32xf32>
    %217 = vector.broadcast %216 : vector<1x32xf32> to vector<256x32xf32>
    %218 = arith.mulf %199, %217 : vector<256x32xf32>
    %c0_238 = arith.constant 0 : index
    %c0_239 = arith.constant 0 : index
    %219 = vector.load %arg8[%c0_238, %c0_239] : memref<8x32xf32, #tpu.memory_space<vmem>>, vector<8x32xf32>
    %cst_240 = arith.constant dense<0.000000e+00> : vector<8x256xf32>
    %220 = tpu.matmul %219, %218, %cst_240 {dimension_numbers = #tpu.dot_dimension_numbers<[1], [1], [0], [0], [0, 0, 1, 0], [], []>} : vector<8x32xf32>, vector<256x32xf32>, vector<8x256xf32> -> vector<8x256xf32>
    %cst_241 = arith.constant 5.000000e-01 : f32
    %221 = vector.broadcast %cst_241 : f32 to vector<8x256xf32>
    %222 = arith.mulf %221, %220 : vector<8x256xf32>
    %223 = arith.addf %1, %222 : vector<8x256xf32>
    %c0_242 = arith.constant 0 : index
    %c0_243 = arith.constant 0 : index
    %c0_244 = arith.constant 0 : index
    %224 = vector.load %arg9[%c0_242, %c0_243, %c0_244] : memref<1x8x256xf32, #tpu.memory_space<vmem>>, vector<1x8x256xf32>
    %225 = vector.shape_cast %224 : vector<1x8x256xf32> to vector<8x256xf32>
    %226 = vector.shape_cast %223 : vector<8x256xf32> to vector<1x8x256xf32>
    tpu.vector_store %arg9[%c0_242, %c0_243, %c0_244], %226 {strides = array<i32>} : memref<1x8x256xf32, #tpu.memory_space<vmem>>, vector<1x8x256xf32>,
    return
  }
  func.func @transform_0(%arg0: i32) -> (i32, i32, i32) {
    %c0_i32 = arith.constant 0 : i32
    %c0_i32_0 = arith.constant 0 : i32
    %c0_i32_1 = arith.constant 0 : i32
    return %arg0, %c0_i32, %c0_i32_0 : i32, i32, i32
  }
  func.func @transform_1(%arg0: i32) -> (i32, i32) {
    %c0_i32 = arith.constant 0 : i32
    %c0_i32_0 = arith.constant 0 : i32
    %c0_i32_1 = arith.constant 0 : i32
    return %c0_i32, %c0_i32_0 : i32, i32
  }
  func.func @transform_2(%arg0: i32) -> (i32, i32, i32, i32) {
    %c0_i32 = arith.constant 0 : i32
    %c0_i32_0 = arith.constant 0 : i32
    %c0_i32_1 = arith.constant 0 : i32
    %c0_i32_2 = arith.constant 0 : i32
    %c0_i32_3 = arith.constant 0 : i32
    return %c0_i32, %c0_i32_0, %c0_i32_1, %c0_i32_2 : i32, i32, i32, i32
  }
  func.func @transform_3(%arg0: i32) -> (i32, i32) {
    %c0_i32 = arith.constant 0 : i32
    %c0_i32_0 = arith.constant 0 : i32
    %c0_i32_1 = arith.constant 0 : i32
    return %c0_i32, %c0_i32_0 : i32, i32
  }
  func.func @transform_4(%arg0: i32) -> (i32, i32) {
    %c0_i32 = arith.constant 0 : i32
    %c0_i32_0 = arith.constant 0 : i32
    %c0_i32_1 = arith.constant 0 : i32
    return %c0_i32, %c0_i32_0 : i32, i32
  }
  func.func @transform_5(%arg0: i32) -> (i32, i32) {
    %c0_i32 = arith.constant 0 : i32
    %c0_i32_0 = arith.constant 0 : i32
    %c0_i32_1 = arith.constant 0 : i32
    return %c0_i32, %c0_i32_0 : i32, i32
  }
  func.func @transform_6(%arg0: i32) -> (i32, i32) {
    %c0_i32 = arith.constant 0 : i32
    %c0_i32_0 = arith.constant 0 : i32
    %c0_i32_1 = arith.constant 0 : i32
    return %c0_i32, %c0_i32_0 : i32, i32
  }
  func.func @transform_7(%arg0: i32) -> (i32, i32) {
    %c0_i32 = arith.constant 0 : i32
    %c0_i32_0 = arith.constant 0 : i32
    %c0_i32_1 = arith.constant 0 : i32
    return %c0_i32, %c0_i32_0 : i32, i32
  }
  func.func @transform_8(%arg0: i32) -> (i32, i32, i32) {
    %c0_i32 = arith.constant 0 : i32
    %c0_i32_0 = arith.constant 0 : i32
    %c0_i32_1 = arith.constant 0 : i32
    return %arg0, %c0_i32, %c0_i32_0 : i32, i32, i32
  }
}

</mosaic_0001>

<llo_original>
// kernel: basic_bneck_forward.1
$region0: #{basic_bneck_forward.1}
  #allocation0 [shape = 'u32[]', space=smem, size = 0x4, offset = 0x4, fixed_abs, tag = 'smem constant byte address 0x4 - core index']
  #allocation1 [shape = 'u32[144,128]{1,0:T(1,128)}', space=vmem, size = 0x12000, scoped, tag = 'internal scratch']
  #allocation2 [shape = 'f32[6,10,24,32]{3,2,1,0:T(8,128)}', space=vmem, size = 0xb4000, scoped, tag = 'scratch operand']
  %s0 = inlined_call_operand.vmem [shape: f32[2,8,256], index: 0, kind: input, shape index: {}]
  %s1 = inlined_call_operand.vmem [shape: f32[8,32], index: 1, kind: input, shape index: {}]
  %s2 = inlined_call_operand.vmem [shape: f32[3,3,3,32], index: 2, kind: input, shape index: {}]
  %s3 = inlined_call_operand.vmem [shape: f32[32,8], index: 3, kind: input, shape index: {}]
  %s4 = inlined_call_operand.vmem [shape: f32[1,8], index: 4, kind: input, shape index: {}]
  %s5 = inlined_call_operand.vmem [shape: f32[8,32], index: 5, kind: input, shape index: {}]
  %s6 = inlined_call_operand.vmem [shape: f32[1,32], index: 6, kind: input, shape index: {}]
  %s7 = inlined_call_operand.vmem [shape: f32[8,32], index: 7, kind: input, shape index: {}]
  %s8 = inlined_call_operand.vmem [shape: f32[2,8,256], index: 8, kind: output, shape index: {}]
  %s9 = sld [smem:[#allocation0]]
  $region65: #{basic_bneck_forward.1} parent=0
    _
  %s11 = ssub.s32 1, %s9
  %s12 = scalar_select 0, %s11, %s9
  loop: start=0, step=1, limit=4
  $region2: #{basic_bneck_forward.1} parent=0 // loop_pre_header
    _
  $region3: #{basic_bneck_forward.1} parent=0 // loop_header
    %s14 = sphi 0, %s18
    %p15 = scmp.ge.s32.totalorder %s14, 4
    %s24 = sphi 0, %s26
    %s27 = sphi 0, %s24
    %s28 = sphi 0, %s27
    %s44 = sphi 0, %s28
    %s48 = sphi 0, %s48
    %s50 = sphi 0, %s48
    %s51 = sphi 0, %s50
    %s65 = sphi 0, %s51
    %s69 = sphi 0, %s69
    %s71 = sphi 0, %s69
    %s72 = sphi 0, %s71
    %s86 = sphi 0, %s72
    %s90 = sphi 0, %s90
    %s92 = sphi 0, %s90
    %s93 = sphi 0, %s92
    %s107 = sphi 0, %s93
    %s111 = sphi 0, %s111
    %s113 = sphi 0, %s111
    %s114 = sphi 0, %s113
    %s128 = sphi 0, %s114
    %s132 = sphi 0, %s132
    %s134 = sphi 0, %s132
    %s135 = sphi 0, %s134
    %s149 = sphi 0, %s135
    %s153 = sphi 0, %s153
    %s155 = sphi 0, %s153
    %s156 = sphi 0, %s155
    %s170 = sphi 0, %s156
    %s174 = sphi 0, %s174
    %s176 = sphi 0, %s174
    %s177 = sphi 0, %s176
    %s191 = sphi 0, %s177
    %s197 = sphi 0, %s199
    %s200 = sphi 0, %s197
    %s201 = sphi 0, %s200
    %s217 = sphi 0, %s201
  $region4: #{basic_bneck_forward.1} parent=0 // loop_header_branch
    %17 = sbr.rel (%p15) target = $region8
  $region5: #{basic_bneck_forward.1} parent=0 // loop_body
    %s19 = ssub.s32 %s14, 1
    %s20 = ssub.s32 %s14, 2
    %s21 = sadd.s32 %s14, 1
    %s22 = ssub.s32 %s14, %s21
    %p23 = scmp.eq.s32.totalorder %s22, 0
    %s25 = sadd.s32 %s24, 1
    %s26 = scalar_select %p23, %s24, %s25
    %p29 = pneg %p23
    %p30 = scmp.eq.s32.totalorder %s14, 1
    %p31 = por %p29, %p30
    %p32 = scmp.ne.s32.totalorder %s24, %s27
    %p33 = scmp.eq.s32.totalorder %s14, 0
    %p34 = por %p32, %p33
    %p35 = scmp.ne.s32.totalorder %s24, %s27
    %p36 = scmp.eq.s32.totalorder %s19, 1
    %p37 = por %p35, %p36
    %p38 = scmp.ne.s32.totalorder %s27, %s28
    %p39 = scmp.eq.s32.totalorder %s19, 0
    %p40 = por %p38, %p39
    %p41 = scmp.ne.s32.totalorder %s27, %s28
    %p42 = scmp.eq.s32.totalorder %s20, 1
    %p43 = por %p41, %p42
    %p45 = scmp.ne.s32.totalorder %s28, %s44
    %p46 = scmp.eq.s32.totalorder %s20, 0
    %p47 = por %p45, %p46
    %s49 = sadd.s32 %s48, 1
    %p52 = scmp.eq.s32.totalorder %s14, 1
    %p53 = scmp.ne.s32.totalorder %s48, %s50
    %p54 = scmp.eq.s32.totalorder %s14, 0
    %p55 = por %p53, %p54
    %p56 = scmp.ne.s32.totalorder %s48, %s50
    %p57 = scmp.eq.s32.totalorder %s19, 1
    %p58 = por %p56, %p57
    %p59 = scmp.ne.s32.totalorder %s50, %s51
    %p60 = scmp.eq.s32.totalorder %s19, 0
    %p61 = por %p59, %p60
    %p62 = scmp.ne.s32.totalorder %s50, %s51
    %p63 = scmp.eq.s32.totalorder %s20, 1
    %p64 = por %p62, %p63
    %p66 = scmp.ne.s32.totalorder %s51, %s65
    %p67 = scmp.eq.s32.totalorder %s20, 0
    %p68 = por %p66, %p67
    %s70 = sadd.s32 %s69, 1
    %p73 = scmp.eq.s32.totalorder %s14, 1
    %p74 = scmp.ne.s32.totalorder %s69, %s71
    %p75 = scmp.eq.s32.totalorder %s14, 0
    %p76 = por %p74, %p75
    %p77 = scmp.ne.s32.totalorder %s69, %s71
    %p78 = scmp.eq.s32.totalorder %s19, 1
    %p79 = por %p77, %p78
    %p80 = scmp.ne.s32.totalorder %s71, %s72
    %p81 = scmp.eq.s32.totalorder %s19, 0
    %p82 = por %p80, %p81
    %p83 = scmp.ne.s32.totalorder %s71, %s72
    %p84 = scmp.eq.s32.totalorder %s20, 1
    %p85 = por %p83, %p84
    %p87 = scmp.ne.s32.totalorder %s72, %s86
    %p88 = scmp.eq.s32.totalorder %s20, 0
    %p89 = por %p87, %p88
    %s91 = sadd.s32 %s90, 1
    %p94 = scmp.eq.s32.totalorder %s14, 1
    %p95 = scmp.ne.s32.totalorder %s90, %s92
    %p96 = scmp.eq.s32.totalorder %s14, 0
    %p97 = por %p95, %p96
    %p98 = scmp.ne.s32.totalorder %s90, %s92
    %p99 = scmp.eq.s32.totalorder %s19, 1
    %p100 = por %p98, %p99
    %p101 = scmp.ne.s32.totalorder %s92, %s93
    %p102 = scmp.eq.s32.totalorder %s19, 0
    %p103 = por %p101, %p102
    %p104 = scmp.ne.s32.totalorder %s92, %s93
    %p105 = scmp.eq.s32.totalorder %s20, 1
    %p106 = por %p104, %p105
    %p108 = scmp.ne.s32.totalorder %s93, %s107
    %p109 = scmp.eq.s32.totalorder %s20, 0
    %p110 = por %p108, %p109
    %s112 = sadd.s32 %s111, 1
    %p115 = scmp.eq.s32.totalorder %s14, 1
    %p116 = scmp.ne.s32.totalorder %s111, %s113
    %p117 = scmp.eq.s32.totalorder %s14, 0
    %p118 = por %p116, %p117
    %p119 = scmp.ne.s32.totalorder %s111, %s113
    %p120 = scmp.eq.s32.totalorder %s19, 1
    %p121 = por %p119, %p120
    %p122 = scmp.ne.s32.totalorder %s113, %s114
    %p123 = scmp.eq.s32.totalorder %s19, 0
    %p124 = por %p122, %p123
    %p125 = scmp.ne.s32.totalorder %s113, %s114
    %p126 = scmp.eq.s32.totalorder %s20, 1
    %p127 = por %p125, %p126
    %p129 = scmp.ne.s32.totalorder %s114, %s128
    %p130 = scmp.eq.s32.totalorder %s20, 0
    %p131 = por %p129, %p130
    %s133 = sadd.s32 %s132, 1
    %p136 = scmp.eq.s32.totalorder %s14, 1
    %p137 = scmp.ne.s32.totalorder %s132, %s134
    %p138 = scmp.eq.s32.totalorder %s14, 0
    %p139 = por %p137, %p138
    %p140 = scmp.ne.s32.totalorder %s132, %s134
    %p141 = scmp.eq.s32.totalorder %s19, 1
    %p142 = por %p140, %p141
    %p143 = scmp.ne.s32.totalorder %s134, %s135
    %p144 = scmp.eq.s32.totalorder %s19, 0
    %p145 = por %p143, %p144
    %p146 = scmp.ne.s32.totalorder %s134, %s135
    %p147 = scmp.eq.s32.totalorder %s20, 1
    %p148 = por %p146, %p147
    %p150 = scmp.ne.s32.totalorder %s135, %s149
    %p151 = scmp.eq.s32.totalorder %s20, 0
    %p152 = por %p150, %p151
    %s154 = sadd.s32 %s153, 1
    %p157 = scmp.eq.s32.totalorder %s14, 1
    %p158 = scmp.ne.s32.totalorder %s153, %s155
    %p159 = scmp.eq.s32.totalorder %s14, 0
    %p160 = por %p158, %p159
    %p161 = scmp.ne.s32.totalorder %s153, %s155
    %p162 = scmp.eq.s32.totalorder %s19, 1
    %p163 = por %p161, %p162
    %p164 = scmp.ne.s32.totalorder %s155, %s156
    %p165 = scmp.eq.s32.totalorder %s19, 0
    %p166 = por %p164, %p165
    %p167 = scmp.ne.s32.totalorder %s155, %s156
    %p168 = scmp.eq.s32.totalorder %s20, 1
    %p169 = por %p167, %p168
    %p171 = scmp.ne.s32.totalorder %s156, %s170
    %p172 = scmp.eq.s32.totalorder %s20, 0
    %p173 = por %p171, %p172
    %s175 = sadd.s32 %s174, 1
    %p178 = scmp.eq.s32.totalorder %s14, 1
    %p179 = scmp.ne.s32.totalorder %s174, %s176
    %p180 = scmp.eq.s32.totalorder %s14, 0
    %p181 = por %p179, %p180
    %p182 = scmp.ne.s32.totalorder %s174, %s176
    %p183 = scmp.eq.s32.totalorder %s19, 1
    %p184 = por %p182, %p183
    %p185 = scmp.ne.s32.totalorder %s176, %s177
    %p186 = scmp.eq.s32.totalorder %s19, 0
    %p187 = por %p185, %p186
    %p188 = scmp.ne.s32.totalorder %s176, %s177
    %p189 = scmp.eq.s32.totalorder %s20, 1
    %p190 = por %p188, %p189
    %p192 = scmp.ne.s32.totalorder %s177, %s191
    %p193 = scmp.eq.s32.totalorder %s20, 0
    %p194 = por %p192, %p193
    %s195 = ssub.s32 %s14, %s21
    %p196 = scmp.eq.s32.totalorder %s195, 0
    %s198 = sadd.s32 %s197, 1
    %s199 = scalar_select %p196, %s197, %s198
    %p202 = pneg %p196
    %p203 = scmp.eq.s32.totalorder %s14, 1
    %p204 = por %p202, %p203
    %p205 = scmp.ne.s32.totalorder %s197, %s200
    %p206 = scmp.eq.s32.totalorder %s14, 0
    %p207 = por %p205, %p206
    %p208 = scmp.ne.s32.totalorder %s197, %s200
    %p209 = scmp.eq.s32.totalorder %s19, 1
    %p210 = por %p208, %p209
    %p211 = scmp.ne.s32.totalorder %s200, %s201
    %p212 = scmp.eq.s32.totalorder %s19, 0
    %p213 = por %p211, %p212
    %p214 = scmp.ne.s32.totalorder %s200, %s201
    %p215 = scmp.eq.s32.totalorder %s20, 1
    %p216 = por %p214, %p215
    %p218 = scmp.ne.s32.totalorder %s201, %s217
    %p219 = scmp.eq.s32.totalorder %s20, 0
    %p220 = por %p218, %p219
    %p221 = scmp.le.s32.totalorder 1, %s14
    %p222 = scmp.lt.s32.totalorder %s14, 3
    %p223 = pnand %p221, %p222
    %p224 = pneg %p223
    // Predicated region
    $region9: #{basic_bneck_forward.1} parent=5 // pred_check
      _
    $region10: #{basic_bneck_forward.1} parent=5 // pred_check_branch
      %226 = sbr.rel (%p223) target = $region12
    $region11: #{basic_bneck_forward.1} parent=5 // pred_region
      %s227 = ssub.s32 %s14, 1
      // Predicated region
      $region13: #{basic_bneck_forward.1} parent=11 // pred_check
        %p228 = pneg %p61
      $region14: #{basic_bneck_forward.1} parent=11 // pred_check_branch
        %230 = sbr.rel (%p228) target = $region16
      $region15: #{basic_bneck_forward.1} parent=11 // pred_region
        _
      $region16: #{basic_bneck_forward.1} parent=11 // pred_fallthru
        _
      // Predicated region
      $region17: #{basic_bneck_forward.1} parent=11 // pred_check
        %p231 = pneg %p82
      $region18: #{basic_bneck_forward.1} parent=11 // pred_check_branch
        %233 = sbr.rel (%p231) target = $region20
      $region19: #{basic_bneck_forward.1} parent=11 // pred_region
        _
      $region20: #{basic_bneck_forward.1} parent=11 // pred_fallthru
        _
      // Predicated region
      $region21: #{basic_bneck_forward.1} parent=11 // pred_check
        %p234 = pneg %p103
      $region22: #{basic_bneck_forward.1} parent=11 // pred_check_branch
        %236 = sbr.rel (%p234) target = $region24
      $region23: #{basic_bneck_forward.1} parent=11 // pred_region
        _
      $region24: #{basic_bneck_forward.1} parent=11 // pred_fallthru
        _
      // Predicated region
      $region25: #{basic_bneck_forward.1} parent=11 // pred_check
        %p237 = pneg %p124
      $region26: #{basic_bneck_forward.1} parent=11 // pred_check_branch
        %239 = sbr.rel (%p237) target = $region28
      $region27: #{basic_bneck_forward.1} parent=11 // pred_region
        _
      $region28: #{basic_bneck_forward.1} parent=11 // pred_fallthru
        _
      // Predicated region
      $region29: #{basic_bneck_forward.1} parent=11 // pred_check
        %p240 = pneg %p145
      $region30: #{basic_bneck_forward.1} parent=11 // pred_check_branch
        %242 = sbr.rel (%p240) target = $region32
      $region31: #{basic_bneck_forward.1} parent=11 // pred_region
        _
      $region32: #{basic_bneck_forward.1} parent=11 // pred_fallthru
        _
      // Predicated region
      $region33: #{basic_bneck_forward.1} parent=11 // pred_check
        %p243 = pneg %p166
      $region34: #{basic_bneck_forward.1} parent=11 // pred_check_branch
        %245 = sbr.rel (%p243) target = $region36
      $region35: #{basic_bneck_forward.1} parent=11 // pred_region
        _
      $region36: #{basic_bneck_forward.1} parent=11 // pred_fallthru
        _
      // Predicated region
      $region37: #{basic_bneck_forward.1} parent=11 // pred_check
        %p246 = pneg %p187
      $region38: #{basic_bneck_forward.1} parent=11 // pred_check_branch
        %248 = sbr.rel (%p246) target = $region40
      $region39: #{basic_bneck_forward.1} parent=11 // pred_region
        _
      $region40: #{basic_bneck_forward.1} parent=11 // pred_fallthru
        _
    $region12: #{basic_bneck_forward.1} parent=5 // pred_fallthru
      _
    %p249 = scmp.lt.s32.totalorder %s14, 2
    // Predicated region
    $region41: #{basic_bneck_forward.1} parent=5 // pred_check
      %p250 = pneg %p249
    $region42: #{basic_bneck_forward.1} parent=5 // pred_check_branch
      %252 = sbr.rel (%p250) target = $region44
    $region43: #{basic_bneck_forward.1} parent=5 // pred_region
      // Predicated region
      $region45: #{basic_bneck_forward.1} parent=43 // pred_check
        %p253 = pneg %p34
      $region46: #{basic_bneck_forward.1} parent=43 // pred_check_branch
        %255 = sbr.rel (%p253) target = $region48
      $region47: #{basic_bneck_forward.1} parent=43 // pred_region
        %p256 = scmp.lt.s32.totalorder %s14, 1
        %s257 = scalar_select %p256, %s14, 1
        %s258 = smul.addr %s257, 2
        %s259 = smul.addr %s258, 8
        %s260 = scalar_lea.vmem %s0, %s259
      $region48: #{basic_bneck_forward.1} parent=43 // pred_fallthru
        _
    $region44: #{basic_bneck_forward.1} parent=5 // pred_fallthru
      _
    %p261 = scmp.le.s32.totalorder 1, %s14
    %p262 = scmp.lt.s32.totalorder %s14, 3
    %p263 = pnand %p261, %p262
    %p264 = pneg %p263
    // Predicated region
    $region49: #{basic_bneck_forward.1} parent=5 // pred_check
      _
    $region50: #{basic_bneck_forward.1} parent=5 // pred_check_branch
      %266 = sbr.rel (%p263) target = $region52
    $region51: #{basic_bneck_forward.1} parent=5 // pred_region
      %s267 = ssub.s32 %s14, 1
      %p268 = scmp.lt.s32.totalorder %s19, 1
      %s269 = scalar_select %p268, %s19, 1
      %s270 = smul.addr %s269, 2
      %s271 = smul.addr %s270, 8
      %s272 = scalar_lea.vmem %s0, %s271
      %p273 = pneg %p40
      %p274 = pneg %p37
      %p275 = pneg %p61
      %p276 = pneg %p58
      %p277 = pneg %p82
      %p278 = pneg %p79
      %p279 = pneg %p103
      %p280 = pneg %p100
      %p281 = pneg %p124
      %p282 = pneg %p121
      %p283 = pneg %p145
      %p284 = pneg %p142
      %p285 = pneg %p166
      %p286 = pneg %p163
      %p287 = pneg %p187
      %p288 = pneg %p184
      %p289 = pneg %p213
      %p290 = pneg %p210
      %p291 = scmp.lt.s32.totalorder %s19, 1
      %s292 = scalar_select %p291, %s19, 1
      %s293 = smul.addr %s292, 2
      %s294 = smul.addr %s293, 8
      %s295 = scalar_lea.vmem %s8, %s294
      %p296 = scmp.lt.s32.totalorder %s19, 1
      %s297 = scalar_select %p296, %s19, 1
      %s298 = smul.addr %s297, 2
      %s299 = smul.addr %s298, 8
      %s300 = scalar_lea.vmem %s0, %s299
      %p301 = scmp.lt.s32.totalorder %s19, 1
      %s302 = scalar_select %p301, %s19, 1
      %s303 = smul.addr %s302, 2
      %s304 = smul.addr %s303, 8
      %s305 = scalar_lea.vmem %s8, %s304
      %v306 = vld [vmem:[%s300] sm:$0xff]
      %v307 = vld [vmem:[%s300 + $0x8] sm:$0xff]
      %308 = vxpose.xlu0.b32.start [1/16] %v306, 128
      %309 = vxpose.xlu0.b32.cont [2/16] 0.0, 128
      %310 = vxpose.xlu0.b32.cont [3/16] 0.0, 128
      %311 = vxpose.xlu0.b32.cont [4/16] 0.0, 128
      %312 = vxpose.xlu0.b32.cont [5/16] 0.0, 128
      %313 = vxpose.xlu0.b32.cont [6/16] 0.0, 128
      %314 = vxpose.xlu0.b32.cont [7/16] 0.0, 128
      %315 = vxpose.xlu0.b32.cont [8/16] 0.0, 128
      %316 = vxpose.xlu0.b32.cont [9/16] 0.0, 128
      %317 = vxpose.xlu0.b32.cont [10/16] 0.0, 128
      %318 = vxpose.xlu0.b32.cont [11/16] 0.0, 128
      %319 = vxpose.xlu0.b32.cont [12/16] 0.0, 128
      %320 = vxpose.xlu0.b32.cont [13/16] 0.0, 128
      %321 = vxpose.xlu0.b32.cont [14/16] 0.0, 128
      %322 = vxpose.xlu0.b32.cont [15/16] 0.0, 128
      %323 = vxpose.xlu0.b32.end [16/16] 0.0, 128
      %v324 = vpop.trf.xlu0
      %v325 = vpop.trf.xlu0
      %v326 = vpop.trf.xlu0
      %v327 = vpop.trf.xlu0
      %v328 = vpop.trf.xlu0
      %v329 = vpop.trf.xlu0
      %v330 = vpop.trf.xlu0
      %v331 = vpop.trf.xlu0
      %v332 = vpop.trf.xlu0
      %v333 = vpop.trf.xlu0
      %v334 = vpop.trf.xlu0
      %v335 = vpop.trf.xlu0
      %v336 = vpop.trf.xlu0
      %v337 = vpop.trf.xlu0
      %v338 = vpop.trf.xlu0
      %v339 = vpop.trf.xlu0
      %340 = vxpose.xlu0.b32.start [1/16] %v307, 128
      %341 = vxpose.xlu0.b32.cont [2/16] 0.0, 128
      %342 = vxpose.xlu0.b32.cont [3/16] 0.0, 128
      %343 = vxpose.xlu0.b32.cont [4/16] 0.0, 128
      %344 = vxpose.xlu0.b32.cont [5/16] 0.0, 128
      %345 = vxpose.xlu0.b32.cont [6/16] 0.0, 128
      %346 = vxpose.xlu0.b32.cont [7/16] 0.0, 128
      %347 = vxpose.xlu0.b32.cont [8/16] 0.0, 128
      %348 = vxpose.xlu0.b32.cont [9/16] 0.0, 128
      %349 = vxpose.xlu0.b32.cont [10/16] 0.0, 128
      %350 = vxpose.xlu0.b32.cont [11/16] 0.0, 128
      %351 = vxpose.xlu0.b32.cont [12/16] 0.0, 128
      %352 = vxpose.xlu0.b32.cont [13/16] 0.0, 128
      %353 = vxpose.xlu0.b32.cont [14/16] 0.0, 128
      %354 = vxpose.xlu0.b32.cont [15/16] 0.0, 128
      %355 = vxpose.xlu0.b32.end [16/16] 0.0, 128
      %v356 = vpop.trf.xlu0
      %v357 = vpop.trf.xlu0
      %v358 = vpop.trf.xlu0
      %v359 = vpop.trf.xlu0
      %v360 = vpop.trf.xlu0
      %v361 = vpop.trf.xlu0
      %v362 = vpop.trf.xlu0
      %v363 = vpop.trf.xlu0
      %v364 = vpop.trf.xlu0
      %v365 = vpop.trf.xlu0
      %v366 = vpop.trf.xlu0
      %v367 = vpop.trf.xlu0
      %v368 = vpop.trf.xlu0
      %v369 = vpop.trf.xlu0
      %v370 = vpop.trf.xlu0
      %v371 = vpop.trf.xlu0
      %v372 = vld [vmem:[%s1] sm:$0xff]
      %vm373 = vcmask 64512
      %v375 = vsel %vm373, %v324, 0
      %v378 = vsel %vm373, %v325, 0
      %v381 = vsel %vm373, %v326, 0
      %v384 = vsel %vm373, %v327, 0
      %v387 = vsel %vm373, %v328, 0
      %v390 = vsel %vm373, %v329, 0
      %v393 = vsel %vm373, %v330, 0
      %v396 = vsel %vm373, %v331, 0
      %v399 = vsel %vm373, %v332, 0
      %v402 = vsel %vm373, %v333, 0
      %v405 = vsel %vm373, %v334, 0
      %v408 = vsel %vm373, %v335, 0
      %v411 = vsel %vm373, %v336, 0
      %v414 = vsel %vm373, %v337, 0
      %v417 = vsel %vm373, %v338, 0
      %v420 = vsel %vm373, %v339, 0
      %v423 = vsel %vm373, %v356, 0
      %v426 = vsel %vm373, %v357, 0
      %v429 = vsel %vm373, %v358, 0
      %v432 = vsel %vm373, %v359, 0
      %v435 = vsel %vm373, %v360, 0
      %v438 = vsel %vm373, %v361, 0
      %v441 = vsel %vm373, %v362, 0
      %v444 = vsel %vm373, %v363, 0
      %v447 = vsel %vm373, %v364, 0
      %v450 = vsel %vm373, %v365, 0
      %v453 = vsel %vm373, %v366, 0
      %v456 = vsel %vm373, %v367, 0
      %v459 = vsel %vm373, %v368, 0
      %v462 = vsel %vm373, %v369, 0
      %v465 = vsel %vm373, %v370, 0
      %v468 = vsel %vm373, %v371, 0
      %470 = vmatprep.subr.mxu0 0.0
      %471 = vmatpush1.msra.mxu0 0.0
      %472 = vmatprep.subr.mxu0 0.0
      %473 = vmatpush1.msra.mxu0 0.0
      %474 = vmatprep.subr.mxu0 0.0
      %475 = vmatpush1.msra.mxu0 0.0
      %476 = vmatprep.subr.mxu0 0.0
      %477 = vmatpush1.msra.mxu0 0.0
      %478 = vmatprep.subr.mxu0 0.0
      %479 = vmatpush1.msra.mxu0 0.0
      %480 = vmatprep.subr.mxu0 0.0
      %481 = vmatpush1.msra.mxu0 0.0
      %482 = vmatprep.subr.mxu0 0.0
      %483 = vmatpush1.msra.mxu0 0.0
      %484 = vmatprep.subr.mxu0 0.0
      %485 = vmatpush1.msra.mxu0 0.0
      %486 = vmatprep.subr.mxu0 0.0
      %487 = vmatpush1.msra.mxu0 0.0
      %488 = vmatprep.subr.mxu0 0.0
      %489 = vmatpush1.msra.mxu0 0.0
      %490 = vmatprep.subr.mxu0 0.0
      %491 = vmatpush1.msra.mxu0 0.0
      %492 = vmatprep.subr.mxu0 0.0
      %493 = vmatpush1.msra.mxu0 0.0
      %494 = vmatprep.subr.mxu0 0.0
      %495 = vmatpush1.msra.mxu0 0.0
      %496 = vmatprep.subr.mxu0 0.0
      %497 = vmatpush1.msra.mxu0 0.0
      %498 = vmatprep.subr.mxu0 0.0
      %499 = vmatpush1.msra.mxu0 0.0
      %500 = vmatprep.subr.mxu0 0.0
      %501 = vmatpush1.msra.mxu0 %v372
      %502 = vmatprep.subr.mxu0 0.0
      %503 = vmatpush2.msra.mxu0 0.0
      %504 = vmatprep.subr.mxu0 0.0
      %505 = vmatpush2.msra.mxu0 0.0
      %506 = vmatprep.subr.mxu0 0.0
      %507 = vmatpush2.msra.mxu0 0.0
      %508 = vmatprep.subr.mxu0 0.0
      %509 = vmatpush2.msra.mxu0 0.0
      %510 = vmatprep.subr.mxu0 0.0
      %511 = vmatpush2.msra.mxu0 0.0
      %512 = vmatprep.subr.mxu0 0.0
      %513 = vmatpush2.msra.mxu0 0.0
      %514 = vmatprep.subr.mxu0 0.0
      %515 = vmatpush2.msra.mxu0 0.0
      %516 = vmatprep.subr.mxu0 0.0
      %517 = vmatpush2.msra.mxu0 0.0
      %518 = vmatprep.subr.mxu0 0.0
      %519 = vmatpush2.msra.mxu0 0.0
      %520 = vmatprep.subr.mxu0 0.0
      %521 = vmatpush2.msra.mxu0 0.0
      %522 = vmatprep.subr.mxu0 0.0
      %523 = vmatpush2.msra.mxu0 0.0
      %524 = vmatprep.subr.mxu0 0.0
      %525 = vmatpush2.msra.mxu0 0.0
      %526 = vmatprep.subr.mxu0 0.0
      %527 = vmatpush2.msra.mxu0 0.0
      %528 = vmatprep.subr.mxu0 0.0
      %529 = vmatpush2.msra.mxu0 0.0
      %530 = vmatprep.subr.mxu0 0.0
      %531 = vmatpush2.msra.mxu0 0.0
      %532 = vmatprep.subr.mxu0 0.0
      %533 = vmatpush2.msra.mxu0 0.0
      %534 = vmatprep.mubr.f32.mxu0 0.0
      %535 = vmatmul.mubr.f32.gmra.mxu0 %v375
      %v536 = vpop.f32.mrf.mxu0
      %v537 = vadd.f32 0.0, %v536
      %v538 = vpop.f32.mrf.mxu0
      %539 = vmatprep.mubr.f32.mxu0 0.0
      %540 = vmatmul.mubr.f32.gmra.mxu0 %v378
      %v541 = vpop.f32.mrf.mxu0
      %v542 = vadd.f32 0.0, %v541
      %v543 = vpop.f32.mrf.mxu0
      %544 = vmatprep.mubr.f32.mxu0 0.0
      %545 = vmatmul.mubr.f32.gmra.mxu0 %v381
      %v546 = vpop.f32.mrf.mxu0
      %v547 = vadd.f32 0.0, %v546
      %v548 = vpop.f32.mrf.mxu0
      %549 = vmatprep.mubr.f32.mxu0 0.0
      %550 = vmatmul.mubr.f32.gmra.mxu0 %v384
      %v551 = vpop.f32.mrf.mxu0
      %v552 = vadd.f32 0.0, %v551
      %v553 = vpop.f32.mrf.mxu0
      %554 = vmatprep.mubr.f32.mxu0 0.0
      %555 = vmatmul.mubr.f32.gmra.mxu0 %v387
      %v556 = vpop.f32.mrf.mxu0
      %v557 = vadd.f32 0.0, %v556
      %v558 = vpop.f32.mrf.mxu0
      %559 = vmatprep.mubr.f32.mxu0 0.0
      %560 = vmatmul.mubr.f32.gmra.mxu0 %v390
      %v561 = vpop.f32.mrf.mxu0
      %v562 = vadd.f32 0.0, %v561
      %v563 = vpop.f32.mrf.mxu0
      %564 = vmatprep.mubr.f32.mxu0 0.0
      %565 = vmatmul.mubr.f32.gmra.mxu0 %v393
      %v566 = vpop.f32.mrf.mxu0
      %v567 = vadd.f32 0.0, %v566
      %v568 = vpop.f32.mrf.mxu0
      %569 = vmatprep.mubr.f32.mxu0 0.0
      %570 = vmatmul.mubr.f32.gmra.mxu0 %v396
      %v571 = vpop.f32.mrf.mxu0
      %v572 = vadd.f32 0.0, %v571
      %v573 = vpop.f32.mrf.mxu0
      %574 = vmatprep.mubr.f32.mxu0 0.0
      %575 = vmatmul.mubr.f32.gmra.mxu0 %v399
      %v576 = vpop.f32.mrf.mxu0
      %v577 = vadd.f32 0.0, %v576
      %v578 = vpop.f32.mrf.mxu0
      %579 = vmatprep.mubr.f32.mxu0 0.0
      %580 = vmatmul.mubr.f32.gmra.mxu0 %v402
      %v581 = vpop.f32.mrf.mxu0
      %v582 = vadd.f32 0.0, %v581
      %v583 = vpop.f32.mrf.mxu0
      %584 = vmatprep.mubr.f32.mxu0 0.0
      %585 = vmatmul.mubr.f32.gmra.mxu0 %v405
      %v586 = vpop.f32.mrf.mxu0
      %v587 = vadd.f32 0.0, %v586
      %v588 = vpop.f32.mrf.mxu0
      %589 = vmatprep.mubr.f32.mxu0 0.0
      %590 = vmatmul.mubr.f32.gmra.mxu0 %v408
      %v591 = vpop.f32.mrf.mxu0
      %v592 = vadd.f32 0.0, %v591
      %v593 = vpop.f32.mrf.mxu0
      %594 = vmatprep.mubr.f32.mxu0 0.0
      %595 = vmatmul.mubr.f32.gmra.mxu0 %v411
      %v596 = vpop.f32.mrf.mxu0
      %v597 = vadd.f32 0.0, %v596
      %v598 = vpop.f32.mrf.mxu0
      %599 = vmatprep.mubr.f32.mxu0 0.0
      %600 = vmatmul.mubr.f32.gmra.mxu0 %v414
      %v601 = vpop.f32.mrf.mxu0
      %v602 = vadd.f32 0.0, %v601
      %v603 = vpop.f32.mrf.mxu0
      %604 = vmatprep.mubr.f32.mxu0 0.0
      %605 = vmatmul.mubr.f32.gmra.mxu0 %v417
      %v606 = vpop.f32.mrf.mxu0
      %v607 = vadd.f32 0.0, %v606
      %v608 = vpop.f32.mrf.mxu0
      %609 = vmatprep.mubr.f32.mxu0 0.0
      %610 = vmatmul.mubr.f32.gmra.mxu0 %v420
      %v611 = vpop.f32.mrf.mxu0
      %v612 = vadd.f32 0.0, %v611
      %v613 = vpop.f32.mrf.mxu0
      %614 = vmatprep.mubr.f32.mxu0 0.0
      %615 = vmatmul.mubr.f32.gmra.mxu0 %v423
      %v616 = vpop.f32.mrf.mxu0
      %v617 = vadd.f32 0.0, %v616
      %v618 = vpop.f32.mrf.mxu0
      %619 = vmatprep.mubr.f32.mxu0 0.0
      %620 = vmatmul.mubr.f32.gmra.mxu0 %v426
      %v621 = vpop.f32.mrf.mxu0
      %v622 = vadd.f32 0.0, %v621
      %v623 = vpop.f32.mrf.mxu0
      %624 = vmatprep.mubr.f32.mxu0 0.0
      %625 = vmatmul.mubr.f32.gmra.mxu0 %v429
      %v626 = vpop.f32.mrf.mxu0
      %v627 = vadd.f32 0.0, %v626
      %v628 = vpop.f32.mrf.mxu0
      %629 = vmatprep.mubr.f32.mxu0 0.0
      %630 = vmatmul.mubr.f32.gmra.mxu0 %v432
      %v631 = vpop.f32.mrf.mxu0
      %v632 = vadd.f32 0.0, %v631
      %v633 = vpop.f32.mrf.mxu0
      %634 = vmatprep.mubr.f32.mxu0 0.0
      %635 = vmatmul.mubr.f32.gmra.mxu0 %v435
      %v636 = vpop.f32.mrf.mxu0
      %v637 = vadd.f32 0.0, %v636
      %v638 = vpop.f32.mrf.mxu0
      %639 = vmatprep.mubr.f32.mxu0 0.0
      %640 = vmatmul.mubr.f32.gmra.mxu0 %v438
      %v641 = vpop.f32.mrf.mxu0
      %v642 = vadd.f32 0.0, %v641
      %v643 = vpop.f32.mrf.mxu0
      %644 = vmatprep.mubr.f32.mxu0 0.0
      %645 = vmatmul.mubr.f32.gmra.mxu0 %v441
      %v646 = vpop.f32.mrf.mxu0
      %v647 = vadd.f32 0.0, %v646
      %v648 = vpop.f32.mrf.mxu0
      %649 = vmatprep.mubr.f32.mxu0 0.0
      %650 = vmatmul.mubr.f32.gmra.mxu0 %v444
      %v651 = vpop.f32.mrf.mxu0
      %v652 = vadd.f32 0.0, %v651
      %v653 = vpop.f32.mrf.mxu0
      %654 = vmatprep.mubr.f32.mxu0 0.0
      %655 = vmatmul.mubr.f32.gmra.mxu0 %v447
      %v656 = vpop.f32.mrf.mxu0
      %v657 = vadd.f32 0.0, %v656
      %v658 = vpop.f32.mrf.mxu0
      %659 = vmatprep.mubr.f32.mxu0 0.0
      %660 = vmatmul.mubr.f32.gmra.mxu0 %v450
      %v661 = vpop.f32.mrf.mxu0
      %v662 = vadd.f32 0.0, %v661
      %v663 = vpop.f32.mrf.mxu0
      %664 = vmatprep.mubr.f32.mxu0 0.0
      %665 = vmatmul.mubr.f32.gmra.mxu0 %v453
      %v666 = vpop.f32.mrf.mxu0
      %v667 = vadd.f32 0.0, %v666
      %v668 = vpop.f32.mrf.mxu0
      %669 = vmatprep.mubr.f32.mxu0 0.0
      %670 = vmatmul.mubr.f32.gmra.mxu0 %v456
      %v671 = vpop.f32.mrf.mxu0
      %v672 = vadd.f32 0.0, %v671
      %v673 = vpop.f32.mrf.mxu0
      %674 = vmatprep.mubr.f32.mxu0 0.0
      %675 = vmatmul.mubr.f32.gmra.mxu0 %v459
      %v676 = vpop.f32.mrf.mxu0
      %v677 = vadd.f32 0.0, %v676
      %v678 = vpop.f32.mrf.mxu0
      %679 = vmatprep.mubr.f32.mxu0 0.0
      %680 = vmatmul.mubr.f32.gmra.mxu0 %v462
      %v681 = vpop.f32.mrf.mxu0
      %v682 = vadd.f32 0.0, %v681
      %v683 = vpop.f32.mrf.mxu0
      %684 = vmatprep.mubr.f32.mxu0 0.0
      %685 = vmatmul.mubr.f32.gmra.mxu0 %v465
      %v686 = vpop.f32.mrf.mxu0
      %v687 = vadd.f32 0.0, %v686
      %v688 = vpop.f32.mrf.mxu0
      %689 = vmatprep.mubr.f32.mxu0 0.0
      %690 = vmatmul.mubr.f32.gmra.mxu0 %v468
      %v691 = vpop.f32.mrf.mxu0
      %v692 = vadd.f32 0.0, %v691
      %v693 = vpop.f32.mrf.mxu0
      %694 = vdwg.mxu0
      %vm695 = vcmask 261120
      %696 = vst.msk [vmem:[#allocation2] sm:$0xff] %vm695, 0.0
      %697 = vst.msk [vmem:[#allocation2 + $0x8] sm:$0xff] %vm695, 0.0
      %698 = vst.msk [vmem:[#allocation2 + $0x10] sm:$0xff] %vm695, 0.0
      %699 = vst.msk [vmem:[#allocation2 + $0x18] sm:$0xff] %vm695, 0.0
      %700 = vst.msk [vmem:[#allocation2 + $0x20] sm:$0xff] %vm695, 0.0
      %701 = vst.msk [vmem:[#allocation2 + $0x28] sm:$0xff] %vm695, 0.0
      %702 = vst.msk [vmem:[#allocation2 + $0x30] sm:$0xff] %vm695, 0.0
      %703 = vst.msk [vmem:[#allocation2 + $0x38] sm:$0xff] %vm695, 0.0
      %704 = vst.msk [vmem:[#allocation2 + $0x40] sm:$0xff] %vm695, 0.0
      %705 = vst.msk [vmem:[#allocation2 + $0x48] sm:$0xff] %vm695, 0.0
      %706 = vst.msk [vmem:[#allocation2 + $0x50] sm:$0xff] %vm695, 0.0
      %707 = vst.msk [vmem:[#allocation2 + $0x58] sm:$0xff] %vm695, 0.0
      %708 = vst.msk [vmem:[#allocation2 + $0x60] sm:$0xff] %vm695, 0.0
      %709 = vst.msk [vmem:[#allocation2 + $0x68] sm:$0xff] %vm695, 0.0
      %710 = vst.msk [vmem:[#allocation2 + $0x70] sm:$0xff] %vm695, 0.0
      %711 = vst.msk [vmem:[#allocation2 + $0x78] sm:$0xff] %vm695, 0.0
      %712 = vst.msk [vmem:[#allocation2 + $0x80] sm:$0xff] %vm695, 0.0
      %713 = vst.msk [vmem:[#allocation2 + $0x88] sm:$0xff] %vm695, 0.0
      %714 = vst.msk [vmem:[#allocation2 + $0x90] sm:$0xff] %vm695, 0.0
      %715 = vst.msk [vmem:[#allocation2 + $0x98] sm:$0xff] %vm695, 0.0
      %716 = vst.msk [vmem:[#allocation2 + $0xa0] sm:$0xff] %vm695, 0.0
      %717 = vst.msk [vmem:[#allocation2 + $0xa8] sm:$0xff] %vm695, 0.0
      %718 = vst.msk [vmem:[#allocation2 + $0xb0] sm:$0xff] %vm695, 0.0
      %719 = vst.msk [vmem:[#allocation2 + $0xb8] sm:$0xff] %vm695, 0.0
      %720 = vst.msk [vmem:[#allocation2 + $0xc0] sm:$0xff] %vm695, 0.0
      %721 = vst.msk [vmem:[#allocation2 + $0xc8] sm:$0xff] %vm695, 0.0
      %722 = vst.msk [vmem:[#allocation2 + $0xd0] sm:$0xff] %vm695, 0.0
      %723 = vst.msk [vmem:[#allocation2 + $0xd8] sm:$0xff] %vm695, 0.0
      %724 = vst.msk [vmem:[#allocation2 + $0xe0] sm:$0xff] %vm695, 0.0
      %725 = vst.msk [vmem:[#allocation2 + $0xe8] sm:$0xff] %vm695, 0.0
      %726 = vst.msk [vmem:[#allocation2 + $0xf0] sm:$0xff] %vm695, 0.0
      %727 = vst.msk [vmem:[#allocation2 + $0xf8] sm:$0xff] %vm695, 0.0
      %728 = vst.msk [vmem:[#allocation2 + $0x100] sm:$0xff] %vm695, 0.0
      %729 = vst.msk [vmem:[#allocation2 + $0x108] sm:$0xff] %vm695, 0.0
      %730 = vst.msk [vmem:[#allocation2 + $0x110] sm:$0xff] %vm695, 0.0
      %731 = vst.msk [vmem:[#allocation2 + $0x118] sm:$0xff] %vm695, 0.0
      %732 = vst.msk [vmem:[#allocation2 + $0x120] sm:$0xff] %vm695, 0.0
      %733 = vst.msk [vmem:[#allocation2 + $0x128] sm:$0xff] %vm695, 0.0
      %734 = vst.msk [vmem:[#allocation2 + $0x130] sm:$0xff] %vm695, 0.0
      %735 = vst.msk [vmem:[#allocation2 + $0x138] sm:$0xff] %vm695, 0.0
      %736 = vst.msk [vmem:[#allocation2 + $0x140] sm:$0xff] %vm695, 0.0
      %737 = vst.msk [vmem:[#allocation2 + $0x148] sm:$0xff] %vm695, 0.0
      %738 = vst.msk [vmem:[#allocation2 + $0x150] sm:$0xff] %vm695, 0.0
      %739 = vst.msk [vmem:[#allocation2 + $0x158] sm:$0xff] %vm695, 0.0
      %740 = vst.msk [vmem:[#allocation2 + $0x160] sm:$0xff] %vm695, 0.0
      %741 = vst.msk [vmem:[#allocation2 + $0x168] sm:$0xff] %vm695, 0.0
      %742 = vst.msk [vmem:[#allocation2 + $0x170] sm:$0xff] %vm695, 0.0
      %743 = vst.msk [vmem:[#allocation2 + $0x178] sm:$0xff] %vm695, 0.0
      %744 = vst.msk [vmem:[#allocation2 + $0x180] sm:$0xff] %vm695, 0.0
      %745 = vst.msk [vmem:[#allocation2 + $0x188] sm:$0xff] %vm695, 0.0
      %746 = vst.msk [vmem:[#allocation2 + $0x190] sm:$0xff] %vm695, 0.0
      %747 = vst.msk [vmem:[#allocation2 + $0x198] sm:$0xff] %vm695, 0.0
      %748 = vst.msk [vmem:[#allocation2 + $0x1a0] sm:$0xff] %vm695, 0.0
      %749 = vst.msk [vmem:[#allocation2 + $0x1a8] sm:$0xff] %vm695, 0.0
      %750 = vst.msk [vmem:[#allocation2 + $0x1b0] sm:$0xff] %vm695, 0.0
      %751 = vst.msk [vmem:[#allocation2 + $0x1b8] sm:$0xff] %vm695, 0.0
      %752 = vst.msk [vmem:[#allocation2 + $0x1c0] sm:$0xff] %vm695, 0.0
      %753 = vst.msk [vmem:[#allocation2 + $0x1c8] sm:$0xff] %vm695, 0.0
      %754 = vst.msk [vmem:[#allocation2 + $0x1d0] sm:$0xff] %vm695, 0.0
      %755 = vst.msk [vmem:[#allocation2 + $0x1d8] sm:$0xff] %vm695, 0.0
      %756 = vst.msk [vmem:[#allocation2 + $0x1e0] sm:$0xff] %vm695, 0.0
      %757 = vst.msk [vmem:[#allocation2 + $0x1e8] sm:$0xff] %vm695, 0.0
      %758 = vst.msk [vmem:[#allocation2 + $0x1f0] sm:$0xff] %vm695, 0.0
      %759 = vst.msk [vmem:[#allocation2 + $0x1f8] sm:$0xff] %vm695, 0.0
      %760 = vst.msk [vmem:[#allocation2 + $0x200] sm:$0xff] %vm695, 0.0
      %761 = vst.msk [vmem:[#allocation2 + $0x208] sm:$0xff] %vm695, 0.0
      %762 = vst.msk [vmem:[#allocation2 + $0x210] sm:$0xff] %vm695, 0.0
      %763 = vst.msk [vmem:[#allocation2 + $0x218] sm:$0xff] %vm695, 0.0
      %764 = vst.msk [vmem:[#allocation2 + $0x220] sm:$0xff] %vm695, 0.0
      %765 = vst.msk [vmem:[#allocation2 + $0x228] sm:$0xff] %vm695, 0.0
      %766 = vst.msk [vmem:[#allocation2 + $0x230] sm:$0xff] %vm695, 0.0
      %767 = vst.msk [vmem:[#allocation2 + $0x238] sm:$0xff] %vm695, 0.0
      %768 = vst.msk [vmem:[#allocation2 + $0x240] sm:$0xff] %vm695, 0.0
      %769 = vst.msk [vmem:[#allocation2 + $0x248] sm:$0xff] %vm695, 0.0
      %770 = vst.msk [vmem:[#allocation2 + $0x250] sm:$0xff] %vm695, 0.0
      %771 = vst.msk [vmem:[#allocation2 + $0x258] sm:$0xff] %vm695, 0.0
      %772 = vst.msk [vmem:[#allocation2 + $0x260] sm:$0xff] %vm695, 0.0
      %773 = vst.msk [vmem:[#allocation2 + $0x268] sm:$0xff] %vm695, 0.0
      %774 = vst.msk [vmem:[#allocation2 + $0x270] sm:$0xff] %vm695, 0.0
      %775 = vst.msk [vmem:[#allocation2 + $0x278] sm:$0xff] %vm695, 0.0
      %776 = vst.msk [vmem:[#allocation2 + $0x280] sm:$0xff] %vm695, 0.0
      %777 = vst.msk [vmem:[#allocation2 + $0x288] sm:$0xff] %vm695, 0.0
      %778 = vst.msk [vmem:[#allocation2 + $0x290] sm:$0xff] %vm695, 0.0
      %779 = vst.msk [vmem:[#allocation2 + $0x298] sm:$0xff] %vm695, 0.0
      %780 = vst.msk [vmem:[#allocation2 + $0x2a0] sm:$0xff] %vm695, 0.0
      %781 = vst.msk [vmem:[#allocation2 + $0x2a8] sm:$0xff] %vm695, 0.0
      %782 = vst.msk [vmem:[#allocation2 + $0x2b0] sm:$0xff] %vm695, 0.0
      %783 = vst.msk [vmem:[#allocation2 + $0x2b8] sm:$0xff] %vm695, 0.0
      %784 = vst.msk [vmem:[#allocation2 + $0x2c0] sm:$0xff] %vm695, 0.0
      %785 = vst.msk [vmem:[#allocation2 + $0x2c8] sm:$0xff] %vm695, 0.0
      %786 = vst.msk [vmem:[#allocation2 + $0x2d0] sm:$0xff] %vm695, 0.0
      %787 = vst.msk [vmem:[#allocation2 + $0x2d8] sm:$0xff] %vm695, 0.0
      %788 = vst.msk [vmem:[#allocation2 + $0x2e0] sm:$0xff] %vm695, 0.0
      %789 = vst.msk [vmem:[#allocation2 + $0x2e8] sm:$0xff] %vm695, 0.0
      %790 = vst.msk [vmem:[#allocation2 + $0x2f0] sm:$0xff] %vm695, 0.0
      %791 = vst.msk [vmem:[#allocation2 + $0x2f8] sm:$0xff] %vm695, 0.0
      %792 = vst.msk [vmem:[#allocation2 + $0x300] sm:$0xff] %vm695, 0.0
      %793 = vst.msk [vmem:[#allocation2 + $0x308] sm:$0xff] %vm695, 0.0
      %794 = vst.msk [vmem:[#allocation2 + $0x310] sm:$0xff] %vm695, 0.0
      %795 = vst.msk [vmem:[#allocation2 + $0x318] sm:$0xff] %vm695, 0.0
      %796 = vst.msk [vmem:[#allocation2 + $0x320] sm:$0xff] %vm695, 0.0
      %797 = vst.msk [vmem:[#allocation2 + $0x328] sm:$0xff] %vm695, 0.0
      %798 = vst.msk [vmem:[#allocation2 + $0x330] sm:$0xff] %vm695, 0.0
      %799 = vst.msk [vmem:[#allocation2 + $0x338] sm:$0xff] %vm695, 0.0
      %800 = vst.msk [vmem:[#allocation2 + $0x340] sm:$0xff] %vm695, 0.0
      %801 = vst.msk [vmem:[#allocation2 + $0x348] sm:$0xff] %vm695, 0.0
      %802 = vst.msk [vmem:[#allocation2 + $0x350] sm:$0xff] %vm695, 0.0
      %803 = vst.msk [vmem:[#allocation2 + $0x358] sm:$0xff] %vm695, 0.0
      %804 = vst.msk [vmem:[#allocation2 + $0x360] sm:$0xff] %vm695, 0.0
      %805 = vst.msk [vmem:[#allocation2 + $0x368] sm:$0xff] %vm695, 0.0
      %806 = vst.msk [vmem:[#allocation2 + $0x370] sm:$0xff] %vm695, 0.0
      %807 = vst.msk [vmem:[#allocation2 + $0x378] sm:$0xff] %vm695, 0.0
      %808 = vst.msk [vmem:[#allocation2 + $0x380] sm:$0xff] %vm695, 0.0
      %809 = vst.msk [vmem:[#allocation2 + $0x388] sm:$0xff] %vm695, 0.0
      %810 = vst.msk [vmem:[#allocation2 + $0x390] sm:$0xff] %vm695, 0.0
      %811 = vst.msk [vmem:[#allocation2 + $0x398] sm:$0xff] %vm695, 0.0
      %812 = vst.msk [vmem:[#allocation2 + $0x3a0] sm:$0xff] %vm695, 0.0
      %813 = vst.msk [vmem:[#allocation2 + $0x3a8] sm:$0xff] %vm695, 0.0
      %814 = vst.msk [vmem:[#allocation2 + $0x3b0] sm:$0xff] %vm695, 0.0
      %815 = vst.msk [vmem:[#allocation2 + $0x3b8] sm:$0xff] %vm695, 0.0
      %816 = vst.msk [vmem:[#allocation2 + $0x3c0] sm:$0xff] %vm695, 0.0
      %817 = vst.msk [vmem:[#allocation2 + $0x3c8] sm:$0xff] %vm695, 0.0
      %818 = vst.msk [vmem:[#allocation2 + $0x3d0] sm:$0xff] %vm695, 0.0
      %819 = vst.msk [vmem:[#allocation2 + $0x3d8] sm:$0xff] %vm695, 0.0
      %820 = vst.msk [vmem:[#allocation2 + $0x3e0] sm:$0xff] %vm695, 0.0
      %821 = vst.msk [vmem:[#allocation2 + $0x3e8] sm:$0xff] %vm695, 0.0
      %822 = vst.msk [vmem:[#allocation2 + $0x3f0] sm:$0xff] %vm695, 0.0
      %823 = vst.msk [vmem:[#allocation2 + $0x3f8] sm:$0xff] %vm695, 0.0
      %824 = vst.msk [vmem:[#allocation2 + $0x400] sm:$0xff] %vm695, 0.0
      %825 = vst.msk [vmem:[#allocation2 + $0x408] sm:$0xff] %vm695, 0.0
      %826 = vst.msk [vmem:[#allocation2 + $0x410] sm:$0xff] %vm695, 0.0
      %827 = vst.msk [vmem:[#allocation2 + $0x418] sm:$0xff] %vm695, 0.0
      %828 = vst.msk [vmem:[#allocation2 + $0x420] sm:$0xff] %vm695, 0.0
      %829 = vst.msk [vmem:[#allocation2 + $0x428] sm:$0xff] %vm695, 0.0
      %830 = vst.msk [vmem:[#allocation2 + $0x430] sm:$0xff] %vm695, 0.0
      %831 = vst.msk [vmem:[#allocation2 + $0x438] sm:$0xff] %vm695, 0.0
      %832 = vst.msk [vmem:[#allocation2 + $0x440] sm:$0xff] %vm695, 0.0
      %833 = vst.msk [vmem:[#allocation2 + $0x448] sm:$0xff] %vm695, 0.0
      %834 = vst.msk [vmem:[#allocation2 + $0x450] sm:$0xff] %vm695, 0.0
      %835 = vst.msk [vmem:[#allocation2 + $0x458] sm:$0xff] %vm695, 0.0
      %836 = vst.msk [vmem:[#allocation2 + $0x460] sm:$0xff] %vm695, 0.0
      %837 = vst.msk [vmem:[#allocation2 + $0x468] sm:$0xff] %vm695, 0.0
      %838 = vst.msk [vmem:[#allocation2 + $0x470] sm:$0xff] %vm695, 0.0
      %839 = vst.msk [vmem:[#allocation2 + $0x478] sm:$0xff] %vm695, 0.0
      %840 = vst.msk [vmem:[#allocation2 + $0x480] sm:$0xff] %vm695, 0.0
      %841 = vst.msk [vmem:[#allocation2 + $0x488] sm:$0xff] %vm695, 0.0
      %842 = vst.msk [vmem:[#allocation2 + $0x490] sm:$0xff] %vm695, 0.0
      %843 = vst.msk [vmem:[#allocation2 + $0x498] sm:$0xff] %vm695, 0.0
      %844 = vst.msk [vmem:[#allocation2 + $0x4a0] sm:$0xff] %vm695, 0.0
      %845 = vst.msk [vmem:[#allocation2 + $0x4a8] sm:$0xff] %vm695, 0.0
      %846 = vst.msk [vmem:[#allocation2 + $0x4b0] sm:$0xff] %vm695, 0.0
      %847 = vst.msk [vmem:[#allocation2 + $0x4b8] sm:$0xff] %vm695, 0.0
      %848 = vst.msk [vmem:[#allocation2 + $0x4c0] sm:$0xff] %vm695, 0.0
      %849 = vst.msk [vmem:[#allocation2 + $0x4c8] sm:$0xff] %vm695, 0.0
      %850 = vst.msk [vmem:[#allocation2 + $0x4d0] sm:$0xff] %vm695, 0.0
      %851 = vst.msk [vmem:[#allocation2 + $0x4d8] sm:$0xff] %vm695, 0.0
      %852 = vst.msk [vmem:[#allocation2 + $0x4e0] sm:$0xff] %vm695, 0.0
      %853 = vst.msk [vmem:[#allocation2 + $0x4e8] sm:$0xff] %vm695, 0.0
      %854 = vst.msk [vmem:[#allocation2 + $0x4f0] sm:$0xff] %vm695, 0.0
      %855 = vst.msk [vmem:[#allocation2 + $0x4f8] sm:$0xff] %vm695, 0.0
      %856 = vst.msk [vmem:[#allocation2 + $0x500] sm:$0xff] %vm695, 0.0
      %857 = vst.msk [vmem:[#allocation2 + $0x508] sm:$0xff] %vm695, 0.0
      %858 = vst.msk [vmem:[#allocation2 + $0x510] sm:$0xff] %vm695, 0.0
      %859 = vst.msk [vmem:[#allocation2 + $0x518] sm:$0xff] %vm695, 0.0
      %860 = vst.msk [vmem:[#allocation2 + $0x520] sm:$0xff] %vm695, 0.0
      %861 = vst.msk [vmem:[#allocation2 + $0x528] sm:$0xff] %vm695, 0.0
      %862 = vst.msk [vmem:[#allocation2 + $0x530] sm:$0xff] %vm695, 0.0
      %863 = vst.msk [vmem:[#allocation2 + $0x538] sm:$0xff] %vm695, 0.0
      %864 = vst.msk [vmem:[#allocation2 + $0x540] sm:$0xff] %vm695, 0.0
      %865 = vst.msk [vmem:[#allocation2 + $0x548] sm:$0xff] %vm695, 0.0
      %866 = vst.msk [vmem:[#allocation2 + $0x550] sm:$0xff] %vm695, 0.0
      %867 = vst.msk [vmem:[#allocation2 + $0x558] sm:$0xff] %vm695, 0.0
      %868 = vst.msk [vmem:[#allocation2 + $0x560] sm:$0xff] %vm695, 0.0
      %869 = vst.msk [vmem:[#allocation2 + $0x568] sm:$0xff] %vm695, 0.0
      %870 = vst.msk [vmem:[#allocation2 + $0x570] sm:$0xff] %vm695, 0.0
      %871 = vst.msk [vmem:[#allocation2 + $0x578] sm:$0xff] %vm695, 0.0
      %872 = vst.msk [vmem:[#allocation2 + $0x580] sm:$0xff] %vm695, 0.0
      %873 = vst.msk [vmem:[#allocation2 + $0x588] sm:$0xff] %vm695, 0.0
      %874 = vst.msk [vmem:[#allocation2 + $0x590] sm:$0xff] %vm695, 0.0
      %875 = vst.msk [vmem:[#allocation2 + $0x598] sm:$0xff] %vm695, 0.0
      %s876 = scalar_lea.vmem [#allocation2], 264
      %877 = vst.msk [vmem:[%s876 + $0x8] sm:$0xff] %vm695, %v537
      %878 = vst.msk [vmem:[%s876 + $0x20] sm:$0xff] %vm695, %v542
      %879 = vst.msk [vmem:[%s876 + $0x38] sm:$0xff] %vm695, %v547
      %880 = vst.msk [vmem:[%s876 + $0x50] sm:$0xff] %vm695, %v552
      %881 = vst.msk [vmem:[%s876 + $0x68] sm:$0xff] %vm695, %v557
      %882 = vst.msk [vmem:[%s876 + $0x80] sm:$0xff] %vm695, %v562
      %883 = vst.msk [vmem:[%s876 + $0x98] sm:$0xff] %vm695, %v567
      %884 = vst.msk [vmem:[%s876 + $0xb0] sm:$0xff] %vm695, %v572
      %885 = vst.msk [vmem:[%s876 + $0xf8] sm:$0xff] %vm695, %v577
      %886 = vst.msk [vmem:[%s876 + $0x110] sm:$0xff] %vm695, %v582
      %887 = vst.msk [vmem:[%s876 + $0x128] sm:$0xff] %vm695, %v587
      %888 = vst.msk [vmem:[%s876 + $0x140] sm:$0xff] %vm695, %v592
      %889 = vst.msk [vmem:[%s876 + $0x158] sm:$0xff] %vm695, %v597
      %890 = vst.msk [vmem:[%s876 + $0x170] sm:$0xff] %vm695, %v602
      %891 = vst.msk [vmem:[%s876 + $0x188] sm:$0xff] %vm695, %v607
      %892 = vst.msk [vmem:[%s876 + $0x1a0] sm:$0xff] %vm695, %v612
      %893 = vst.msk [vmem:[%s876 + $0x1e8] sm:$0xff] %vm695, %v617
      %894 = vst.msk [vmem:[%s876 + $0x200] sm:$0xff] %vm695, %v622
      %895 = vst.msk [vmem:[%s876 + $0x218] sm:$0xff] %vm695, %v627
      %896 = vst.msk [vmem:[%s876 + $0x230] sm:$0xff] %vm695, %v632
      %897 = vst.msk [vmem:[%s876 + $0x248] sm:$0xff] %vm695, %v637
      %898 = vst.msk [vmem:[%s876 + $0x260] sm:$0xff] %vm695, %v642
      %899 = vst.msk [vmem:[%s876 + $0x278] sm:$0xff] %vm695, %v647
      %900 = vst.msk [vmem:[%s876 + $0x290] sm:$0xff] %vm695, %v652
      %901 = vst.msk [vmem:[%s876 + $0x2d8] sm:$0xff] %vm695, %v657
      %902 = vst.msk [vmem:[%s876 + $0x2f0] sm:$0xff] %vm695, %v662
      %903 = vst.msk [vmem:[%s876 + $0x308] sm:$0xff] %vm695, %v667
      %904 = vst.msk [vmem:[%s876 + $0x320] sm:$0xff] %vm695, %v672
      %905 = vst.msk [vmem:[%s876 + $0x338] sm:$0xff] %vm695, %v677
      %906 = vst.msk [vmem:[%s876 + $0x350] sm:$0xff] %vm695, %v682
      %907 = vst.msk [vmem:[%s876 + $0x368] sm:$0xff] %vm695, %v687
      %908 = vst.msk [vmem:[%s876 + $0x380] sm:$0xff] %vm695, %v692
      %v909 = vld [vmem:[%s2] sm:$0x1]
      %v910 = vld [vmem:[#allocation2 + $0x7] sm:$0xff]
      %v911 = vld [vmem:[#allocation2 + $0x1f] sm:$0xff]
      %v912 = vld [vmem:[#allocation2 + $0x37] sm:$0xff]
      %v913 = vld [vmem:[#allocation2 + $0x4f] sm:$0xff]
      %v914 = vld [vmem:[#allocation2 + $0x67] sm:$0xff]
      %v915 = vld [vmem:[#allocation2 + $0x7f] sm:$0xff]
      %v916 = vld [vmem:[#allocation2 + $0x97] sm:$0xff]
      %v917 = vld [vmem:[#allocation2 + $0xaf] sm:$0xff]
      %v918 = vld [vmem:[#allocation2 + $0xf7] sm:$0xff]
      %v919 = vld [vmem:[#allocation2 + $0x10f] sm:$0xff]
      %v920 = vld [vmem:[#allocation2 + $0x127] sm:$0xff]
      %v921 = vld [vmem:[#allocation2 + $0x13f] sm:$0xff]
      %v922 = vld [vmem:[#allocation2 + $0x157] sm:$0xff]
      %v923 = vld [vmem:[#allocation2 + $0x16f] sm:$0xff]
      %v924 = vld [vmem:[#allocation2 + $0x187] sm:$0xff]
      %v925 = vld [vmem:[#allocation2 + $0x19f] sm:$0xff]
      %v926 = vld [vmem:[#allocation2 + $0x1e7] sm:$0xff]
      %v927 = vld [vmem:[#allocation2 + $0x1ff] sm:$0xff]
      %v928 = vld [vmem:[#allocation2 + $0x217] sm:$0xff]
      %v929 = vld [vmem:[#allocation2 + $0x22f] sm:$0xff]
      %v930 = vld [vmem:[#allocation2 + $0x247] sm:$0xff]
      %v931 = vld [vmem:[#allocation2 + $0x25f] sm:$0xff]
      %v932 = vld [vmem:[#allocation2 + $0x277] sm:$0xff]
      %v933 = vld [vmem:[#allocation2 + $0x28f] sm:$0xff]
      %v934 = vld [vmem:[#allocation2 + $0x2d7] sm:$0xff]
      %v935 = vld [vmem:[#allocation2 + $0x2ef] sm:$0xff]
      %v936 = vld [vmem:[#allocation2 + $0x307] sm:$0xff]
      %v937 = vld [vmem:[#allocation2 + $0x31f] sm:$0xff]
      %v938 = vld [vmem:[#allocation2 + $0x337] sm:$0xff]
      %v939 = vld [vmem:[#allocation2 + $0x34f] sm:$0xff]
      %v940 = vld [vmem:[#allocation2 + $0x367] sm:$0xff]
      %v941 = vld [vmem:[#allocation2 + $0x37f] sm:$0xff]
      %v942 = vlaneseq
      %v943 = vshrl.u32 %v942, 7
      %v944 = vsub.s32 0, %v943
      %v945 = vrot.slane %v909, %v944
      %v946 = vmul.f32 %v910, %v945
      %v947 = vmul.f32 %v911, %v945
      %v948 = vmul.f32 %v912, %v945
      %v949 = vmul.f32 %v913, %v945
      %v950 = vmul.f32 %v914, %v945
      %v951 = vmul.f32 %v915, %v945
      %v952 = vmul.f32 %v916, %v945
      %v953 = vmul.f32 %v917, %v945
      %v954 = vmul.f32 %v918, %v945
      %v955 = vmul.f32 %v919, %v945
      %v956 = vmul.f32 %v920, %v945
      %v957 = vmul.f32 %v921, %v945
      %v958 = vmul.f32 %v922, %v945
      %v959 = vmul.f32 %v923, %v945
      %v960 = vmul.f32 %v924, %v945
      %v961 = vmul.f32 %v925, %v945
      %v962 = vmul.f32 %v926, %v945
      %v963 = vmul.f32 %v927, %v945
      %v964 = vmul.f32 %v928, %v945
      %v965 = vmul.f32 %v929, %v945
      %v966 = vmul.f32 %v930, %v945
      %v967 = vmul.f32 %v931, %v945
      %v968 = vmul.f32 %v932, %v945
      %v969 = vmul.f32 %v933, %v945
      %v970 = vmul.f32 %v934, %v945
      %v971 = vmul.f32 %v935, %v945
      %v972 = vmul.f32 %v936, %v945
      %v973 = vmul.f32 %v937, %v945
      %v974 = vmul.f32 %v938, %v945
      %v975 = vmul.f32 %v939, %v945
      %v976 = vmul.f32 %v940, %v945
      %v977 = vmul.f32 %v941, %v945
      %v978 = vadd.f32 %v946, 0.0
      %v979 = vadd.f32 %v947, 0.0
      %v980 = vadd.f32 %v948, 0.0
      %v981 = vadd.f32 %v949, 0.0
      %v982 = vadd.f32 %v950, 0.0
      %v983 = vadd.f32 %v951, 0.0
      %v984 = vadd.f32 %v952, 0.0
      %v985 = vadd.f32 %v953, 0.0
      %v986 = vadd.f32 %v954, 0.0
      %v987 = vadd.f32 %v955, 0.0
      %v988 = vadd.f32 %v956, 0.0
      %v989 = vadd.f32 %v957, 0.0
      %v990 = vadd.f32 %v958, 0.0
      %v991 = vadd.f32 %v959, 0.0
      %v992 = vadd.f32 %v960, 0.0
      %v993 = vadd.f32 %v961, 0.0
      %v994 = vadd.f32 %v962, 0.0
      %v995 = vadd.f32 %v963, 0.0
      %v996 = vadd.f32 %v964, 0.0
      %v997 = vadd.f32 %v965, 0.0
      %v998 = vadd.f32 %v966, 0.0
      %v999 = vadd.f32 %v967, 0.0
      %v1000 = vadd.f32 %v968, 0.0
      %v1001 = vadd.f32 %v969, 0.0
      %v1002 = vadd.f32 %v970, 0.0
      %v1003 = vadd.f32 %v971, 0.0
      %v1004 = vadd.f32 %v972, 0.0
      %v1005 = vadd.f32 %v973, 0.0
      %v1006 = vadd.f32 %v974, 0.0
      %v1007 = vadd.f32 %v975, 0.0
      %v1008 = vadd.f32 %v976, 0.0
      %v1009 = vadd.f32 %v977, 0.0
      %v1010 = vld [vmem:[%s2 + $0x1] sm:$0x1]
      %v1011 = vld [vmem:[#allocation2 + $0x8] sm:$0xff]
      %v1012 = vld [vmem:[#allocation2 + $0x20] sm:$0xff]
      %v1013 = vld [vmem:[#allocation2 + $0x38] sm:$0xff]
      %v1014 = vld [vmem:[#allocation2 + $0x50] sm:$0xff]
      %v1015 = vld [vmem:[#allocation2 + $0x68] sm:$0xff]
      %v1016 = vld [vmem:[#allocation2 + $0x80] sm:$0xff]
      %v1017 = vld [vmem:[#allocation2 + $0x98] sm:$0xff]
      %v1018 = vld [vmem:[#allocation2 + $0xb0] sm:$0xff]
      %v1019 = vld [vmem:[#allocation2 + $0xf8] sm:$0xff]
      %v1020 = vld [vmem:[#allocation2 + $0x110] sm:$0xff]
      %v1021 = vld [vmem:[#allocation2 + $0x128] sm:$0xff]
      %v1022 = vld [vmem:[#allocation2 + $0x140] sm:$0xff]
      %v1023 = vld [vmem:[#allocation2 + $0x158] sm:$0xff]
      %v1024 = vld [vmem:[#allocation2 + $0x170] sm:$0xff]
      %v1025 = vld [vmem:[#allocation2 + $0x188] sm:$0xff]
      %v1026 = vld [vmem:[#allocation2 + $0x1a0] sm:$0xff]
      %v1027 = vld [vmem:[#allocation2 + $0x1e8] sm:$0xff]
      %v1028 = vld [vmem:[#allocation2 + $0x200] sm:$0xff]
      %v1029 = vld [vmem:[#allocation2 + $0x218] sm:$0xff]
      %v1030 = vld [vmem:[#allocation2 + $0x230] sm:$0xff]
      %v1031 = vld [vmem:[#allocation2 + $0x248] sm:$0xff]
      %v1032 = vld [vmem:[#allocation2 + $0x260] sm:$0xff]
      %v1033 = vld [vmem:[#allocation2 + $0x278] sm:$0xff]
      %v1034 = vld [vmem:[#allocation2 + $0x290] sm:$0xff]
      %v1035 = vld [vmem:[#allocation2 + $0x2d8] sm:$0xff]
      %v1036 = vld [vmem:[#allocation2 + $0x2f0] sm:$0xff]
      %v1037 = vld [vmem:[#allocation2 + $0x308] sm:$0xff]
      %v1038 = vld [vmem:[#allocation2 + $0x320] sm:$0xff]
      %v1039 = vld [vmem:[#allocation2 + $0x338] sm:$0xff]
      %v1040 = vld [vmem:[#allocation2 + $0x350] sm:$0xff]
      %v1041 = vld [vmem:[#allocation2 + $0x368] sm:$0xff]
      %v1042 = vld [vmem:[#allocation2 + $0x380] sm:$0xff]
      %v1043 = vlaneseq
      %v1044 = vshrl.u32 %v1043, 7
      %v1045 = vsub.s32 0, %v1044
      %v1046 = vrot.slane %v1010, %v1045
      %v1047 = vmul.f32 %v1011, %v1046
      %v1048 = vmul.f32 %v1012, %v1046
      %v1049 = vmul.f32 %v1013, %v1046
      %v1050 = vmul.f32 %v1014, %v1046
      %v1051 = vmul.f32 %v1015, %v1046
      %v1052 = vmul.f32 %v1016, %v1046
      %v1053 = vmul.f32 %v1017, %v1046
      %v1054 = vmul.f32 %v1018, %v1046
      %v1055 = vmul.f32 %v1019, %v1046
      %v1056 = vmul.f32 %v1020, %v1046
      %v1057 = vmul.f32 %v1021, %v1046
      %v1058 = vmul.f32 %v1022, %v1046
      %v1059 = vmul.f32 %v1023, %v1046
      %v1060 = vmul.f32 %v1024, %v1046
      %v1061 = vmul.f32 %v1025, %v1046
      %v1062 = vmul.f32 %v1026, %v1046
      %v1063 = vmul.f32 %v1027, %v1046
      %v1064 = vmul.f32 %v1028, %v1046
      %v1065 = vmul.f32 %v1029, %v1046
      %v1066 = vmul.f32 %v1030, %v1046
      %v1067 = vmul.f32 %v1031, %v1046
      %v1068 = vmul.f32 %v1032, %v1046
      %v1069 = vmul.f32 %v1033, %v1046
      %v1070 = vmul.f32 %v1034, %v1046
      %v1071 = vmul.f32 %v1035, %v1046
      %v1072 = vmul.f32 %v1036, %v1046
      %v1073 = vmul.f32 %v1037, %v1046
      %v1074 = vmul.f32 %v1038, %v1046
      %v1075 = vmul.f32 %v1039, %v1046
      %v1076 = vmul.f32 %v1040, %v1046
      %v1077 = vmul.f32 %v1041, %v1046
      %v1078 = vmul.f32 %v1042, %v1046
      %v1079 = vadd.f32 %v978, %v1047
      %v1080 = vadd.f32 %v979, %v1048
      %v1081 = vadd.f32 %v980, %v1049
      %v1082 = vadd.f32 %v981, %v1050
      %v1083 = vadd.f32 %v982, %v1051
      %v1084 = vadd.f32 %v983, %v1052
      %v1085 = vadd.f32 %v984, %v1053
      %v1086 = vadd.f32 %v985, %v1054
      %v1087 = vadd.f32 %v986, %v1055
      %v1088 = vadd.f32 %v987, %v1056
      %v1089 = vadd.f32 %v988, %v1057
      %v1090 = vadd.f32 %v989, %v1058
      %v1091 = vadd.f32 %v990, %v1059
      %v1092 = vadd.f32 %v991, %v1060
      %v1093 = vadd.f32 %v992, %v1061
      %v1094 = vadd.f32 %v993, %v1062
      %v1095 = vadd.f32 %v994, %v1063
      %v1096 = vadd.f32 %v995, %v1064
      %v1097 = vadd.f32 %v996, %v1065
      %v1098 = vadd.f32 %v997, %v1066
      %v1099 = vadd.f32 %v998, %v1067
      %v1100 = vadd.f32 %v999, %v1068
      %v1101 = vadd.f32 %v1000, %v1069
      %v1102 = vadd.f32 %v1001, %v1070
      %v1103 = vadd.f32 %v1002, %v1071
      %v1104 = vadd.f32 %v1003, %v1072
      %v1105 = vadd.f32 %v1004, %v1073
      %v1106 = vadd.f32 %v1005, %v1074
      %v1107 = vadd.f32 %v1006, %v1075
      %v1108 = vadd.f32 %v1007, %v1076
      %v1109 = vadd.f32 %v1008, %v1077
      %v1110 = vadd.f32 %v1009, %v1078
      %v1111 = vld [vmem:[%s2 + $0x2] sm:$0x1]
      %v1112 = vld [vmem:[#allocation2 + $0x9] sm:$0xff]
      %v1113 = vld [vmem:[#allocation2 + $0x21] sm:$0xff]
      %v1114 = vld [vmem:[#allocation2 + $0x39] sm:$0xff]
      %v1115 = vld [vmem:[#allocation2 + $0x51] sm:$0xff]
      %v1116 = vld [vmem:[#allocation2 + $0x69] sm:$0xff]
      %v1117 = vld [vmem:[#allocation2 + $0x81] sm:$0xff]
      %v1118 = vld [vmem:[#allocation2 + $0x99] sm:$0xff]
      %v1119 = vld [vmem:[#allocation2 + $0xb1] sm:$0xff]
      %v1120 = vld [vmem:[#allocation2 + $0xf9] sm:$0xff]
      %v1121 = vld [vmem:[#allocation2 + $0x111] sm:$0xff]
      %v1122 = vld [vmem:[#allocation2 + $0x129] sm:$0xff]
      %v1123 = vld [vmem:[#allocation2 + $0x141] sm:$0xff]
      %v1124 = vld [vmem:[#allocation2 + $0x159] sm:$0xff]
      %v1125 = vld [vmem:[#allocation2 + $0x171] sm:$0xff]
      %v1126 = vld [vmem:[#allocation2 + $0x189] sm:$0xff]
      %v1127 = vld [vmem:[#allocation2 + $0x1a1] sm:$0xff]
      %v1128 = vld [vmem:[#allocation2 + $0x1e9] sm:$0xff]
      %v1129 = vld [vmem:[#allocation2 + $0x201] sm:$0xff]
      %v1130 = vld [vmem:[#allocation2 + $0x219] sm:$0xff]
      %v1131 = vld [vmem:[#allocation2 + $0x231] sm:$0xff]
      %v1132 = vld [vmem:[#allocation2 + $0x249] sm:$0xff]
      %v1133 = vld [vmem:[#allocation2 + $0x261] sm:$0xff]
      %v1134 = vld [vmem:[#allocation2 + $0x279] sm:$0xff]
      %v1135 = vld [vmem:[#allocation2 + $0x291] sm:$0xff]
      %v1136 = vld [vmem:[#allocation2 + $0x2d9] sm:$0xff]
      %v1137 = vld [vmem:[#allocation2 + $0x2f1] sm:$0xff]
      %v1138 = vld [vmem:[#allocation2 + $0x309] sm:$0xff]
      %v1139 = vld [vmem:[#allocation2 + $0x321] sm:$0xff]
      %v1140 = vld [vmem:[#allocation2 + $0x339] sm:$0xff]
      %v1141 = vld [vmem:[#allocation2 + $0x351] sm:$0xff]
      %v1142 = vld [vmem:[#allocation2 + $0x369] sm:$0xff]
      %v1143 = vld [vmem:[#allocation2 + $0x381] sm:$0xff]
      %v1144 = vlaneseq
      %v1145 = vshrl.u32 %v1144, 7
      %v1146 = vsub.s32 0, %v1145
      %v1147 = vrot.slane %v1111, %v1146
      %v1148 = vmul.f32 %v1112, %v1147
      %v1149 = vmul.f32 %v1113, %v1147
      %v1150 = vmul.f32 %v1114, %v1147
      %v1151 = vmul.f32 %v1115, %v1147
      %v1152 = vmul.f32 %v1116, %v1147
      %v1153 = vmul.f32 %v1117, %v1147
      %v1154 = vmul.f32 %v1118, %v1147
      %v1155 = vmul.f32 %v1119, %v1147
      %v1156 = vmul.f32 %v1120, %v1147
      %v1157 = vmul.f32 %v1121, %v1147
      %v1158 = vmul.f32 %v1122, %v1147
      %v1159 = vmul.f32 %v1123, %v1147
      %v1160 = vmul.f32 %v1124, %v1147
      %v1161 = vmul.f32 %v1125, %v1147
      %v1162 = vmul.f32 %v1126, %v1147
      %v1163 = vmul.f32 %v1127, %v1147
      %v1164 = vmul.f32 %v1128, %v1147
      %v1165 = vmul.f32 %v1129, %v1147
      %v1166 = vmul.f32 %v1130, %v1147
      %v1167 = vmul.f32 %v1131, %v1147
      %v1168 = vmul.f32 %v1132, %v1147
      %v1169 = vmul.f32 %v1133, %v1147
      %v1170 = vmul.f32 %v1134, %v1147
      %v1171 = vmul.f32 %v1135, %v1147
      %v1172 = vmul.f32 %v1136, %v1147
      %v1173 = vmul.f32 %v1137, %v1147
      %v1174 = vmul.f32 %v1138, %v1147
      %v1175 = vmul.f32 %v1139, %v1147
      %v1176 = vmul.f32 %v1140, %v1147
      %v1177 = vmul.f32 %v1141, %v1147
      %v1178 = vmul.f32 %v1142, %v1147
      %v1179 = vmul.f32 %v1143, %v1147
      %v1180 = vadd.f32 %v1079, %v1148
      %v1181 = vadd.f32 %v1080, %v1149
      %v1182 = vadd.f32 %v1081, %v1150
      %v1183 = vadd.f32 %v1082, %v1151
      %v1184 = vadd.f32 %v1083, %v1152
      %v1185 = vadd.f32 %v1084, %v1153
      %v1186 = vadd.f32 %v1085, %v1154
      %v1187 = vadd.f32 %v1086, %v1155
      %v1188 = vadd.f32 %v1087, %v1156
      %v1189 = vadd.f32 %v1088, %v1157
      %v1190 = vadd.f32 %v1089, %v1158
      %v1191 = vadd.f32 %v1090, %v1159
      %v1192 = vadd.f32 %v1091, %v1160
      %v1193 = vadd.f32 %v1092, %v1161
      %v1194 = vadd.f32 %v1093, %v1162
      %v1195 = vadd.f32 %v1094, %v1163
      %v1196 = vadd.f32 %v1095, %v1164
      %v1197 = vadd.f32 %v1096, %v1165
      %v1198 = vadd.f32 %v1097, %v1166
      %v1199 = vadd.f32 %v1098, %v1167
      %v1200 = vadd.f32 %v1099, %v1168
      %v1201 = vadd.f32 %v1100, %v1169
      %v1202 = vadd.f32 %v1101, %v1170
      %v1203 = vadd.f32 %v1102, %v1171
      %v1204 = vadd.f32 %v1103, %v1172
      %v1205 = vadd.f32 %v1104, %v1173
      %v1206 = vadd.f32 %v1105, %v1174
      %v1207 = vadd.f32 %v1106, %v1175
      %v1208 = vadd.f32 %v1107, %v1176
      %v1209 = vadd.f32 %v1108, %v1177
      %v1210 = vadd.f32 %v1109, %v1178
      %v1211 = vadd.f32 %v1110, %v1179
      %s1212 = scalar_lea.vmem %s2, 4
      %v1213 = vld [vmem:[%s1212] sm:$0x1]
      %s1214 = scalar_lea.vmem [#allocation2], 24
      %v1215 = vld [vmem:[%s1214 + $0x7] sm:$0xff]
      %v1216 = vld [vmem:[%s1214 + $0x1f] sm:$0xff]
      %v1217 = vld [vmem:[%s1214 + $0x37] sm:$0xff]
      %v1218 = vld [vmem:[%s1214 + $0x4f] sm:$0xff]
      %v1219 = vld [vmem:[%s1214 + $0x67] sm:$0xff]
      %v1220 = vld [vmem:[%s1214 + $0x7f] sm:$0xff]
      %v1221 = vld [vmem:[%s1214 + $0x97] sm:$0xff]
      %v1222 = vld [vmem:[%s1214 + $0xaf] sm:$0xff]
      %v1223 = vld [vmem:[%s1214 + $0xf7] sm:$0xff]
      %v1224 = vld [vmem:[%s1214 + $0x10f] sm:$0xff]
      %v1225 = vld [vmem:[%s1214 + $0x127] sm:$0xff]
      %v1226 = vld [vmem:[%s1214 + $0x13f] sm:$0xff]
      %v1227 = vld [vmem:[%s1214 + $0x157] sm:$0xff]
      %v1228 = vld [vmem:[%s1214 + $0x16f] sm:$0xff]
      %v1229 = vld [vmem:[%s1214 + $0x187] sm:$0xff]
      %v1230 = vld [vmem:[%s1214 + $0x19f] sm:$0xff]
      %v1231 = vld [vmem:[%s1214 + $0x1e7] sm:$0xff]
      %v1232 = vld [vmem:[%s1214 + $0x1ff] sm:$0xff]
      %v1233 = vld [vmem:[%s1214 + $0x217] sm:$0xff]
      %v1234 = vld [vmem:[%s1214 + $0x22f] sm:$0xff]
      %v1235 = vld [vmem:[%s1214 + $0x247] sm:$0xff]
      %v1236 = vld [vmem:[%s1214 + $0x25f] sm:$0xff]
      %v1237 = vld [vmem:[%s1214 + $0x277] sm:$0xff]
      %v1238 = vld [vmem:[%s1214 + $0x28f] sm:$0xff]
      %v1239 = vld [vmem:[%s1214 + $0x2d7] sm:$0xff]
      %v1240 = vld [vmem:[%s1214 + $0x2ef] sm:$0xff]
      %v1241 = vld [vmem:[%s1214 + $0x307] sm:$0xff]
      %v1242 = vld [vmem:[%s1214 + $0x31f] sm:$0xff]
      %v1243 = vld [vmem:[%s1214 + $0x337] sm:$0xff]
      %v1244 = vld [vmem:[%s1214 + $0x34f] sm:$0xff]
      %v1245 = vld [vmem:[%s1214 + $0x367] sm:$0xff]
      %v1246 = vld [vmem:[%s1214 + $0x37f] sm:$0xff]
      %v1247 = vlaneseq
      %v1248 = vshrl.u32 %v1247, 7
      %v1249 = vsub.s32 0, %v1248
      %v1250 = vrot.slane %v1213, %v1249
      %v1251 = vmul.f32 %v1215, %v1250
      %v1252 = vmul.f32 %v1216, %v1250
      %v1253 = vmul.f32 %v1217, %v1250
      %v1254 = vmul.f32 %v1218, %v1250
      %v1255 = vmul.f32 %v1219, %v1250
      %v1256 = vmul.f32 %v1220, %v1250
      %v1257 = vmul.f32 %v1221, %v1250
      %v1258 = vmul.f32 %v1222, %v1250
      %v1259 = vmul.f32 %v1223, %v1250
      %v1260 = vmul.f32 %v1224, %v1250
      %v1261 = vmul.f32 %v1225, %v1250
      %v1262 = vmul.f32 %v1226, %v1250
      %v1263 = vmul.f32 %v1227, %v1250
      %v1264 = vmul.f32 %v1228, %v1250
      %v1265 = vmul.f32 %v1229, %v1250
      %v1266 = vmul.f32 %v1230, %v1250
      %v1267 = vmul.f32 %v1231, %v1250
      %v1268 = vmul.f32 %v1232, %v1250
      %v1269 = vmul.f32 %v1233, %v1250
      %v1270 = vmul.f32 %v1234, %v1250
      %v1271 = vmul.f32 %v1235, %v1250
      %v1272 = vmul.f32 %v1236, %v1250
      %v1273 = vmul.f32 %v1237, %v1250
      %v1274 = vmul.f32 %v1238, %v1250
      %v1275 = vmul.f32 %v1239, %v1250
      %v1276 = vmul.f32 %v1240, %v1250
      %v1277 = vmul.f32 %v1241, %v1250
      %v1278 = vmul.f32 %v1242, %v1250
      %v1279 = vmul.f32 %v1243, %v1250
      %v1280 = vmul.f32 %v1244, %v1250
      %v1281 = vmul.f32 %v1245, %v1250
      %v1282 = vmul.f32 %v1246, %v1250
      %v1283 = vadd.f32 %v1180, %v1251
      %v1284 = vadd.f32 %v1181, %v1252
      %v1285 = vadd.f32 %v1182, %v1253
      %v1286 = vadd.f32 %v1183, %v1254
      %v1287 = vadd.f32 %v1184, %v1255
      %v1288 = vadd.f32 %v1185, %v1256
      %v1289 = vadd.f32 %v1186, %v1257
      %v1290 = vadd.f32 %v1187, %v1258
      %v1291 = vadd.f32 %v1188, %v1259
      %v1292 = vadd.f32 %v1189, %v1260
      %v1293 = vadd.f32 %v1190, %v1261
      %v1294 = vadd.f32 %v1191, %v1262
      %v1295 = vadd.f32 %v1192, %v1263
      %v1296 = vadd.f32 %v1193, %v1264
      %v1297 = vadd.f32 %v1194, %v1265
      %v1298 = vadd.f32 %v1195, %v1266
      %v1299 = vadd.f32 %v1196, %v1267
      %v1300 = vadd.f32 %v1197, %v1268
      %v1301 = vadd.f32 %v1198, %v1269
      %v1302 = vadd.f32 %v1199, %v1270
      %v1303 = vadd.f32 %v1200, %v1271
      %v1304 = vadd.f32 %v1201, %v1272
      %v1305 = vadd.f32 %v1202, %v1273
      %v1306 = vadd.f32 %v1203, %v1274
      %v1307 = vadd.f32 %v1204, %v1275
      %v1308 = vadd.f32 %v1205, %v1276
      %v1309 = vadd.f32 %v1206, %v1277
      %v1310 = vadd.f32 %v1207, %v1278
      %v1311 = vadd.f32 %v1208, %v1279
      %v1312 = vadd.f32 %v1209, %v1280
      %v1313 = vadd.f32 %v1210, %v1281
      %v1314 = vadd.f32 %v1211, %v1282
      %v1315 = vld [vmem:[%s1212 + $0x1] sm:$0x1]
      %v1316 = vld [vmem:[%s1214 + $0x8] sm:$0xff]
      %v1317 = vld [vmem:[%s1214 + $0x20] sm:$0xff]
      %v1318 = vld [vmem:[%s1214 + $0x38] sm:$0xff]
      %v1319 = vld [vmem:[%s1214 + $0x50] sm:$0xff]
      %v1320 = vld [vmem:[%s1214 + $0x68] sm:$0xff]
      %v1321 = vld [vmem:[%s1214 + $0x80] sm:$0xff]
      %v1322 = vld [vmem:[%s1214 + $0x98] sm:$0xff]
      %v1323 = vld [vmem:[%s1214 + $0xb0] sm:$0xff]
      %v1324 = vld [vmem:[%s1214 + $0xf8] sm:$0xff]
      %v1325 = vld [vmem:[%s1214 + $0x110] sm:$0xff]
      %v1326 = vld [vmem:[%s1214 + $0x128] sm:$0xff]
      %v1327 = vld [vmem:[%s1214 + $0x140] sm:$0xff]
      %v1328 = vld [vmem:[%s1214 + $0x158] sm:$0xff]
      %v1329 = vld [vmem:[%s1214 + $0x170] sm:$0xff]
      %v1330 = vld [vmem:[%s1214 + $0x188] sm:$0xff]
      %v1331 = vld [vmem:[%s1214 + $0x1a0] sm:$0xff]
      %v1332 = vld [vmem:[%s1214 + $0x1e8] sm:$0xff]
      %v1333 = vld [vmem:[%s1214 + $0x200] sm:$0xff]
      %v1334 = vld [vmem:[%s1214 + $0x218] sm:$0xff]
      %v1335 = vld [vmem:[%s1214 + $0x230] sm:$0xff]
      %v1336 = vld [vmem:[%s1214 + $0x248] sm:$0xff]
      %v1337 = vld [vmem:[%s1214 + $0x260] sm:$0xff]
      %v1338 = vld [vmem:[%s1214 + $0x278] sm:$0xff]
      %v1339 = vld [vmem:[%s1214 + $0x290] sm:$0xff]
      %v1340 = vld [vmem:[%s1214 + $0x2d8] sm:$0xff]
      %v1341 = vld [vmem:[%s1214 + $0x2f0] sm:$0xff]
      %v1342 = vld [vmem:[%s1214 + $0x308] sm:$0xff]
      %v1343 = vld [vmem:[%s1214 + $0x320] sm:$0xff]
      %v1344 = vld [vmem:[%s1214 + $0x338] sm:$0xff]
      %v1345 = vld [vmem:[%s1214 + $0x350] sm:$0xff]
      %v1346 = vld [vmem:[%s1214 + $0x368] sm:$0xff]
      %v1347 = vld [vmem:[%s1214 + $0x380] sm:$0xff]
      %v1348 = vlaneseq
      %v1349 = vshrl.u32 %v1348, 7
      %v1350 = vsub.s32 0, %v1349
      %v1351 = vrot.slane %v1315, %v1350
      %v1352 = vmul.f32 %v1316, %v1351
      %v1353 = vmul.f32 %v1317, %v1351
      %v1354 = vmul.f32 %v1318, %v1351
      %v1355 = vmul.f32 %v1319, %v1351
      %v1356 = vmul.f32 %v1320, %v1351
      %v1357 = vmul.f32 %v1321, %v1351
      %v1358 = vmul.f32 %v1322, %v1351
      %v1359 = vmul.f32 %v1323, %v1351
      %v1360 = vmul.f32 %v1324, %v1351
      %v1361 = vmul.f32 %v1325, %v1351
      %v1362 = vmul.f32 %v1326, %v1351
      %v1363 = vmul.f32 %v1327, %v1351
      %v1364 = vmul.f32 %v1328, %v1351
      %v1365 = vmul.f32 %v1329, %v1351
      %v1366 = vmul.f32 %v1330, %v1351
      %v1367 = vmul.f32 %v1331, %v1351
      %v1368 = vmul.f32 %v1332, %v1351
      %v1369 = vmul.f32 %v1333, %v1351
      %v1370 = vmul.f32 %v1334, %v1351
      %v1371 = vmul.f32 %v1335, %v1351
      %v1372 = vmul.f32 %v1336, %v1351
      %v1373 = vmul.f32 %v1337, %v1351
      %v1374 = vmul.f32 %v1338, %v1351
      %v1375 = vmul.f32 %v1339, %v1351
      %v1376 = vmul.f32 %v1340, %v1351
      %v1377 = vmul.f32 %v1341, %v1351
      %v1378 = vmul.f32 %v1342, %v1351
      %v1379 = vmul.f32 %v1343, %v1351
      %v1380 = vmul.f32 %v1344, %v1351
      %v1381 = vmul.f32 %v1345, %v1351
      %v1382 = vmul.f32 %v1346, %v1351
      %v1383 = vmul.f32 %v1347, %v1351
      %v1384 = vadd.f32 %v1283, %v1352
      %v1385 = vadd.f32 %v1284, %v1353
      %v1386 = vadd.f32 %v1285, %v1354
      %v1387 = vadd.f32 %v1286, %v1355
      %v1388 = vadd.f32 %v1287, %v1356
      %v1389 = vadd.f32 %v1288, %v1357
      %v1390 = vadd.f32 %v1289, %v1358
      %v1391 = vadd.f32 %v1290, %v1359
      %v1392 = vadd.f32 %v1291, %v1360
      %v1393 = vadd.f32 %v1292, %v1361
      %v1394 = vadd.f32 %v1293, %v1362
      %v1395 = vadd.f32 %v1294, %v1363
      %v1396 = vadd.f32 %v1295, %v1364
      %v1397 = vadd.f32 %v1296, %v1365
      %v1398 = vadd.f32 %v1297, %v1366
      %v1399 = vadd.f32 %v1298, %v1367
      %v1400 = vadd.f32 %v1299, %v1368
      %v1401 = vadd.f32 %v1300, %v1369
      %v1402 = vadd.f32 %v1301, %v1370
      %v1403 = vadd.f32 %v1302, %v1371
      %v1404 = vadd.f32 %v1303, %v1372
      %v1405 = vadd.f32 %v1304, %v1373
      %v1406 = vadd.f32 %v1305, %v1374
      %v1407 = vadd.f32 %v1306, %v1375
      %v1408 = vadd.f32 %v1307, %v1376
      %v1409 = vadd.f32 %v1308, %v1377
      %v1410 = vadd.f32 %v1309, %v1378
      %v1411 = vadd.f32 %v1310, %v1379
      %v1412 = vadd.f32 %v1311, %v1380
      %v1413 = vadd.f32 %v1312, %v1381
      %v1414 = vadd.f32 %v1313, %v1382
      %v1415 = vadd.f32 %v1314, %v1383
      %v1416 = vld [vmem:[%s1212 + $0x2] sm:$0x1]
      %v1417 = vld [vmem:[%s1214 + $0x9] sm:$0xff]
      %v1418 = vld [vmem:[%s1214 + $0x21] sm:$0xff]
      %v1419 = vld [vmem:[%s1214 + $0x39] sm:$0xff]
      %v1420 = vld [vmem:[%s1214 + $0x51] sm:$0xff]
      %v1421 = vld [vmem:[%s1214 + $0x69] sm:$0xff]
      %v1422 = vld [vmem:[%s1214 + $0x81] sm:$0xff]
      %v1423 = vld [vmem:[%s1214 + $0x99] sm:$0xff]
      %v1424 = vld [vmem:[%s1214 + $0xb1] sm:$0xff]
      %v1425 = vld [vmem:[%s1214 + $0xf9] sm:$0xff]
      %v1426 = vld [vmem:[%s1214 + $0x111] sm:$0xff]
      %v1427 = vld [vmem:[%s1214 + $0x129] sm:$0xff]
      %v1428 = vld [vmem:[%s1214 + $0x141] sm:$0xff]
      %v1429 = vld [vmem:[%s1214 + $0x159] sm:$0xff]
      %v1430 = vld [vmem:[%s1214 + $0x171] sm:$0xff]
      %v1431 = vld [vmem:[%s1214 + $0x189] sm:$0xff]
      %v1432 = vld [vmem:[%s1214 + $0x1a1] sm:$0xff]
      %v1433 = vld [vmem:[%s1214 + $0x1e9] sm:$0xff]
      %v1434 = vld [vmem:[%s1214 + $0x201] sm:$0xff]
      %v1435 = vld [vmem:[%s1214 + $0x219] sm:$0xff]
      %v1436 = vld [vmem:[%s1214 + $0x231] sm:$0xff]
      %v1437 = vld [vmem:[%s1214 + $0x249] sm:$0xff]
      %v1438 = vld [vmem:[%s1214 + $0x261] sm:$0xff]
      %v1439 = vld [vmem:[%s1214 + $0x279] sm:$0xff]
      %v1440 = vld [vmem:[%s1214 + $0x291] sm:$0xff]
      %v1441 = vld [vmem:[%s1214 + $0x2d9] sm:$0xff]
      %v1442 = vld [vmem:[%s1214 + $0x2f1] sm:$0xff]
      %v1443 = vld [vmem:[%s1214 + $0x309] sm:$0xff]
      %v1444 = vld [vmem:[%s1214 + $0x321] sm:$0xff]
      %v1445 = vld [vmem:[%s1214 + $0x339] sm:$0xff]
      %v1446 = vld [vmem:[%s1214 + $0x351] sm:$0xff]
      %v1447 = vld [vmem:[%s1214 + $0x369] sm:$0xff]
      %v1448 = vld [vmem:[%s1214 + $0x381] sm:$0xff]
      %v1449 = vlaneseq
      %v1450 = vshrl.u32 %v1449, 7
      %v1451 = vsub.s32 0, %v1450
      %v1452 = vrot.slane %v1416, %v1451
      %v1453 = vmul.f32 %v1417, %v1452
      %v1454 = vmul.f32 %v1418, %v1452
      %v1455 = vmul.f32 %v1419, %v1452
      %v1456 = vmul.f32 %v1420, %v1452
      %v1457 = vmul.f32 %v1421, %v1452
      %v1458 = vmul.f32 %v1422, %v1452
      %v1459 = vmul.f32 %v1423, %v1452
      %v1460 = vmul.f32 %v1424, %v1452
      %v1461 = vmul.f32 %v1425, %v1452
      %v1462 = vmul.f32 %v1426, %v1452
      %v1463 = vmul.f32 %v1427, %v1452
      %v1464 = vmul.f32 %v1428, %v1452
      %v1465 = vmul.f32 %v1429, %v1452
      %v1466 = vmul.f32 %v1430, %v1452
      %v1467 = vmul.f32 %v1431, %v1452
      %v1468 = vmul.f32 %v1432, %v1452
      %v1469 = vmul.f32 %v1433, %v1452
      %v1470 = vmul.f32 %v1434, %v1452
      %v1471 = vmul.f32 %v1435, %v1452
      %v1472 = vmul.f32 %v1436, %v1452
      %v1473 = vmul.f32 %v1437, %v1452
      %v1474 = vmul.f32 %v1438, %v1452
      %v1475 = vmul.f32 %v1439, %v1452
      %v1476 = vmul.f32 %v1440, %v1452
      %v1477 = vmul.f32 %v1441, %v1452
      %v1478 = vmul.f32 %v1442, %v1452
      %v1479 = vmul.f32 %v1443, %v1452
      %v1480 = vmul.f32 %v1444, %v1452
      %v1481 = vmul.f32 %v1445, %v1452
      %v1482 = vmul.f32 %v1446, %v1452
      %v1483 = vmul.f32 %v1447, %v1452
      %v1484 = vmul.f32 %v1448, %v1452
      %v1485 = vadd.f32 %v1384, %v1453
      %v1486 = vadd.f32 %v1385, %v1454
      %v1487 = vadd.f32 %v1386, %v1455
      %v1488 = vadd.f32 %v1387, %v1456
      %v1489 = vadd.f32 %v1388, %v1457
      %v1490 = vadd.f32 %v1389, %v1458
      %v1491 = vadd.f32 %v1390, %v1459
      %v1492 = vadd.f32 %v1391, %v1460
      %v1493 = vadd.f32 %v1392, %v1461
      %v1494 = vadd.f32 %v1393, %v1462
      %v1495 = vadd.f32 %v1394, %v1463
      %v1496 = vadd.f32 %v1395, %v1464
      %v1497 = vadd.f32 %v1396, %v1465
      %v1498 = vadd.f32 %v1397, %v1466
      %v1499 = vadd.f32 %v1398, %v1467
      %v1500 = vadd.f32 %v1399, %v1468
      %v1501 = vadd.f32 %v1400, %v1469
      %v1502 = vadd.f32 %v1401, %v1470
      %v1503 = vadd.f32 %v1402, %v1471
      %v1504 = vadd.f32 %v1403, %v1472
      %v1505 = vadd.f32 %v1404, %v1473
      %v1506 = vadd.f32 %v1405, %v1474
      %v1507 = vadd.f32 %v1406, %v1475
      %v1508 = vadd.f32 %v1407, %v1476
      %v1509 = vadd.f32 %v1408, %v1477
      %v1510 = vadd.f32 %v1409, %v1478
      %v1511 = vadd.f32 %v1410, %v1479
      %v1512 = vadd.f32 %v1411, %v1480
      %v1513 = vadd.f32 %v1412, %v1481
      %v1514 = vadd.f32 %v1413, %v1482
      %v1515 = vadd.f32 %v1414, %v1483
      %v1516 = vadd.f32 %v1415, %v1484
      %s1517 = scalar_lea.vmem %s2, 8
      %v1518 = vld [vmem:[%s1517] sm:$0x1]
      %s1519 = scalar_lea.vmem [#allocation2], 48
      %v1520 = vld [vmem:[%s1519 + $0x7] sm:$0xff]
      %v1521 = vld [vmem:[%s1519 + $0x1f] sm:$0xff]
      %v1522 = vld [vmem:[%s1519 + $0x37] sm:$0xff]
      %v1523 = vld [vmem:[%s1519 + $0x4f] sm:$0xff]
      %v1524 = vld [vmem:[%s1519 + $0x67] sm:$0xff]
      %v1525 = vld [vmem:[%s1519 + $0x7f] sm:$0xff]
      %v1526 = vld [vmem:[%s1519 + $0x97] sm:$0xff]
      %v1527 = vld [vmem:[%s1519 + $0xaf] sm:$0xff]
      %v1528 = vld [vmem:[%s1519 + $0xf7] sm:$0xff]
      %v1529 = vld [vmem:[%s1519 + $0x10f] sm:$0xff]
      %v1530 = vld [vmem:[%s1519 + $0x127] sm:$0xff]
      %v1531 = vld [vmem:[%s1519 + $0x13f] sm:$0xff]
      %v1532 = vld [vmem:[%s1519 + $0x157] sm:$0xff]
      %v1533 = vld [vmem:[%s1519 + $0x16f] sm:$0xff]
      %v1534 = vld [vmem:[%s1519 + $0x187] sm:$0xff]
      %v1535 = vld [vmem:[%s1519 + $0x19f] sm:$0xff]
      %v1536 = vld [vmem:[%s1519 + $0x1e7] sm:$0xff]
      %v1537 = vld [vmem:[%s1519 + $0x1ff] sm:$0xff]
      %v1538 = vld [vmem:[%s1519 + $0x217] sm:$0xff]
      %v1539 = vld [vmem:[%s1519 + $0x22f] sm:$0xff]
      %v1540 = vld [vmem:[%s1519 + $0x247] sm:$0xff]
      %v1541 = vld [vmem:[%s1519 + $0x25f] sm:$0xff]
      %v1542 = vld [vmem:[%s1519 + $0x277] sm:$0xff]
      %v1543 = vld [vmem:[%s1519 + $0x28f] sm:$0xff]
      %v1544 = vld [vmem:[%s1519 + $0x2d7] sm:$0xff]
      %v1545 = vld [vmem:[%s1519 + $0x2ef] sm:$0xff]
      %v1546 = vld [vmem:[%s1519 + $0x307] sm:$0xff]
      %v1547 = vld [vmem:[%s1519 + $0x31f] sm:$0xff]
      %v1548 = vld [vmem:[%s1519 + $0x337] sm:$0xff]
      %v1549 = vld [vmem:[%s1519 + $0x34f] sm:$0xff]
      %v1550 = vld [vmem:[%s1519 + $0x367] sm:$0xff]
      %v1551 = vld [vmem:[%s1519 + $0x37f] sm:$0xff]
      %v1552 = vlaneseq
      %v1553 = vshrl.u32 %v1552, 7
      %v1554 = vsub.s32 0, %v1553
      %v1555 = vrot.slane %v1518, %v1554
      %v1556 = vmul.f32 %v1520, %v1555
      %v1557 = vmul.f32 %v1521, %v1555
      %v1558 = vmul.f32 %v1522, %v1555
      %v1559 = vmul.f32 %v1523, %v1555
      %v1560 = vmul.f32 %v1524, %v1555
      %v1561 = vmul.f32 %v1525, %v1555
      %v1562 = vmul.f32 %v1526, %v1555
      %v1563 = vmul.f32 %v1527, %v1555
      %v1564 = vmul.f32 %v1528, %v1555
      %v1565 = vmul.f32 %v1529, %v1555
      %v1566 = vmul.f32 %v1530, %v1555
      %v1567 = vmul.f32 %v1531, %v1555
      %v1568 = vmul.f32 %v1532, %v1555
      %v1569 = vmul.f32 %v1533, %v1555
      %v1570 = vmul.f32 %v1534, %v1555
      %v1571 = vmul.f32 %v1535, %v1555
      %v1572 = vmul.f32 %v1536, %v1555
      %v1573 = vmul.f32 %v1537, %v1555
      %v1574 = vmul.f32 %v1538, %v1555
      %v1575 = vmul.f32 %v1539, %v1555
      %v1576 = vmul.f32 %v1540, %v1555
      %v1577 = vmul.f32 %v1541, %v1555
      %v1578 = vmul.f32 %v1542, %v1555
      %v1579 = vmul.f32 %v1543, %v1555
      %v1580 = vmul.f32 %v1544, %v1555
      %v1581 = vmul.f32 %v1545, %v1555
      %v1582 = vmul.f32 %v1546, %v1555
      %v1583 = vmul.f32 %v1547, %v1555
      %v1584 = vmul.f32 %v1548, %v1555
      %v1585 = vmul.f32 %v1549, %v1555
      %v1586 = vmul.f32 %v1550, %v1555
      %v1587 = vmul.f32 %v1551, %v1555
      %v1588 = vadd.f32 %v1485, %v1556
      %v1589 = vadd.f32 %v1486, %v1557
      %v1590 = vadd.f32 %v1487, %v1558
      %v1591 = vadd.f32 %v1488, %v1559
      %v1592 = vadd.f32 %v1489, %v1560
      %v1593 = vadd.f32 %v1490, %v1561
      %v1594 = vadd.f32 %v1491, %v1562
      %v1595 = vadd.f32 %v1492, %v1563
      %v1596 = vadd.f32 %v1493, %v1564
      %v1597 = vadd.f32 %v1494, %v1565
      %v1598 = vadd.f32 %v1495, %v1566
      %v1599 = vadd.f32 %v1496, %v1567
      %v1600 = vadd.f32 %v1497, %v1568
      %v1601 = vadd.f32 %v1498, %v1569
      %v1602 = vadd.f32 %v1499, %v1570
      %v1603 = vadd.f32 %v1500, %v1571
      %v1604 = vadd.f32 %v1501, %v1572
      %v1605 = vadd.f32 %v1502, %v1573
      %v1606 = vadd.f32 %v1503, %v1574
      %v1607 = vadd.f32 %v1504, %v1575
      %v1608 = vadd.f32 %v1505, %v1576
      %v1609 = vadd.f32 %v1506, %v1577
      %v1610 = vadd.f32 %v1507, %v1578
      %v1611 = vadd.f32 %v1508, %v1579
      %v1612 = vadd.f32 %v1509, %v1580
      %v1613 = vadd.f32 %v1510, %v1581
      %v1614 = vadd.f32 %v1511, %v1582
      %v1615 = vadd.f32 %v1512, %v1583
      %v1616 = vadd.f32 %v1513, %v1584
      %v1617 = vadd.f32 %v1514, %v1585
      %v1618 = vadd.f32 %v1515, %v1586
      %v1619 = vadd.f32 %v1516, %v1587
      %v1620 = vld [vmem:[%s1517 + $0x1] sm:$0x1]
      %v1621 = vld [vmem:[%s1519 + $0x8] sm:$0xff]
      %v1622 = vld [vmem:[%s1519 + $0x20] sm:$0xff]
      %v1623 = vld [vmem:[%s1519 + $0x38] sm:$0xff]
      %v1624 = vld [vmem:[%s1519 + $0x50] sm:$0xff]
      %v1625 = vld [vmem:[%s1519 + $0x68] sm:$0xff]
      %v1626 = vld [vmem:[%s1519 + $0x80] sm:$0xff]
      %v1627 = vld [vmem:[%s1519 + $0x98] sm:$0xff]
      %v1628 = vld [vmem:[%s1519 + $0xb0] sm:$0xff]
      %v1629 = vld [vmem:[%s1519 + $0xf8] sm:$0xff]
      %v1630 = vld [vmem:[%s1519 + $0x110] sm:$0xff]
      %v1631 = vld [vmem:[%s1519 + $0x128] sm:$0xff]
      %v1632 = vld [vmem:[%s1519 + $0x140] sm:$0xff]
      %v1633 = vld [vmem:[%s1519 + $0x158] sm:$0xff]
      %v1634 = vld [vmem:[%s1519 + $0x170] sm:$0xff]
      %v1635 = vld [vmem:[%s1519 + $0x188] sm:$0xff]
      %v1636 = vld [vmem:[%s1519 + $0x1a0] sm:$0xff]
      %v1637 = vld [vmem:[%s1519 + $0x1e8] sm:$0xff]
      %v1638 = vld [vmem:[%s1519 + $0x200] sm:$0xff]
      %v1639 = vld [vmem:[%s1519 + $0x218] sm:$0xff]
      %v1640 = vld [vmem:[%s1519 + $0x230] sm:$0xff]
      %v1641 = vld [vmem:[%s1519 + $0x248] sm:$0xff]
      %v1642 = vld [vmem:[%s1519 + $0x260] sm:$0xff]
      %v1643 = vld [vmem:[%s1519 + $0x278] sm:$0xff]
      %v1644 = vld [vmem:[%s1519 + $0x290] sm:$0xff]
      %v1645 = vld [vmem:[%s1519 + $0x2d8] sm:$0xff]
      %v1646 = vld [vmem:[%s1519 + $0x2f0] sm:$0xff]
      %v1647 = vld [vmem:[%s1519 + $0x308] sm:$0xff]
      %v1648 = vld [vmem:[%s1519 + $0x320] sm:$0xff]
      %v1649 = vld [vmem:[%s1519 + $0x338] sm:$0xff]
      %v1650 = vld [vmem:[%s1519 + $0x350] sm:$0xff]
      %v1651 = vld [vmem:[%s1519 + $0x368] sm:$0xff]
      %v1652 = vld [vmem:[%s1519 + $0x380] sm:$0xff]
      %v1653 = vlaneseq
      %v1654 = vshrl.u32 %v1653, 7
      %v1655 = vsub.s32 0, %v1654
      %v1656 = vrot.slane %v1620, %v1655
      %v1657 = vmul.f32 %v1621, %v1656
      %v1658 = vmul.f32 %v1622, %v1656
      %v1659 = vmul.f32 %v1623, %v1656
      %v1660 = vmul.f32 %v1624, %v1656
      %v1661 = vmul.f32 %v1625, %v1656
      %v1662 = vmul.f32 %v1626, %v1656
      %v1663 = vmul.f32 %v1627, %v1656
      %v1664 = vmul.f32 %v1628, %v1656
      %v1665 = vmul.f32 %v1629, %v1656
      %v1666 = vmul.f32 %v1630, %v1656
      %v1667 = vmul.f32 %v1631, %v1656
      %v1668 = vmul.f32 %v1632, %v1656
      %v1669 = vmul.f32 %v1633, %v1656
      %v1670 = vmul.f32 %v1634, %v1656
      %v1671 = vmul.f32 %v1635, %v1656
      %v1672 = vmul.f32 %v1636, %v1656
      %v1673 = vmul.f32 %v1637, %v1656
      %v1674 = vmul.f32 %v1638, %v1656
      %v1675 = vmul.f32 %v1639, %v1656
      %v1676 = vmul.f32 %v1640, %v1656
      %v1677 = vmul.f32 %v1641, %v1656
      %v1678 = vmul.f32 %v1642, %v1656
      %v1679 = vmul.f32 %v1643, %v1656
      %v1680 = vmul.f32 %v1644, %v1656
      %v1681 = vmul.f32 %v1645, %v1656
      %v1682 = vmul.f32 %v1646, %v1656
      %v1683 = vmul.f32 %v1647, %v1656
      %v1684 = vmul.f32 %v1648, %v1656
      %v1685 = vmul.f32 %v1649, %v1656
      %v1686 = vmul.f32 %v1650, %v1656
      %v1687 = vmul.f32 %v1651, %v1656
      %v1688 = vmul.f32 %v1652, %v1656
      %v1689 = vadd.f32 %v1588, %v1657
      %v1690 = vadd.f32 %v1589, %v1658
      %v1691 = vadd.f32 %v1590, %v1659
      %v1692 = vadd.f32 %v1591, %v1660
      %v1693 = vadd.f32 %v1592, %v1661
      %v1694 = vadd.f32 %v1593, %v1662
      %v1695 = vadd.f32 %v1594, %v1663
      %v1696 = vadd.f32 %v1595, %v1664
      %v1697 = vadd.f32 %v1596, %v1665
      %v1698 = vadd.f32 %v1597, %v1666
      %v1699 = vadd.f32 %v1598, %v1667
      %v1700 = vadd.f32 %v1599, %v1668
      %v1701 = vadd.f32 %v1600, %v1669
      %v1702 = vadd.f32 %v1601, %v1670
      %v1703 = vadd.f32 %v1602, %v1671
      %v1704 = vadd.f32 %v1603, %v1672
      %v1705 = vadd.f32 %v1604, %v1673
      %v1706 = vadd.f32 %v1605, %v1674
      %v1707 = vadd.f32 %v1606, %v1675
      %v1708 = vadd.f32 %v1607, %v1676
      %v1709 = vadd.f32 %v1608, %v1677
      %v1710 = vadd.f32 %v1609, %v1678
      %v1711 = vadd.f32 %v1610, %v1679
      %v1712 = vadd.f32 %v1611, %v1680
      %v1713 = vadd.f32 %v1612, %v1681
      %v1714 = vadd.f32 %v1613, %v1682
      %v1715 = vadd.f32 %v1614, %v1683
      %v1716 = vadd.f32 %v1615, %v1684
      %v1717 = vadd.f32 %v1616, %v1685
      %v1718 = vadd.f32 %v1617, %v1686
      %v1719 = vadd.f32 %v1618, %v1687
      %v1720 = vadd.f32 %v1619, %v1688
      %v1721 = vld [vmem:[%s1517 + $0x2] sm:$0x1]
      %v1722 = vld [vmem:[%s1519 + $0x9] sm:$0xff]
      %v1723 = vld [vmem:[%s1519 + $0x21] sm:$0xff]
      %v1724 = vld [vmem:[%s1519 + $0x39] sm:$0xff]
      %v1725 = vld [vmem:[%s1519 + $0x51] sm:$0xff]
      %v1726 = vld [vmem:[%s1519 + $0x69] sm:$0xff]
      %v1727 = vld [vmem:[%s1519 + $0x81] sm:$0xff]
      %v1728 = vld [vmem:[%s1519 + $0x99] sm:$0xff]
      %v1729 = vld [vmem:[%s1519 + $0xb1] sm:$0xff]
      %v1730 = vld [vmem:[%s1519 + $0xf9] sm:$0xff]
      %v1731 = vld [vmem:[%s1519 + $0x111] sm:$0xff]
      %v1732 = vld [vmem:[%s1519 + $0x129] sm:$0xff]
      %v1733 = vld [vmem:[%s1519 + $0x141] sm:$0xff]
      %v1734 = vld [vmem:[%s1519 + $0x159] sm:$0xff]
      %v1735 = vld [vmem:[%s1519 + $0x171] sm:$0xff]
      %v1736 = vld [vmem:[%s1519 + $0x189] sm:$0xff]
      %v1737 = vld [vmem:[%s1519 + $0x1a1] sm:$0xff]
      %v1738 = vld [vmem:[%s1519 + $0x1e9] sm:$0xff]
      %v1739 = vld [vmem:[%s1519 + $0x201] sm:$0xff]
      %v1740 = vld [vmem:[%s1519 + $0x219] sm:$0xff]
      %v1741 = vld [vmem:[%s1519 + $0x231] sm:$0xff]
      %v1742 = vld [vmem:[%s1519 + $0x249] sm:$0xff]
      %v1743 = vld [vmem:[%s1519 + $0x261] sm:$0xff]
      %v1744 = vld [vmem:[%s1519 + $0x279] sm:$0xff]
      %v1745 = vld [vmem:[%s1519 + $0x291] sm:$0xff]
      %v1746 = vld [vmem:[%s1519 + $0x2d9] sm:$0xff]
      %v1747 = vld [vmem:[%s1519 + $0x2f1] sm:$0xff]
      %v1748 = vld [vmem:[%s1519 + $0x309] sm:$0xff]
      %v1749 = vld [vmem:[%s1519 + $0x321] sm:$0xff]
      %v1750 = vld [vmem:[%s1519 + $0x339] sm:$0xff]
      %v1751 = vld [vmem:[%s1519 + $0x351] sm:$0xff]
      %v1752 = vld [vmem:[%s1519 + $0x369] sm:$0xff]
      %v1753 = vld [vmem:[%s1519 + $0x381] sm:$0xff]
      %v1754 = vlaneseq
      %v1755 = vshrl.u32 %v1754, 7
      %v1756 = vsub.s32 0, %v1755
      %v1757 = vrot.slane %v1721, %v1756
      %v1758 = vmul.f32 %v1722, %v1757
      %v1759 = vmul.f32 %v1723, %v1757
      %v1760 = vmul.f32 %v1724, %v1757
      %v1761 = vmul.f32 %v1725, %v1757
      %v1762 = vmul.f32 %v1726, %v1757
      %v1763 = vmul.f32 %v1727, %v1757
      %v1764 = vmul.f32 %v1728, %v1757
      %v1765 = vmul.f32 %v1729, %v1757
      %v1766 = vmul.f32 %v1730, %v1757
      %v1767 = vmul.f32 %v1731, %v1757
      %v1768 = vmul.f32 %v1732, %v1757
      %v1769 = vmul.f32 %v1733, %v1757
      %v1770 = vmul.f32 %v1734, %v1757
      %v1771 = vmul.f32 %v1735, %v1757
      %v1772 = vmul.f32 %v1736, %v1757
      %v1773 = vmul.f32 %v1737, %v1757
      %v1774 = vmul.f32 %v1738, %v1757
      %v1775 = vmul.f32 %v1739, %v1757
      %v1776 = vmul.f32 %v1740, %v1757
      %v1777 = vmul.f32 %v1741, %v1757
      %v1778 = vmul.f32 %v1742, %v1757
      %v1779 = vmul.f32 %v1743, %v1757
      %v1780 = vmul.f32 %v1744, %v1757
      %v1781 = vmul.f32 %v1745, %v1757
      %v1782 = vmul.f32 %v1746, %v1757
      %v1783 = vmul.f32 %v1747, %v1757
      %v1784 = vmul.f32 %v1748, %v1757
      %v1785 = vmul.f32 %v1749, %v1757
      %v1786 = vmul.f32 %v1750, %v1757
      %v1787 = vmul.f32 %v1751, %v1757
      %v1788 = vmul.f32 %v1752, %v1757
      %v1789 = vmul.f32 %v1753, %v1757
      %v1790 = vadd.f32 %v1689, %v1758
      %v1791 = vadd.f32 %v1690, %v1759
      %v1792 = vadd.f32 %v1691, %v1760
      %v1793 = vadd.f32 %v1692, %v1761
      %v1794 = vadd.f32 %v1693, %v1762
      %v1795 = vadd.f32 %v1694, %v1763
      %v1796 = vadd.f32 %v1695, %v1764
      %v1797 = vadd.f32 %v1696, %v1765
      %v1798 = vadd.f32 %v1697, %v1766
      %v1799 = vadd.f32 %v1698, %v1767
      %v1800 = vadd.f32 %v1699, %v1768
      %v1801 = vadd.f32 %v1700, %v1769
      %v1802 = vadd.f32 %v1701, %v1770
      %v1803 = vadd.f32 %v1702, %v1771
      %v1804 = vadd.f32 %v1703, %v1772
      %v1805 = vadd.f32 %v1704, %v1773
      %v1806 = vadd.f32 %v1705, %v1774
      %v1807 = vadd.f32 %v1706, %v1775
      %v1808 = vadd.f32 %v1707, %v1776
      %v1809 = vadd.f32 %v1708, %v1777
      %v1810 = vadd.f32 %v1709, %v1778
      %v1811 = vadd.f32 %v1710, %v1779
      %v1812 = vadd.f32 %v1711, %v1780
      %v1813 = vadd.f32 %v1712, %v1781
      %v1814 = vadd.f32 %v1713, %v1782
      %v1815 = vadd.f32 %v1714, %v1783
      %v1816 = vadd.f32 %v1715, %v1784
      %v1817 = vadd.f32 %v1716, %v1785
      %v1818 = vadd.f32 %v1717, %v1786
      %v1819 = vadd.f32 %v1718, %v1787
      %v1820 = vadd.f32 %v1719, %v1788
      %v1821 = vadd.f32 %v1720, %v1789
      %s1822 = scalar_lea.vmem %s2, 12
      %v1823 = vld [vmem:[%s1822] sm:$0x1]
      %s1824 = scalar_lea.vmem [#allocation2], 240
      %v1825 = vld [vmem:[%s1824 + $0x7] sm:$0xff]
      %v1826 = vld [vmem:[%s1824 + $0x1f] sm:$0xff]
      %v1827 = vld [vmem:[%s1824 + $0x37] sm:$0xff]
      %v1828 = vld [vmem:[%s1824 + $0x4f] sm:$0xff]
      %v1829 = vld [vmem:[%s1824 + $0x67] sm:$0xff]
      %v1830 = vld [vmem:[%s1824 + $0x7f] sm:$0xff]
      %v1831 = vld [vmem:[%s1824 + $0x97] sm:$0xff]
      %v1832 = vld [vmem:[%s1824 + $0xaf] sm:$0xff]
      %v1833 = vld [vmem:[%s1824 + $0xf7] sm:$0xff]
      %v1834 = vld [vmem:[%s1824 + $0x10f] sm:$0xff]
      %v1835 = vld [vmem:[%s1824 + $0x127] sm:$0xff]
      %v1836 = vld [vmem:[%s1824 + $0x13f] sm:$0xff]
      %v1837 = vld [vmem:[%s1824 + $0x157] sm:$0xff]
      %v1838 = vld [vmem:[%s1824 + $0x16f] sm:$0xff]
      %v1839 = vld [vmem:[%s1824 + $0x187] sm:$0xff]
      %v1840 = vld [vmem:[%s1824 + $0x19f] sm:$0xff]
      %v1841 = vld [vmem:[%s1824 + $0x1e7] sm:$0xff]
      %v1842 = vld [vmem:[%s1824 + $0x1ff] sm:$0xff]
      %v1843 = vld [vmem:[%s1824 + $0x217] sm:$0xff]
      %v1844 = vld [vmem:[%s1824 + $0x22f] sm:$0xff]
      %v1845 = vld [vmem:[%s1824 + $0x247] sm:$0xff]
      %v1846 = vld [vmem:[%s1824 + $0x25f] sm:$0xff]
      %v1847 = vld [vmem:[%s1824 + $0x277] sm:$0xff]
      %v1848 = vld [vmem:[%s1824 + $0x28f] sm:$0xff]
      %v1849 = vld [vmem:[%s1824 + $0x2d7] sm:$0xff]
      %v1850 = vld [vmem:[%s1824 + $0x2ef] sm:$0xff]
      %v1851 = vld [vmem:[%s1824 + $0x307] sm:$0xff]
      %v1852 = vld [vmem:[%s1824 + $0x31f] sm:$0xff]
      %v1853 = vld [vmem:[%s1824 + $0x337] sm:$0xff]
      %v1854 = vld [vmem:[%s1824 + $0x34f] sm:$0xff]
      %v1855 = vld [vmem:[%s1824 + $0x367] sm:$0xff]
      %v1856 = vld [vmem:[%s1824 + $0x37f] sm:$0xff]
      %v1857 = vlaneseq
      %v1858 = vshrl.u32 %v1857, 7
      %v1859 = vsub.s32 0, %v1858
      %v1860 = vrot.slane %v1823, %v1859
      %v1861 = vmul.f32 %v1825, %v1860
      %v1862 = vmul.f32 %v1826, %v1860
      %v1863 = vmul.f32 %v1827, %v1860
      %v1864 = vmul.f32 %v1828, %v1860
      %v1865 = vmul.f32 %v1829, %v1860
      %v1866 = vmul.f32 %v1830, %v1860
      %v1867 = vmul.f32 %v1831, %v1860
      %v1868 = vmul.f32 %v1832, %v1860
      %v1869 = vmul.f32 %v1833, %v1860
      %v1870 = vmul.f32 %v1834, %v1860
      %v1871 = vmul.f32 %v1835, %v1860
      %v1872 = vmul.f32 %v1836, %v1860
      %v1873 = vmul.f32 %v1837, %v1860
      %v1874 = vmul.f32 %v1838, %v1860
      %v1875 = vmul.f32 %v1839, %v1860
      %v1876 = vmul.f32 %v1840, %v1860
      %v1877 = vmul.f32 %v1841, %v1860
      %v1878 = vmul.f32 %v1842, %v1860
      %v1879 = vmul.f32 %v1843, %v1860
      %v1880 = vmul.f32 %v1844, %v1860
      %v1881 = vmul.f32 %v1845, %v1860
      %v1882 = vmul.f32 %v1846, %v1860
      %v1883 = vmul.f32 %v1847, %v1860
      %v1884 = vmul.f32 %v1848, %v1860
      %v1885 = vmul.f32 %v1849, %v1860
      %v1886 = vmul.f32 %v1850, %v1860
      %v1887 = vmul.f32 %v1851, %v1860
      %v1888 = vmul.f32 %v1852, %v1860
      %v1889 = vmul.f32 %v1853, %v1860
      %v1890 = vmul.f32 %v1854, %v1860
      %v1891 = vmul.f32 %v1855, %v1860
      %v1892 = vmul.f32 %v1856, %v1860
      %v1893 = vadd.f32 %v1790, %v1861
      %v1894 = vadd.f32 %v1791, %v1862
      %v1895 = vadd.f32 %v1792, %v1863
      %v1896 = vadd.f32 %v1793, %v1864
      %v1897 = vadd.f32 %v1794, %v1865
      %v1898 = vadd.f32 %v1795, %v1866
      %v1899 = vadd.f32 %v1796, %v1867
      %v1900 = vadd.f32 %v1797, %v1868
      %v1901 = vadd.f32 %v1798, %v1869
      %v1902 = vadd.f32 %v1799, %v1870
      %v1903 = vadd.f32 %v1800, %v1871
      %v1904 = vadd.f32 %v1801, %v1872
      %v1905 = vadd.f32 %v1802, %v1873
      %v1906 = vadd.f32 %v1803, %v1874
      %v1907 = vadd.f32 %v1804, %v1875
      %v1908 = vadd.f32 %v1805, %v1876
      %v1909 = vadd.f32 %v1806, %v1877
      %v1910 = vadd.f32 %v1807, %v1878
      %v1911 = vadd.f32 %v1808, %v1879
      %v1912 = vadd.f32 %v1809, %v1880
      %v1913 = vadd.f32 %v1810, %v1881
      %v1914 = vadd.f32 %v1811, %v1882
      %v1915 = vadd.f32 %v1812, %v1883
      %v1916 = vadd.f32 %v1813, %v1884
      %v1917 = vadd.f32 %v1814, %v1885
      %v1918 = vadd.f32 %v1815, %v1886
      %v1919 = vadd.f32 %v1816, %v1887
      %v1920 = vadd.f32 %v1817, %v1888
      %v1921 = vadd.f32 %v1818, %v1889
      %v1922 = vadd.f32 %v1819, %v1890
      %v1923 = vadd.f32 %v1820, %v1891
      %v1924 = vadd.f32 %v1821, %v1892
      %v1925 = vld [vmem:[%s1822 + $0x1] sm:$0x1]
      %v1926 = vld [vmem:[%s1824 + $0x8] sm:$0xff]
      %v1927 = vld [vmem:[%s1824 + $0x20] sm:$0xff]
      %v1928 = vld [vmem:[%s1824 + $0x38] sm:$0xff]
      %v1929 = vld [vmem:[%s1824 + $0x50] sm:$0xff]
      %v1930 = vld [vmem:[%s1824 + $0x68] sm:$0xff]
      %v1931 = vld [vmem:[%s1824 + $0x80] sm:$0xff]
      %v1932 = vld [vmem:[%s1824 + $0x98] sm:$0xff]
      %v1933 = vld [vmem:[%s1824 + $0xb0] sm:$0xff]
      %v1934 = vld [vmem:[%s1824 + $0xf8] sm:$0xff]
      %v1935 = vld [vmem:[%s1824 + $0x110] sm:$0xff]
      %v1936 = vld [vmem:[%s1824 + $0x128] sm:$0xff]
      %v1937 = vld [vmem:[%s1824 + $0x140] sm:$0xff]
      %v1938 = vld [vmem:[%s1824 + $0x158] sm:$0xff]
      %v1939 = vld [vmem:[%s1824 + $0x170] sm:$0xff]
      %v1940 = vld [vmem:[%s1824 + $0x188] sm:$0xff]
      %v1941 = vld [vmem:[%s1824 + $0x1a0] sm:$0xff]
      %v1942 = vld [vmem:[%s1824 + $0x1e8] sm:$0xff]
      %v1943 = vld [vmem:[%s1824 + $0x200] sm:$0xff]
      %v1944 = vld [vmem:[%s1824 + $0x218] sm:$0xff]
      %v1945 = vld [vmem:[%s1824 + $0x230] sm:$0xff]
      %v1946 = vld [vmem:[%s1824 + $0x248] sm:$0xff]
      %v1947 = vld [vmem:[%s1824 + $0x260] sm:$0xff]
      %v1948 = vld [vmem:[%s1824 + $0x278] sm:$0xff]
      %v1949 = vld [vmem:[%s1824 + $0x290] sm:$0xff]
      %v1950 = vld [vmem:[%s1824 + $0x2d8] sm:$0xff]
      %v1951 = vld [vmem:[%s1824 + $0x2f0] sm:$0xff]
      %v1952 = vld [vmem:[%s1824 + $0x308] sm:$0xff]
      %v1953 = vld [vmem:[%s1824 + $0x320] sm:$0xff]
      %v1954 = vld [vmem:[%s1824 + $0x338] sm:$0xff]
      %v1955 = vld [vmem:[%s1824 + $0x350] sm:$0xff]
      %v1956 = vld [vmem:[%s1824 + $0x368] sm:$0xff]
      %v1957 = vld [vmem:[%s1824 + $0x380] sm:$0xff]
      %v1958 = vlaneseq
      %v1959 = vshrl.u32 %v1958, 7
      %v1960 = vsub.s32 0, %v1959
      %v1961 = vrot.slane %v1925, %v1960
      %v1962 = vmul.f32 %v1926, %v1961
      %v1963 = vmul.f32 %v1927, %v1961
      %v1964 = vmul.f32 %v1928, %v1961
      %v1965 = vmul.f32 %v1929, %v1961
      %v1966 = vmul.f32 %v1930, %v1961
      %v1967 = vmul.f32 %v1931, %v1961
      %v1968 = vmul.f32 %v1932, %v1961
      %v1969 = vmul.f32 %v1933, %v1961
      %v1970 = vmul.f32 %v1934, %v1961
      %v1971 = vmul.f32 %v1935, %v1961
      %v1972 = vmul.f32 %v1936, %v1961
      %v1973 = vmul.f32 %v1937, %v1961
      %v1974 = vmul.f32 %v1938, %v1961
      %v1975 = vmul.f32 %v1939, %v1961
      %v1976 = vmul.f32 %v1940, %v1961
      %v1977 = vmul.f32 %v1941, %v1961
      %v1978 = vmul.f32 %v1942, %v1961
      %v1979 = vmul.f32 %v1943, %v1961
      %v1980 = vmul.f32 %v1944, %v1961
      %v1981 = vmul.f32 %v1945, %v1961
      %v1982 = vmul.f32 %v1946, %v1961
      %v1983 = vmul.f32 %v1947, %v1961
      %v1984 = vmul.f32 %v1948, %v1961
      %v1985 = vmul.f32 %v1949, %v1961
      %v1986 = vmul.f32 %v1950, %v1961
      %v1987 = vmul.f32 %v1951, %v1961
      %v1988 = vmul.f32 %v1952, %v1961
      %v1989 = vmul.f32 %v1953, %v1961
      %v1990 = vmul.f32 %v1954, %v1961
      %v1991 = vmul.f32 %v1955, %v1961
      %v1992 = vmul.f32 %v1956, %v1961
      %v1993 = vmul.f32 %v1957, %v1961
      %v1994 = vadd.f32 %v1893, %v1962
      %v1995 = vadd.f32 %v1894, %v1963
      %v1996 = vadd.f32 %v1895, %v1964
      %v1997 = vadd.f32 %v1896, %v1965
      %v1998 = vadd.f32 %v1897, %v1966
      %v1999 = vadd.f32 %v1898, %v1967
      %v2000 = vadd.f32 %v1899, %v1968
      %v2001 = vadd.f32 %v1900, %v1969
      %v2002 = vadd.f32 %v1901, %v1970
      %v2003 = vadd.f32 %v1902, %v1971
      %v2004 = vadd.f32 %v1903, %v1972
      %v2005 = vadd.f32 %v1904, %v1973
      %v2006 = vadd.f32 %v1905, %v1974
      %v2007 = vadd.f32 %v1906, %v1975
      %v2008 = vadd.f32 %v1907, %v1976
      %v2009 = vadd.f32 %v1908, %v1977
      %v2010 = vadd.f32 %v1909, %v1978
      %v2011 = vadd.f32 %v1910, %v1979
      %v2012 = vadd.f32 %v1911, %v1980
      %v2013 = vadd.f32 %v1912, %v1981
      %v2014 = vadd.f32 %v1913, %v1982
      %v2015 = vadd.f32 %v1914, %v1983
      %v2016 = vadd.f32 %v1915, %v1984
      %v2017 = vadd.f32 %v1916, %v1985
      %v2018 = vadd.f32 %v1917, %v1986
      %v2019 = vadd.f32 %v1918, %v1987
      %v2020 = vadd.f32 %v1919, %v1988
      %v2021 = vadd.f32 %v1920, %v1989
      %v2022 = vadd.f32 %v1921, %v1990
      %v2023 = vadd.f32 %v1922, %v1991
      %v2024 = vadd.f32 %v1923, %v1992
      %v2025 = vadd.f32 %v1924, %v1993
      %v2026 = vld [vmem:[%s1822 + $0x2] sm:$0x1]
      %v2027 = vld [vmem:[%s1824 + $0x9] sm:$0xff]
      %v2028 = vld [vmem:[%s1824 + $0x21] sm:$0xff]
      %v2029 = vld [vmem:[%s1824 + $0x39] sm:$0xff]
      %v2030 = vld [vmem:[%s1824 + $0x51] sm:$0xff]
      %v2031 = vld [vmem:[%s1824 + $0x69] sm:$0xff]
      %v2032 = vld [vmem:[%s1824 + $0x81] sm:$0xff]
      %v2033 = vld [vmem:[%s1824 + $0x99] sm:$0xff]
      %v2034 = vld [vmem:[%s1824 + $0xb1] sm:$0xff]
      %v2035 = vld [vmem:[%s1824 + $0xf9] sm:$0xff]
      %v2036 = vld [vmem:[%s1824 + $0x111] sm:$0xff]
      %v2037 = vld [vmem:[%s1824 + $0x129] sm:$0xff]
      %v2038 = vld [vmem:[%s1824 + $0x141] sm:$0xff]
      %v2039 = vld [vmem:[%s1824 + $0x159] sm:$0xff]
      %v2040 = vld [vmem:[%s1824 + $0x171] sm:$0xff]
      %v2041 = vld [vmem:[%s1824 + $0x189] sm:$0xff]
      %v2042 = vld [vmem:[%s1824 + $0x1a1] sm:$0xff]
      %v2043 = vld [vmem:[%s1824 + $0x1e9] sm:$0xff]
      %v2044 = vld [vmem:[%s1824 + $0x201] sm:$0xff]
      %v2045 = vld [vmem:[%s1824 + $0x219] sm:$0xff]
      %v2046 = vld [vmem:[%s1824 + $0x231] sm:$0xff]
      %v2047 = vld [vmem:[%s1824 + $0x249] sm:$0xff]
      %v2048 = vld [vmem:[%s1824 + $0x261] sm:$0xff]
      %v2049 = vld [vmem:[%s1824 + $0x279] sm:$0xff]
      %v2050 = vld [vmem:[%s1824 + $0x291] sm:$0xff]
      %v2051 = vld [vmem:[%s1824 + $0x2d9] sm:$0xff]
      %v2052 = vld [vmem:[%s1824 + $0x2f1] sm:$0xff]
      %v2053 = vld [vmem:[%s1824 + $0x309] sm:$0xff]
      %v2054 = vld [vmem:[%s1824 + $0x321] sm:$0xff]
      %v2055 = vld [vmem:[%s1824 + $0x339] sm:$0xff]
      %v2056 = vld [vmem:[%s1824 + $0x351] sm:$0xff]
      %v2057 = vld [vmem:[%s1824 + $0x369] sm:$0xff]
      %v2058 = vld [vmem:[%s1824 + $0x381] sm:$0xff]
      %v2059 = vlaneseq
      %v2060 = vshrl.u32 %v2059, 7
      %v2061 = vsub.s32 0, %v2060
      %v2062 = vrot.slane %v2026, %v2061
      %v2063 = vmul.f32 %v2027, %v2062
      %v2064 = vmul.f32 %v2028, %v2062
      %v2065 = vmul.f32 %v2029, %v2062
      %v2066 = vmul.f32 %v2030, %v2062
      %v2067 = vmul.f32 %v2031, %v2062
      %v2068 = vmul.f32 %v2032, %v2062
      %v2069 = vmul.f32 %v2033, %v2062
      %v2070 = vmul.f32 %v2034, %v2062
      %v2071 = vmul.f32 %v2035, %v2062
      %v2072 = vmul.f32 %v2036, %v2062
      %v2073 = vmul.f32 %v2037, %v2062
      %v2074 = vmul.f32 %v2038, %v2062
      %v2075 = vmul.f32 %v2039, %v2062
      %v2076 = vmul.f32 %v2040, %v2062
      %v2077 = vmul.f32 %v2041, %v2062
      %v2078 = vmul.f32 %v2042, %v2062
      %v2079 = vmul.f32 %v2043, %v2062
      %v2080 = vmul.f32 %v2044, %v2062
      %v2081 = vmul.f32 %v2045, %v2062
      %v2082 = vmul.f32 %v2046, %v2062
      %v2083 = vmul.f32 %v2047, %v2062
      %v2084 = vmul.f32 %v2048, %v2062
      %v2085 = vmul.f32 %v2049, %v2062
      %v2086 = vmul.f32 %v2050, %v2062
      %v2087 = vmul.f32 %v2051, %v2062
      %v2088 = vmul.f32 %v2052, %v2062
      %v2089 = vmul.f32 %v2053, %v2062
      %v2090 = vmul.f32 %v2054, %v2062
      %v2091 = vmul.f32 %v2055, %v2062
      %v2092 = vmul.f32 %v2056, %v2062
      %v2093 = vmul.f32 %v2057, %v2062
      %v2094 = vmul.f32 %v2058, %v2062
      %v2095 = vadd.f32 %v1994, %v2063
      %v2096 = vadd.f32 %v1995, %v2064
      %v2097 = vadd.f32 %v1996, %v2065
      %v2098 = vadd.f32 %v1997, %v2066
      %v2099 = vadd.f32 %v1998, %v2067
      %v2100 = vadd.f32 %v1999, %v2068
      %v2101 = vadd.f32 %v2000, %v2069
      %v2102 = vadd.f32 %v2001, %v2070
      %v2103 = vadd.f32 %v2002, %v2071
      %v2104 = vadd.f32 %v2003, %v2072
      %v2105 = vadd.f32 %v2004, %v2073
      %v2106 = vadd.f32 %v2005, %v2074
      %v2107 = vadd.f32 %v2006, %v2075
      %v2108 = vadd.f32 %v2007, %v2076
      %v2109 = vadd.f32 %v2008, %v2077
      %v2110 = vadd.f32 %v2009, %v2078
      %v2111 = vadd.f32 %v2010, %v2079
      %v2112 = vadd.f32 %v2011, %v2080
      %v2113 = vadd.f32 %v2012, %v2081
      %v2114 = vadd.f32 %v2013, %v2082
      %v2115 = vadd.f32 %v2014, %v2083
      %v2116 = vadd.f32 %v2015, %v2084
      %v2117 = vadd.f32 %v2016, %v2085
      %v2118 = vadd.f32 %v2017, %v2086
      %v2119 = vadd.f32 %v2018, %v2087
      %v2120 = vadd.f32 %v2019, %v2088
      %v2121 = vadd.f32 %v2020, %v2089
      %v2122 = vadd.f32 %v2021, %v2090
      %v2123 = vadd.f32 %v2022, %v2091
      %v2124 = vadd.f32 %v2023, %v2092
      %v2125 = vadd.f32 %v2024, %v2093
      %v2126 = vadd.f32 %v2025, %v2094
      %s2127 = scalar_lea.vmem %s2, 16
      %v2128 = vld [vmem:[%s2127] sm:$0x1]
      %v2129 = vld [vmem:[%s876 + $0x7] sm:$0xff]
      %v2130 = vld [vmem:[%s876 + $0x1f] sm:$0xff]
      %v2131 = vld [vmem:[%s876 + $0x37] sm:$0xff]
      %v2132 = vld [vmem:[%s876 + $0x4f] sm:$0xff]
      %v2133 = vld [vmem:[%s876 + $0x67] sm:$0xff]
      %v2134 = vld [vmem:[%s876 + $0x7f] sm:$0xff]
      %v2135 = vld [vmem:[%s876 + $0x97] sm:$0xff]
      %v2136 = vld [vmem:[%s876 + $0xaf] sm:$0xff]
      %v2137 = vld [vmem:[%s876 + $0xf7] sm:$0xff]
      %v2138 = vld [vmem:[%s876 + $0x10f] sm:$0xff]
      %v2139 = vld [vmem:[%s876 + $0x127] sm:$0xff]
      %v2140 = vld [vmem:[%s876 + $0x13f] sm:$0xff]
      %v2141 = vld [vmem:[%s876 + $0x157] sm:$0xff]
      %v2142 = vld [vmem:[%s876 + $0x16f] sm:$0xff]
      %v2143 = vld [vmem:[%s876 + $0x187] sm:$0xff]
      %v2144 = vld [vmem:[%s876 + $0x19f] sm:$0xff]
      %v2145 = vld [vmem:[%s876 + $0x1e7] sm:$0xff]
      %v2146 = vld [vmem:[%s876 + $0x1ff] sm:$0xff]
      %v2147 = vld [vmem:[%s876 + $0x217] sm:$0xff]
      %v2148 = vld [vmem:[%s876 + $0x22f] sm:$0xff]
      %v2149 = vld [vmem:[%s876 + $0x247] sm:$0xff]
      %v2150 = vld [vmem:[%s876 + $0x25f] sm:$0xff]
      %v2151 = vld [vmem:[%s876 + $0x277] sm:$0xff]
      %v2152 = vld [vmem:[%s876 + $0x28f] sm:$0xff]
      %v2153 = vld [vmem:[%s876 + $0x2d7] sm:$0xff]
      %v2154 = vld [vmem:[%s876 + $0x2ef] sm:$0xff]
      %v2155 = vld [vmem:[%s876 + $0x307] sm:$0xff]
      %v2156 = vld [vmem:[%s876 + $0x31f] sm:$0xff]
      %v2157 = vld [vmem:[%s876 + $0x337] sm:$0xff]
      %v2158 = vld [vmem:[%s876 + $0x34f] sm:$0xff]
      %v2159 = vld [vmem:[%s876 + $0x367] sm:$0xff]
      %v2160 = vld [vmem:[%s876 + $0x37f] sm:$0xff]
      %v2161 = vlaneseq
      %v2162 = vshrl.u32 %v2161, 7
      %v2163 = vsub.s32 0, %v2162
      %v2164 = vrot.slane %v2128, %v2163
      %v2165 = vmul.f32 %v2129, %v2164
      %v2166 = vmul.f32 %v2130, %v2164
      %v2167 = vmul.f32 %v2131, %v2164
      %v2168 = vmul.f32 %v2132, %v2164
      %v2169 = vmul.f32 %v2133, %v2164
      %v2170 = vmul.f32 %v2134, %v2164
      %v2171 = vmul.f32 %v2135, %v2164
      %v2172 = vmul.f32 %v2136, %v2164
      %v2173 = vmul.f32 %v2137, %v2164
      %v2174 = vmul.f32 %v2138, %v2164
      %v2175 = vmul.f32 %v2139, %v2164
      %v2176 = vmul.f32 %v2140, %v2164
      %v2177 = vmul.f32 %v2141, %v2164
      %v2178 = vmul.f32 %v2142, %v2164
      %v2179 = vmul.f32 %v2143, %v2164
      %v2180 = vmul.f32 %v2144, %v2164
      %v2181 = vmul.f32 %v2145, %v2164
      %v2182 = vmul.f32 %v2146, %v2164
      %v2183 = vmul.f32 %v2147, %v2164
      %v2184 = vmul.f32 %v2148, %v2164
      %v2185 = vmul.f32 %v2149, %v2164
      %v2186 = vmul.f32 %v2150, %v2164
      %v2187 = vmul.f32 %v2151, %v2164
      %v2188 = vmul.f32 %v2152, %v2164
      %v2189 = vmul.f32 %v2153, %v2164
      %v2190 = vmul.f32 %v2154, %v2164
      %v2191 = vmul.f32 %v2155, %v2164
      %v2192 = vmul.f32 %v2156, %v2164
      %v2193 = vmul.f32 %v2157, %v2164
      %v2194 = vmul.f32 %v2158, %v2164
      %v2195 = vmul.f32 %v2159, %v2164
      %v2196 = vmul.f32 %v2160, %v2164
      %v2197 = vadd.f32 %v2095, %v2165
      %v2198 = vadd.f32 %v2096, %v2166
      %v2199 = vadd.f32 %v2097, %v2167
      %v2200 = vadd.f32 %v2098, %v2168
      %v2201 = vadd.f32 %v2099, %v2169
      %v2202 = vadd.f32 %v2100, %v2170
      %v2203 = vadd.f32 %v2101, %v2171
      %v2204 = vadd.f32 %v2102, %v2172
      %v2205 = vadd.f32 %v2103, %v2173
      %v2206 = vadd.f32 %v2104, %v2174
      %v2207 = vadd.f32 %v2105, %v2175
      %v2208 = vadd.f32 %v2106, %v2176
      %v2209 = vadd.f32 %v2107, %v2177
      %v2210 = vadd.f32 %v2108, %v2178
      %v2211 = vadd.f32 %v2109, %v2179
      %v2212 = vadd.f32 %v2110, %v2180
      %v2213 = vadd.f32 %v2111, %v2181
      %v2214 = vadd.f32 %v2112, %v2182
      %v2215 = vadd.f32 %v2113, %v2183
      %v2216 = vadd.f32 %v2114, %v2184
      %v2217 = vadd.f32 %v2115, %v2185
      %v2218 = vadd.f32 %v2116, %v2186
      %v2219 = vadd.f32 %v2117, %v2187
      %v2220 = vadd.f32 %v2118, %v2188
      %v2221 = vadd.f32 %v2119, %v2189
      %v2222 = vadd.f32 %v2120, %v2190
      %v2223 = vadd.f32 %v2121, %v2191
      %v2224 = vadd.f32 %v2122, %v2192
      %v2225 = vadd.f32 %v2123, %v2193
      %v2226 = vadd.f32 %v2124, %v2194
      %v2227 = vadd.f32 %v2125, %v2195
      %v2228 = vadd.f32 %v2126, %v2196
      %v2229 = vld [vmem:[%s2127 + $0x1] sm:$0x1]
      %v2230 = vld [vmem:[%s876 + $0x8] sm:$0xff]
      %v2231 = vld [vmem:[%s876 + $0x20] sm:$0xff]
      %v2232 = vld [vmem:[%s876 + $0x38] sm:$0xff]
      %v2233 = vld [vmem:[%s876 + $0x50] sm:$0xff]
      %v2234 = vld [vmem:[%s876 + $0x68] sm:$0xff]
      %v2235 = vld [vmem:[%s876 + $0x80] sm:$0xff]
      %v2236 = vld [vmem:[%s876 + $0x98] sm:$0xff]
      %v2237 = vld [vmem:[%s876 + $0xb0] sm:$0xff]
      %v2238 = vld [vmem:[%s876 + $0xf8] sm:$0xff]
      %v2239 = vld [vmem:[%s876 + $0x110] sm:$0xff]
      %v2240 = vld [vmem:[%s876 + $0x128] sm:$0xff]
      %v2241 = vld [vmem:[%s876 + $0x140] sm:$0xff]
      %v2242 = vld [vmem:[%s876 + $0x158] sm:$0xff]
      %v2243 = vld [vmem:[%s876 + $0x170] sm:$0xff]
      %v2244 = vld [vmem:[%s876 + $0x188] sm:$0xff]
      %v2245 = vld [vmem:[%s876 + $0x1a0] sm:$0xff]
      %v2246 = vld [vmem:[%s876 + $0x1e8] sm:$0xff]
      %v2247 = vld [vmem:[%s876 + $0x200] sm:$0xff]
      %v2248 = vld [vmem:[%s876 + $0x218] sm:$0xff]
      %v2249 = vld [vmem:[%s876 + $0x230] sm:$0xff]
      %v2250 = vld [vmem:[%s876 + $0x248] sm:$0xff]
      %v2251 = vld [vmem:[%s876 + $0x260] sm:$0xff]
      %v2252 = vld [vmem:[%s876 + $0x278] sm:$0xff]
      %v2253 = vld [vmem:[%s876 + $0x290] sm:$0xff]
      %v2254 = vld [vmem:[%s876 + $0x2d8] sm:$0xff]
      %v2255 = vld [vmem:[%s876 + $0x2f0] sm:$0xff]
      %v2256 = vld [vmem:[%s876 + $0x308] sm:$0xff]
      %v2257 = vld [vmem:[%s876 + $0x320] sm:$0xff]
      %v2258 = vld [vmem:[%s876 + $0x338] sm:$0xff]
      %v2259 = vld [vmem:[%s876 + $0x350] sm:$0xff]
      %v2260 = vld [vmem:[%s876 + $0x368] sm:$0xff]
      %v2261 = vld [vmem:[%s876 + $0x380] sm:$0xff]
      %v2262 = vlaneseq
      %v2263 = vshrl.u32 %v2262, 7
      %v2264 = vsub.s32 0, %v2263
      %v2265 = vrot.slane %v2229, %v2264
      %v2266 = vmul.f32 %v2230, %v2265
      %v2267 = vmul.f32 %v2231, %v2265
      %v2268 = vmul.f32 %v2232, %v2265
      %v2269 = vmul.f32 %v2233, %v2265
      %v2270 = vmul.f32 %v2234, %v2265
      %v2271 = vmul.f32 %v2235, %v2265
      %v2272 = vmul.f32 %v2236, %v2265
      %v2273 = vmul.f32 %v2237, %v2265
      %v2274 = vmul.f32 %v2238, %v2265
      %v2275 = vmul.f32 %v2239, %v2265
      %v2276 = vmul.f32 %v2240, %v2265
      %v2277 = vmul.f32 %v2241, %v2265
      %v2278 = vmul.f32 %v2242, %v2265
      %v2279 = vmul.f32 %v2243, %v2265
      %v2280 = vmul.f32 %v2244, %v2265
      %v2281 = vmul.f32 %v2245, %v2265
      %v2282 = vmul.f32 %v2246, %v2265
      %v2283 = vmul.f32 %v2247, %v2265
      %v2284 = vmul.f32 %v2248, %v2265
      %v2285 = vmul.f32 %v2249, %v2265
      %v2286 = vmul.f32 %v2250, %v2265
      %v2287 = vmul.f32 %v2251, %v2265
      %v2288 = vmul.f32 %v2252, %v2265
      %v2289 = vmul.f32 %v2253, %v2265
      %v2290 = vmul.f32 %v2254, %v2265
      %v2291 = vmul.f32 %v2255, %v2265
      %v2292 = vmul.f32 %v2256, %v2265
      %v2293 = vmul.f32 %v2257, %v2265
      %v2294 = vmul.f32 %v2258, %v2265
      %v2295 = vmul.f32 %v2259, %v2265
      %v2296 = vmul.f32 %v2260, %v2265
      %v2297 = vmul.f32 %v2261, %v2265
      %v2298 = vadd.f32 %v2197, %v2266
      %v2299 = vadd.f32 %v2198, %v2267
      %v2300 = vadd.f32 %v2199, %v2268
      %v2301 = vadd.f32 %v2200, %v2269
      %v2302 = vadd.f32 %v2201, %v2270
      %v2303 = vadd.f32 %v2202, %v2271
      %v2304 = vadd.f32 %v2203, %v2272
      %v2305 = vadd.f32 %v2204, %v2273
      %v2306 = vadd.f32 %v2205, %v2274
      %v2307 = vadd.f32 %v2206, %v2275
      %v2308 = vadd.f32 %v2207, %v2276
      %v2309 = vadd.f32 %v2208, %v2277
      %v2310 = vadd.f32 %v2209, %v2278
      %v2311 = vadd.f32 %v2210, %v2279
      %v2312 = vadd.f32 %v2211, %v2280
      %v2313 = vadd.f32 %v2212, %v2281
      %v2314 = vadd.f32 %v2213, %v2282
      %v2315 = vadd.f32 %v2214, %v2283
      %v2316 = vadd.f32 %v2215, %v2284
      %v2317 = vadd.f32 %v2216, %v2285
      %v2318 = vadd.f32 %v2217, %v2286
      %v2319 = vadd.f32 %v2218, %v2287
      %v2320 = vadd.f32 %v2219, %v2288
      %v2321 = vadd.f32 %v2220, %v2289
      %v2322 = vadd.f32 %v2221, %v2290
      %v2323 = vadd.f32 %v2222, %v2291
      %v2324 = vadd.f32 %v2223, %v2292
      %v2325 = vadd.f32 %v2224, %v2293
      %v2326 = vadd.f32 %v2225, %v2294
      %v2327 = vadd.f32 %v2226, %v2295
      %v2328 = vadd.f32 %v2227, %v2296
      %v2329 = vadd.f32 %v2228, %v2297
      %v2330 = vld [vmem:[%s2127 + $0x2] sm:$0x1]
      %v2331 = vld [vmem:[%s876 + $0x9] sm:$0xff]
      %v2332 = vld [vmem:[%s876 + $0x21] sm:$0xff]
      %v2333 = vld [vmem:[%s876 + $0x39] sm:$0xff]
      %v2334 = vld [vmem:[%s876 + $0x51] sm:$0xff]
      %v2335 = vld [vmem:[%s876 + $0x69] sm:$0xff]
      %v2336 = vld [vmem:[%s876 + $0x81] sm:$0xff]
      %v2337 = vld [vmem:[%s876 + $0x99] sm:$0xff]
      %v2338 = vld [vmem:[%s876 + $0xb1] sm:$0xff]
      %v2339 = vld [vmem:[%s876 + $0xf9] sm:$0xff]
      %v2340 = vld [vmem:[%s876 + $0x111] sm:$0xff]
      %v2341 = vld [vmem:[%s876 + $0x129] sm:$0xff]
      %v2342 = vld [vmem:[%s876 + $0x141] sm:$0xff]
      %v2343 = vld [vmem:[%s876 + $0x159] sm:$0xff]
      %v2344 = vld [vmem:[%s876 + $0x171] sm:$0xff]
      %v2345 = vld [vmem:[%s876 + $0x189] sm:$0xff]
      %v2346 = vld [vmem:[%s876 + $0x1a1] sm:$0xff]
      %v2347 = vld [vmem:[%s876 + $0x1e9] sm:$0xff]
      %v2348 = vld [vmem:[%s876 + $0x201] sm:$0xff]
      %v2349 = vld [vmem:[%s876 + $0x219] sm:$0xff]
      %v2350 = vld [vmem:[%s876 + $0x231] sm:$0xff]
      %v2351 = vld [vmem:[%s876 + $0x249] sm:$0xff]
      %v2352 = vld [vmem:[%s876 + $0x261] sm:$0xff]
      %v2353 = vld [vmem:[%s876 + $0x279] sm:$0xff]
      %v2354 = vld [vmem:[%s876 + $0x291] sm:$0xff]
      %v2355 = vld [vmem:[%s876 + $0x2d9] sm:$0xff]
      %v2356 = vld [vmem:[%s876 + $0x2f1] sm:$0xff]
      %v2357 = vld [vmem:[%s876 + $0x309] sm:$0xff]
      %v2358 = vld [vmem:[%s876 + $0x321] sm:$0xff]
      %v2359 = vld [vmem:[%s876 + $0x339] sm:$0xff]
      %v2360 = vld [vmem:[%s876 + $0x351] sm:$0xff]
      %v2361 = vld [vmem:[%s876 + $0x369] sm:$0xff]
      %v2362 = vld [vmem:[%s876 + $0x381] sm:$0xff]
      %v2363 = vlaneseq
      %v2364 = vshrl.u32 %v2363, 7
      %v2365 = vsub.s32 0, %v2364
      %v2366 = vrot.slane %v2330, %v2365
      %v2367 = vmul.f32 %v2331, %v2366
      %v2368 = vmul.f32 %v2332, %v2366
      %v2369 = vmul.f32 %v2333, %v2366
      %v2370 = vmul.f32 %v2334, %v2366
      %v2371 = vmul.f32 %v2335, %v2366
      %v2372 = vmul.f32 %v2336, %v2366
      %v2373 = vmul.f32 %v2337, %v2366
      %v2374 = vmul.f32 %v2338, %v2366
      %v2375 = vmul.f32 %v2339, %v2366
      %v2376 = vmul.f32 %v2340, %v2366
      %v2377 = vmul.f32 %v2341, %v2366
      %v2378 = vmul.f32 %v2342, %v2366
      %v2379 = vmul.f32 %v2343, %v2366
      %v2380 = vmul.f32 %v2344, %v2366
      %v2381 = vmul.f32 %v2345, %v2366
      %v2382 = vmul.f32 %v2346, %v2366
      %v2383 = vmul.f32 %v2347, %v2366
      %v2384 = vmul.f32 %v2348, %v2366
      %v2385 = vmul.f32 %v2349, %v2366
      %v2386 = vmul.f32 %v2350, %v2366
      %v2387 = vmul.f32 %v2351, %v2366
      %v2388 = vmul.f32 %v2352, %v2366
      %v2389 = vmul.f32 %v2353, %v2366
      %v2390 = vmul.f32 %v2354, %v2366
      %v2391 = vmul.f32 %v2355, %v2366
      %v2392 = vmul.f32 %v2356, %v2366
      %v2393 = vmul.f32 %v2357, %v2366
      %v2394 = vmul.f32 %v2358, %v2366
      %v2395 = vmul.f32 %v2359, %v2366
      %v2396 = vmul.f32 %v2360, %v2366
      %v2397 = vmul.f32 %v2361, %v2366
      %v2398 = vmul.f32 %v2362, %v2366
      %v2399 = vadd.f32 %v2298, %v2367
      %v2400 = vadd.f32 %v2299, %v2368
      %v2401 = vadd.f32 %v2300, %v2369
      %v2402 = vadd.f32 %v2301, %v2370
      %v2403 = vadd.f32 %v2302, %v2371
      %v2404 = vadd.f32 %v2303, %v2372
      %v2405 = vadd.f32 %v2304, %v2373
      %v2406 = vadd.f32 %v2305, %v2374
      %v2407 = vadd.f32 %v2306, %v2375
      %v2408 = vadd.f32 %v2307, %v2376
      %v2409 = vadd.f32 %v2308, %v2377
      %v2410 = vadd.f32 %v2309, %v2378
      %v2411 = vadd.f32 %v2310, %v2379
      %v2412 = vadd.f32 %v2311, %v2380
      %v2413 = vadd.f32 %v2312, %v2381
      %v2414 = vadd.f32 %v2313, %v2382
      %v2415 = vadd.f32 %v2314, %v2383
      %v2416 = vadd.f32 %v2315, %v2384
      %v2417 = vadd.f32 %v2316, %v2385
      %v2418 = vadd.f32 %v2317, %v2386
      %v2419 = vadd.f32 %v2318, %v2387
      %v2420 = vadd.f32 %v2319, %v2388
      %v2421 = vadd.f32 %v2320, %v2389
      %v2422 = vadd.f32 %v2321, %v2390
      %v2423 = vadd.f32 %v2322, %v2391
      %v2424 = vadd.f32 %v2323, %v2392
      %v2425 = vadd.f32 %v2324, %v2393
      %v2426 = vadd.f32 %v2325, %v2394
      %v2427 = vadd.f32 %v2326, %v2395
      %v2428 = vadd.f32 %v2327, %v2396
      %v2429 = vadd.f32 %v2328, %v2397
      %v2430 = vadd.f32 %v2329, %v2398
      %s2431 = scalar_lea.vmem %s2, 20
      %v2432 = vld [vmem:[%s2431] sm:$0x1]
      %s2433 = scalar_lea.vmem [#allocation2], 288
      %v2434 = vld [vmem:[%s2433 + $0x7] sm:$0xff]
      %v2435 = vld [vmem:[%s2433 + $0x1f] sm:$0xff]
      %v2436 = vld [vmem:[%s2433 + $0x37] sm:$0xff]
      %v2437 = vld [vmem:[%s2433 + $0x4f] sm:$0xff]
      %v2438 = vld [vmem:[%s2433 + $0x67] sm:$0xff]
      %v2439 = vld [vmem:[%s2433 + $0x7f] sm:$0xff]
      %v2440 = vld [vmem:[%s2433 + $0x97] sm:$0xff]
      %v2441 = vld [vmem:[%s2433 + $0xaf] sm:$0xff]
      %v2442 = vld [vmem:[%s2433 + $0xf7] sm:$0xff]
      %v2443 = vld [vmem:[%s2433 + $0x10f] sm:$0xff]
      %v2444 = vld [vmem:[%s2433 + $0x127] sm:$0xff]
      %v2445 = vld [vmem:[%s2433 + $0x13f] sm:$0xff]
      %v2446 = vld [vmem:[%s2433 + $0x157] sm:$0xff]
      %v2447 = vld [vmem:[%s2433 + $0x16f] sm:$0xff]
      %v2448 = vld [vmem:[%s2433 + $0x187] sm:$0xff]
      %v2449 = vld [vmem:[%s2433 + $0x19f] sm:$0xff]
      %v2450 = vld [vmem:[%s2433 + $0x1e7] sm:$0xff]
      %v2451 = vld [vmem:[%s2433 + $0x1ff] sm:$0xff]
      %v2452 = vld [vmem:[%s2433 + $0x217] sm:$0xff]
      %v2453 = vld [vmem:[%s2433 + $0x22f] sm:$0xff]
      %v2454 = vld [vmem:[%s2433 + $0x247] sm:$0xff]
      %v2455 = vld [vmem:[%s2433 + $0x25f] sm:$0xff]
      %v2456 = vld [vmem:[%s2433 + $0x277] sm:$0xff]
      %v2457 = vld [vmem:[%s2433 + $0x28f] sm:$0xff]
      %v2458 = vld [vmem:[%s2433 + $0x2d7] sm:$0xff]
      %v2459 = vld [vmem:[%s2433 + $0x2ef] sm:$0xff]
      %v2460 = vld [vmem:[%s2433 + $0x307] sm:$0xff]
      %v2461 = vld [vmem:[%s2433 + $0x31f] sm:$0xff]
      %v2462 = vld [vmem:[%s2433 + $0x337] sm:$0xff]
      %v2463 = vld [vmem:[%s2433 + $0x34f] sm:$0xff]
      %v2464 = vld [vmem:[%s2433 + $0x367] sm:$0xff]
      %v2465 = vld [vmem:[%s2433 + $0x37f] sm:$0xff]
      %v2466 = vlaneseq
      %v2467 = vshrl.u32 %v2466, 7
      %v2468 = vsub.s32 0, %v2467
      %v2469 = vrot.slane %v2432, %v2468
      %v2470 = vmul.f32 %v2434, %v2469
      %v2471 = vmul.f32 %v2435, %v2469
      %v2472 = vmul.f32 %v2436, %v2469
      %v2473 = vmul.f32 %v2437, %v2469
      %v2474 = vmul.f32 %v2438, %v2469
      %v2475 = vmul.f32 %v2439, %v2469
      %v2476 = vmul.f32 %v2440, %v2469
      %v2477 = vmul.f32 %v2441, %v2469
      %v2478 = vmul.f32 %v2442, %v2469
      %v2479 = vmul.f32 %v2443, %v2469
      %v2480 = vmul.f32 %v2444, %v2469
      %v2481 = vmul.f32 %v2445, %v2469
      %v2482 = vmul.f32 %v2446, %v2469
      %v2483 = vmul.f32 %v2447, %v2469
      %v2484 = vmul.f32 %v2448, %v2469
      %v2485 = vmul.f32 %v2449, %v2469
      %v2486 = vmul.f32 %v2450, %v2469
      %v2487 = vmul.f32 %v2451, %v2469
      %v2488 = vmul.f32 %v2452, %v2469
      %v2489 = vmul.f32 %v2453, %v2469
      %v2490 = vmul.f32 %v2454, %v2469
      %v2491 = vmul.f32 %v2455, %v2469
      %v2492 = vmul.f32 %v2456, %v2469
      %v2493 = vmul.f32 %v2457, %v2469
      %v2494 = vmul.f32 %v2458, %v2469
      %v2495 = vmul.f32 %v2459, %v2469
      %v2496 = vmul.f32 %v2460, %v2469
      %v2497 = vmul.f32 %v2461, %v2469
      %v2498 = vmul.f32 %v2462, %v2469
      %v2499 = vmul.f32 %v2463, %v2469
      %v2500 = vmul.f32 %v2464, %v2469
      %v2501 = vmul.f32 %v2465, %v2469
      %v2502 = vadd.f32 %v2399, %v2470
      %v2503 = vadd.f32 %v2400, %v2471
      %v2504 = vadd.f32 %v2401, %v2472
      %v2505 = vadd.f32 %v2402, %v2473
      %v2506 = vadd.f32 %v2403, %v2474
      %v2507 = vadd.f32 %v2404, %v2475
      %v2508 = vadd.f32 %v2405, %v2476
      %v2509 = vadd.f32 %v2406, %v2477
      %v2510 = vadd.f32 %v2407, %v2478
      %v2511 = vadd.f32 %v2408, %v2479
      %v2512 = vadd.f32 %v2409, %v2480
      %v2513 = vadd.f32 %v2410, %v2481
      %v2514 = vadd.f32 %v2411, %v2482
      %v2515 = vadd.f32 %v2412, %v2483
      %v2516 = vadd.f32 %v2413, %v2484
      %v2517 = vadd.f32 %v2414, %v2485
      %v2518 = vadd.f32 %v2415, %v2486
      %v2519 = vadd.f32 %v2416, %v2487
      %v2520 = vadd.f32 %v2417, %v2488
      %v2521 = vadd.f32 %v2418, %v2489
      %v2522 = vadd.f32 %v2419, %v2490
      %v2523 = vadd.f32 %v2420, %v2491
      %v2524 = vadd.f32 %v2421, %v2492
      %v2525 = vadd.f32 %v2422, %v2493
      %v2526 = vadd.f32 %v2423, %v2494
      %v2527 = vadd.f32 %v2424, %v2495
      %v2528 = vadd.f32 %v2425, %v2496
      %v2529 = vadd.f32 %v2426, %v2497
      %v2530 = vadd.f32 %v2427, %v2498
      %v2531 = vadd.f32 %v2428, %v2499
      %v2532 = vadd.f32 %v2429, %v2500
      %v2533 = vadd.f32 %v2430, %v2501
      %v2534 = vld [vmem:[%s2431 + $0x1] sm:$0x1]
      %v2535 = vld [vmem:[%s2433 + $0x8] sm:$0xff]
      %v2536 = vld [vmem:[%s2433 + $0x20] sm:$0xff]
      %v2537 = vld [vmem:[%s2433 + $0x38] sm:$0xff]
      %v2538 = vld [vmem:[%s2433 + $0x50] sm:$0xff]
      %v2539 = vld [vmem:[%s2433 + $0x68] sm:$0xff]
      %v2540 = vld [vmem:[%s2433 + $0x80] sm:$0xff]
      %v2541 = vld [vmem:[%s2433 + $0x98] sm:$0xff]
      %v2542 = vld [vmem:[%s2433 + $0xb0] sm:$0xff]
      %v2543 = vld [vmem:[%s2433 + $0xf8] sm:$0xff]
      %v2544 = vld [vmem:[%s2433 + $0x110] sm:$0xff]
      %v2545 = vld [vmem:[%s2433 + $0x128] sm:$0xff]
      %v2546 = vld [vmem:[%s2433 + $0x140] sm:$0xff]
      %v2547 = vld [vmem:[%s2433 + $0x158] sm:$0xff]
      %v2548 = vld [vmem:[%s2433 + $0x170] sm:$0xff]
      %v2549 = vld [vmem:[%s2433 + $0x188] sm:$0xff]
      %v2550 = vld [vmem:[%s2433 + $0x1a0] sm:$0xff]
      %v2551 = vld [vmem:[%s2433 + $0x1e8] sm:$0xff]
      %v2552 = vld [vmem:[%s2433 + $0x200] sm:$0xff]
      %v2553 = vld [vmem:[%s2433 + $0x218] sm:$0xff]
      %v2554 = vld [vmem:[%s2433 + $0x230] sm:$0xff]
      %v2555 = vld [vmem:[%s2433 + $0x248] sm:$0xff]
      %v2556 = vld [vmem:[%s2433 + $0x260] sm:$0xff]
      %v2557 = vld [vmem:[%s2433 + $0x278] sm:$0xff]
      %v2558 = vld [vmem:[%s2433 + $0x290] sm:$0xff]
      %v2559 = vld [vmem:[%s2433 + $0x2d8] sm:$0xff]
      %v2560 = vld [vmem:[%s2433 + $0x2f0] sm:$0xff]
      %v2561 = vld [vmem:[%s2433 + $0x308] sm:$0xff]
      %v2562 = vld [vmem:[%s2433 + $0x320] sm:$0xff]
      %v2563 = vld [vmem:[%s2433 + $0x338] sm:$0xff]
      %v2564 = vld [vmem:[%s2433 + $0x350] sm:$0xff]
      %v2565 = vld [vmem:[%s2433 + $0x368] sm:$0xff]
      %v2566 = vld [vmem:[%s2433 + $0x380] sm:$0xff]
      %v2567 = vlaneseq
      %v2568 = vshrl.u32 %v2567, 7
      %v2569 = vsub.s32 0, %v2568
      %v2570 = vrot.slane %v2534, %v2569
      %v2571 = vmul.f32 %v2535, %v2570
      %v2572 = vmul.f32 %v2536, %v2570
      %v2573 = vmul.f32 %v2537, %v2570
      %v2574 = vmul.f32 %v2538, %v2570
      %v2575 = vmul.f32 %v2539, %v2570
      %v2576 = vmul.f32 %v2540, %v2570
      %v2577 = vmul.f32 %v2541, %v2570
      %v2578 = vmul.f32 %v2542, %v2570
      %v2579 = vmul.f32 %v2543, %v2570
      %v2580 = vmul.f32 %v2544, %v2570
      %v2581 = vmul.f32 %v2545, %v2570
      %v2582 = vmul.f32 %v2546, %v2570
      %v2583 = vmul.f32 %v2547, %v2570
      %v2584 = vmul.f32 %v2548, %v2570
      %v2585 = vmul.f32 %v2549, %v2570
      %v2586 = vmul.f32 %v2550, %v2570
      %v2587 = vmul.f32 %v2551, %v2570
      %v2588 = vmul.f32 %v2552, %v2570
      %v2589 = vmul.f32 %v2553, %v2570
      %v2590 = vmul.f32 %v2554, %v2570
      %v2591 = vmul.f32 %v2555, %v2570
      %v2592 = vmul.f32 %v2556, %v2570
      %v2593 = vmul.f32 %v2557, %v2570
      %v2594 = vmul.f32 %v2558, %v2570
      %v2595 = vmul.f32 %v2559, %v2570
      %v2596 = vmul.f32 %v2560, %v2570
      %v2597 = vmul.f32 %v2561, %v2570
      %v2598 = vmul.f32 %v2562, %v2570
      %v2599 = vmul.f32 %v2563, %v2570
      %v2600 = vmul.f32 %v2564, %v2570
      %v2601 = vmul.f32 %v2565, %v2570
      %v2602 = vmul.f32 %v2566, %v2570
      %v2603 = vadd.f32 %v2502, %v2571
      %v2604 = vadd.f32 %v2503, %v2572
      %v2605 = vadd.f32 %v2504, %v2573
      %v2606 = vadd.f32 %v2505, %v2574
      %v2607 = vadd.f32 %v2506, %v2575
      %v2608 = vadd.f32 %v2507, %v2576
      %v2609 = vadd.f32 %v2508, %v2577
      %v2610 = vadd.f32 %v2509, %v2578
      %v2611 = vadd.f32 %v2510, %v2579
      %v2612 = vadd.f32 %v2511, %v2580
      %v2613 = vadd.f32 %v2512, %v2581
      %v2614 = vadd.f32 %v2513, %v2582
      %v2615 = vadd.f32 %v2514, %v2583
      %v2616 = vadd.f32 %v2515, %v2584
      %v2617 = vadd.f32 %v2516, %v2585
      %v2618 = vadd.f32 %v2517, %v2586
      %v2619 = vadd.f32 %v2518, %v2587
      %v2620 = vadd.f32 %v2519, %v2588
      %v2621 = vadd.f32 %v2520, %v2589
      %v2622 = vadd.f32 %v2521, %v2590
      %v2623 = vadd.f32 %v2522, %v2591
      %v2624 = vadd.f32 %v2523, %v2592
      %v2625 = vadd.f32 %v2524, %v2593
      %v2626 = vadd.f32 %v2525, %v2594
      %v2627 = vadd.f32 %v2526, %v2595
      %v2628 = vadd.f32 %v2527, %v2596
      %v2629 = vadd.f32 %v2528, %v2597
      %v2630 = vadd.f32 %v2529, %v2598
      %v2631 = vadd.f32 %v2530, %v2599
      %v2632 = vadd.f32 %v2531, %v2600
      %v2633 = vadd.f32 %v2532, %v2601
      %v2634 = vadd.f32 %v2533, %v2602
      %v2635 = vld [vmem:[%s2431 + $0x2] sm:$0x1]
      %v2636 = vld [vmem:[%s2433 + $0x9] sm:$0xff]
      %v2637 = vld [vmem:[%s2433 + $0x21] sm:$0xff]
      %v2638 = vld [vmem:[%s2433 + $0x39] sm:$0xff]
      %v2639 = vld [vmem:[%s2433 + $0x51] sm:$0xff]
      %v2640 = vld [vmem:[%s2433 + $0x69] sm:$0xff]
      %v2641 = vld [vmem:[%s2433 + $0x81] sm:$0xff]
      %v2642 = vld [vmem:[%s2433 + $0x99] sm:$0xff]
      %v2643 = vld [vmem:[%s2433 + $0xb1] sm:$0xff]
      %v2644 = vld [vmem:[%s2433 + $0xf9] sm:$0xff]
      %v2645 = vld [vmem:[%s2433 + $0x111] sm:$0xff]
      %v2646 = vld [vmem:[%s2433 + $0x129] sm:$0xff]
      %v2647 = vld [vmem:[%s2433 + $0x141] sm:$0xff]
      %v2648 = vld [vmem:[%s2433 + $0x159] sm:$0xff]
      %v2649 = vld [vmem:[%s2433 + $0x171] sm:$0xff]
      %v2650 = vld [vmem:[%s2433 + $0x189] sm:$0xff]
      %v2651 = vld [vmem:[%s2433 + $0x1a1] sm:$0xff]
      %v2652 = vld [vmem:[%s2433 + $0x1e9] sm:$0xff]
      %v2653 = vld [vmem:[%s2433 + $0x201] sm:$0xff]
      %v2654 = vld [vmem:[%s2433 + $0x219] sm:$0xff]
      %v2655 = vld [vmem:[%s2433 + $0x231] sm:$0xff]
      %v2656 = vld [vmem:[%s2433 + $0x249] sm:$0xff]
      %v2657 = vld [vmem:[%s2433 + $0x261] sm:$0xff]
      %v2658 = vld [vmem:[%s2433 + $0x279] sm:$0xff]
      %v2659 = vld [vmem:[%s2433 + $0x291] sm:$0xff]
      %v2660 = vld [vmem:[%s2433 + $0x2d9] sm:$0xff]
      %v2661 = vld [vmem:[%s2433 + $0x2f1] sm:$0xff]
      %v2662 = vld [vmem:[%s2433 + $0x309] sm:$0xff]
      %v2663 = vld [vmem:[%s2433 + $0x321] sm:$0xff]
      %v2664 = vld [vmem:[%s2433 + $0x339] sm:$0xff]
      %v2665 = vld [vmem:[%s2433 + $0x351] sm:$0xff]
      %v2666 = vld [vmem:[%s2433 + $0x369] sm:$0xff]
      %v2667 = vld [vmem:[%s2433 + $0x381] sm:$0xff]
      %v2668 = vlaneseq
      %v2669 = vshrl.u32 %v2668, 7
      %v2670 = vsub.s32 0, %v2669
      %v2671 = vrot.slane %v2635, %v2670
      %v2672 = vmul.f32 %v2636, %v2671
      %v2673 = vmul.f32 %v2637, %v2671
      %v2674 = vmul.f32 %v2638, %v2671
      %v2675 = vmul.f32 %v2639, %v2671
      %v2676 = vmul.f32 %v2640, %v2671
      %v2677 = vmul.f32 %v2641, %v2671
      %v2678 = vmul.f32 %v2642, %v2671
      %v2679 = vmul.f32 %v2643, %v2671
      %v2680 = vmul.f32 %v2644, %v2671
      %v2681 = vmul.f32 %v2645, %v2671
      %v2682 = vmul.f32 %v2646, %v2671
      %v2683 = vmul.f32 %v2647, %v2671
      %v2684 = vmul.f32 %v2648, %v2671
      %v2685 = vmul.f32 %v2649, %v2671
      %v2686 = vmul.f32 %v2650, %v2671
      %v2687 = vmul.f32 %v2651, %v2671
      %v2688 = vmul.f32 %v2652, %v2671
      %v2689 = vmul.f32 %v2653, %v2671
      %v2690 = vmul.f32 %v2654, %v2671
      %v2691 = vmul.f32 %v2655, %v2671
      %v2692 = vmul.f32 %v2656, %v2671
      %v2693 = vmul.f32 %v2657, %v2671
      %v2694 = vmul.f32 %v2658, %v2671
      %v2695 = vmul.f32 %v2659, %v2671
      %v2696 = vmul.f32 %v2660, %v2671
      %v2697 = vmul.f32 %v2661, %v2671
      %v2698 = vmul.f32 %v2662, %v2671
      %v2699 = vmul.f32 %v2663, %v2671
      %v2700 = vmul.f32 %v2664, %v2671
      %v2701 = vmul.f32 %v2665, %v2671
      %v2702 = vmul.f32 %v2666, %v2671
      %v2703 = vmul.f32 %v2667, %v2671
      %v2704 = vadd.f32 %v2603, %v2672
      %v2705 = vadd.f32 %v2604, %v2673
      %v2706 = vadd.f32 %v2605, %v2674
      %v2707 = vadd.f32 %v2606, %v2675
      %v2708 = vadd.f32 %v2607, %v2676
      %v2709 = vadd.f32 %v2608, %v2677
      %v2710 = vadd.f32 %v2609, %v2678
      %v2711 = vadd.f32 %v2610, %v2679
      %v2712 = vadd.f32 %v2611, %v2680
      %v2713 = vadd.f32 %v2612, %v2681
      %v2714 = vadd.f32 %v2613, %v2682
      %v2715 = vadd.f32 %v2614, %v2683
      %v2716 = vadd.f32 %v2615, %v2684
      %v2717 = vadd.f32 %v2616, %v2685
      %v2718 = vadd.f32 %v2617, %v2686
      %v2719 = vadd.f32 %v2618, %v2687
      %v2720 = vadd.f32 %v2619, %v2688
      %v2721 = vadd.f32 %v2620, %v2689
      %v2722 = vadd.f32 %v2621, %v2690
      %v2723 = vadd.f32 %v2622, %v2691
      %v2724 = vadd.f32 %v2623, %v2692
      %v2725 = vadd.f32 %v2624, %v2693
      %v2726 = vadd.f32 %v2625, %v2694
      %v2727 = vadd.f32 %v2626, %v2695
      %v2728 = vadd.f32 %v2627, %v2696
      %v2729 = vadd.f32 %v2628, %v2697
      %v2730 = vadd.f32 %v2629, %v2698
      %v2731 = vadd.f32 %v2630, %v2699
      %v2732 = vadd.f32 %v2631, %v2700
      %v2733 = vadd.f32 %v2632, %v2701
      %v2734 = vadd.f32 %v2633, %v2702
      %v2735 = vadd.f32 %v2634, %v2703
      %s2736 = scalar_lea.vmem %s2, 24
      %v2737 = vld [vmem:[%s2736] sm:$0x1]
      %s2738 = scalar_lea.vmem [#allocation2], 480
      %v2739 = vld [vmem:[%s2738 + $0x7] sm:$0xff]
      %v2740 = vld [vmem:[%s2738 + $0x1f] sm:$0xff]
      %v2741 = vld [vmem:[%s2738 + $0x37] sm:$0xff]
      %v2742 = vld [vmem:[%s2738 + $0x4f] sm:$0xff]
      %v2743 = vld [vmem:[%s2738 + $0x67] sm:$0xff]
      %v2744 = vld [vmem:[%s2738 + $0x7f] sm:$0xff]
      %v2745 = vld [vmem:[%s2738 + $0x97] sm:$0xff]
      %v2746 = vld [vmem:[%s2738 + $0xaf] sm:$0xff]
      %v2747 = vld [vmem:[%s2738 + $0xf7] sm:$0xff]
      %v2748 = vld [vmem:[%s2738 + $0x10f] sm:$0xff]
      %v2749 = vld [vmem:[%s2738 + $0x127] sm:$0xff]
      %v2750 = vld [vmem:[%s2738 + $0x13f] sm:$0xff]
      %v2751 = vld [vmem:[%s2738 + $0x157] sm:$0xff]
      %v2752 = vld [vmem:[%s2738 + $0x16f] sm:$0xff]
      %v2753 = vld [vmem:[%s2738 + $0x187] sm:$0xff]
      %v2754 = vld [vmem:[%s2738 + $0x19f] sm:$0xff]
      %v2755 = vld [vmem:[%s2738 + $0x1e7] sm:$0xff]
      %v2756 = vld [vmem:[%s2738 + $0x1ff] sm:$0xff]
      %v2757 = vld [vmem:[%s2738 + $0x217] sm:$0xff]
      %v2758 = vld [vmem:[%s2738 + $0x22f] sm:$0xff]
      %v2759 = vld [vmem:[%s2738 + $0x247] sm:$0xff]
      %v2760 = vld [vmem:[%s2738 + $0x25f] sm:$0xff]
      %v2761 = vld [vmem:[%s2738 + $0x277] sm:$0xff]
      %v2762 = vld [vmem:[%s2738 + $0x28f] sm:$0xff]
      %v2763 = vld [vmem:[%s2738 + $0x2d7] sm:$0xff]
      %v2764 = vld [vmem:[%s2738 + $0x2ef] sm:$0xff]
      %v2765 = vld [vmem:[%s2738 + $0x307] sm:$0xff]
      %v2766 = vld [vmem:[%s2738 + $0x31f] sm:$0xff]
      %v2767 = vld [vmem:[%s2738 + $0x337] sm:$0xff]
      %v2768 = vld [vmem:[%s2738 + $0x34f] sm:$0xff]
      %v2769 = vld [vmem:[%s2738 + $0x367] sm:$0xff]
      %v2770 = vld [vmem:[%s2738 + $0x37f] sm:$0xff]
      %v2771 = vlaneseq
      %v2772 = vshrl.u32 %v2771, 7
      %v2773 = vsub.s32 0, %v2772
      %v2774 = vrot.slane %v2737, %v2773
      %v2775 = vmul.f32 %v2739, %v2774
      %v2776 = vmul.f32 %v2740, %v2774
      %v2777 = vmul.f32 %v2741, %v2774
      %v2778 = vmul.f32 %v2742, %v2774
      %v2779 = vmul.f32 %v2743, %v2774
      %v2780 = vmul.f32 %v2744, %v2774
      %v2781 = vmul.f32 %v2745, %v2774
      %v2782 = vmul.f32 %v2746, %v2774
      %v2783 = vmul.f32 %v2747, %v2774
      %v2784 = vmul.f32 %v2748, %v2774
      %v2785 = vmul.f32 %v2749, %v2774
      %v2786 = vmul.f32 %v2750, %v2774
      %v2787 = vmul.f32 %v2751, %v2774
      %v2788 = vmul.f32 %v2752, %v2774
      %v2789 = vmul.f32 %v2753, %v2774
      %v2790 = vmul.f32 %v2754, %v2774
      %v2791 = vmul.f32 %v2755, %v2774
      %v2792 = vmul.f32 %v2756, %v2774
      %v2793 = vmul.f32 %v2757, %v2774
      %v2794 = vmul.f32 %v2758, %v2774
      %v2795 = vmul.f32 %v2759, %v2774
      %v2796 = vmul.f32 %v2760, %v2774
      %v2797 = vmul.f32 %v2761, %v2774
      %v2798 = vmul.f32 %v2762, %v2774
      %v2799 = vmul.f32 %v2763, %v2774
      %v2800 = vmul.f32 %v2764, %v2774
      %v2801 = vmul.f32 %v2765, %v2774
      %v2802 = vmul.f32 %v2766, %v2774
      %v2803 = vmul.f32 %v2767, %v2774
      %v2804 = vmul.f32 %v2768, %v2774
      %v2805 = vmul.f32 %v2769, %v2774
      %v2806 = vmul.f32 %v2770, %v2774
      %v2807 = vadd.f32 %v2704, %v2775
      %v2808 = vadd.f32 %v2705, %v2776
      %v2809 = vadd.f32 %v2706, %v2777
      %v2810 = vadd.f32 %v2707, %v2778
      %v2811 = vadd.f32 %v2708, %v2779
      %v2812 = vadd.f32 %v2709, %v2780
      %v2813 = vadd.f32 %v2710, %v2781
      %v2814 = vadd.f32 %v2711, %v2782
      %v2815 = vadd.f32 %v2712, %v2783
      %v2816 = vadd.f32 %v2713, %v2784
      %v2817 = vadd.f32 %v2714, %v2785
      %v2818 = vadd.f32 %v2715, %v2786
      %v2819 = vadd.f32 %v2716, %v2787
      %v2820 = vadd.f32 %v2717, %v2788
      %v2821 = vadd.f32 %v2718, %v2789
      %v2822 = vadd.f32 %v2719, %v2790
      %v2823 = vadd.f32 %v2720, %v2791
      %v2824 = vadd.f32 %v2721, %v2792
      %v2825 = vadd.f32 %v2722, %v2793
      %v2826 = vadd.f32 %v2723, %v2794
      %v2827 = vadd.f32 %v2724, %v2795
      %v2828 = vadd.f32 %v2725, %v2796
      %v2829 = vadd.f32 %v2726, %v2797
      %v2830 = vadd.f32 %v2727, %v2798
      %v2831 = vadd.f32 %v2728, %v2799
      %v2832 = vadd.f32 %v2729, %v2800
      %v2833 = vadd.f32 %v2730, %v2801
      %v2834 = vadd.f32 %v2731, %v2802
      %v2835 = vadd.f32 %v2732, %v2803
      %v2836 = vadd.f32 %v2733, %v2804
      %v2837 = vadd.f32 %v2734, %v2805
      %v2838 = vadd.f32 %v2735, %v2806
      %v2839 = vld [vmem:[%s2736 + $0x1] sm:$0x1]
      %v2840 = vld [vmem:[%s2738 + $0x8] sm:$0xff]
      %v2841 = vld [vmem:[%s2738 + $0x20] sm:$0xff]
      %v2842 = vld [vmem:[%s2738 + $0x38] sm:$0xff]
      %v2843 = vld [vmem:[%s2738 + $0x50] sm:$0xff]
      %v2844 = vld [vmem:[%s2738 + $0x68] sm:$0xff]
      %v2845 = vld [vmem:[%s2738 + $0x80] sm:$0xff]
      %v2846 = vld [vmem:[%s2738 + $0x98] sm:$0xff]
      %v2847 = vld [vmem:[%s2738 + $0xb0] sm:$0xff]
      %v2848 = vld [vmem:[%s2738 + $0xf8] sm:$0xff]
      %v2849 = vld [vmem:[%s2738 + $0x110] sm:$0xff]
      %v2850 = vld [vmem:[%s2738 + $0x128] sm:$0xff]
      %v2851 = vld [vmem:[%s2738 + $0x140] sm:$0xff]
      %v2852 = vld [vmem:[%s2738 + $0x158] sm:$0xff]
      %v2853 = vld [vmem:[%s2738 + $0x170] sm:$0xff]
      %v2854 = vld [vmem:[%s2738 + $0x188] sm:$0xff]
      %v2855 = vld [vmem:[%s2738 + $0x1a0] sm:$0xff]
      %v2856 = vld [vmem:[%s2738 + $0x1e8] sm:$0xff]
      %v2857 = vld [vmem:[%s2738 + $0x200] sm:$0xff]
      %v2858 = vld [vmem:[%s2738 + $0x218] sm:$0xff]
      %v2859 = vld [vmem:[%s2738 + $0x230] sm:$0xff]
      %v2860 = vld [vmem:[%s2738 + $0x248] sm:$0xff]
      %v2861 = vld [vmem:[%s2738 + $0x260] sm:$0xff]
      %v2862 = vld [vmem:[%s2738 + $0x278] sm:$0xff]
      %v2863 = vld [vmem:[%s2738 + $0x290] sm:$0xff]
      %v2864 = vld [vmem:[%s2738 + $0x2d8] sm:$0xff]
      %v2865 = vld [vmem:[%s2738 + $0x2f0] sm:$0xff]
      %v2866 = vld [vmem:[%s2738 + $0x308] sm:$0xff]
      %v2867 = vld [vmem:[%s2738 + $0x320] sm:$0xff]
      %v2868 = vld [vmem:[%s2738 + $0x338] sm:$0xff]
      %v2869 = vld [vmem:[%s2738 + $0x350] sm:$0xff]
      %v2870 = vld [vmem:[%s2738 + $0x368] sm:$0xff]
      %v2871 = vld [vmem:[%s2738 + $0x380] sm:$0xff]
      %v2872 = vlaneseq
      %v2873 = vshrl.u32 %v2872, 7
      %v2874 = vsub.s32 0, %v2873
      %v2875 = vrot.slane %v2839, %v2874
      %v2876 = vmul.f32 %v2840, %v2875
      %v2877 = vmul.f32 %v2841, %v2875
      %v2878 = vmul.f32 %v2842, %v2875
      %v2879 = vmul.f32 %v2843, %v2875
      %v2880 = vmul.f32 %v2844, %v2875
      %v2881 = vmul.f32 %v2845, %v2875
      %v2882 = vmul.f32 %v2846, %v2875
      %v2883 = vmul.f32 %v2847, %v2875
      %v2884 = vmul.f32 %v2848, %v2875
      %v2885 = vmul.f32 %v2849, %v2875
      %v2886 = vmul.f32 %v2850, %v2875
      %v2887 = vmul.f32 %v2851, %v2875
      %v2888 = vmul.f32 %v2852, %v2875
      %v2889 = vmul.f32 %v2853, %v2875
      %v2890 = vmul.f32 %v2854, %v2875
      %v2891 = vmul.f32 %v2855, %v2875
      %v2892 = vmul.f32 %v2856, %v2875
      %v2893 = vmul.f32 %v2857, %v2875
      %v2894 = vmul.f32 %v2858, %v2875
      %v2895 = vmul.f32 %v2859, %v2875
      %v2896 = vmul.f32 %v2860, %v2875
      %v2897 = vmul.f32 %v2861, %v2875
      %v2898 = vmul.f32 %v2862, %v2875
      %v2899 = vmul.f32 %v2863, %v2875
      %v2900 = vmul.f32 %v2864, %v2875
      %v2901 = vmul.f32 %v2865, %v2875
      %v2902 = vmul.f32 %v2866, %v2875
      %v2903 = vmul.f32 %v2867, %v2875
      %v2904 = vmul.f32 %v2868, %v2875
      %v2905 = vmul.f32 %v2869, %v2875
      %v2906 = vmul.f32 %v2870, %v2875
      %v2907 = vmul.f32 %v2871, %v2875
      %v2908 = vadd.f32 %v2807, %v2876
      %v2909 = vadd.f32 %v2808, %v2877
      %v2910 = vadd.f32 %v2809, %v2878
      %v2911 = vadd.f32 %v2810, %v2879
      %v2912 = vadd.f32 %v2811, %v2880
      %v2913 = vadd.f32 %v2812, %v2881
      %v2914 = vadd.f32 %v2813, %v2882
      %v2915 = vadd.f32 %v2814, %v2883
      %v2916 = vadd.f32 %v2815, %v2884
      %v2917 = vadd.f32 %v2816, %v2885
      %v2918 = vadd.f32 %v2817, %v2886
      %v2919 = vadd.f32 %v2818, %v2887
      %v2920 = vadd.f32 %v2819, %v2888
      %v2921 = vadd.f32 %v2820, %v2889
      %v2922 = vadd.f32 %v2821, %v2890
      %v2923 = vadd.f32 %v2822, %v2891
      %v2924 = vadd.f32 %v2823, %v2892
      %v2925 = vadd.f32 %v2824, %v2893
      %v2926 = vadd.f32 %v2825, %v2894
      %v2927 = vadd.f32 %v2826, %v2895
      %v2928 = vadd.f32 %v2827, %v2896
      %v2929 = vadd.f32 %v2828, %v2897
      %v2930 = vadd.f32 %v2829, %v2898
      %v2931 = vadd.f32 %v2830, %v2899
      %v2932 = vadd.f32 %v2831, %v2900
      %v2933 = vadd.f32 %v2832, %v2901
      %v2934 = vadd.f32 %v2833, %v2902
      %v2935 = vadd.f32 %v2834, %v2903
      %v2936 = vadd.f32 %v2835, %v2904
      %v2937 = vadd.f32 %v2836, %v2905
      %v2938 = vadd.f32 %v2837, %v2906
      %v2939 = vadd.f32 %v2838, %v2907
      %v2940 = vld [vmem:[%s2736 + $0x2] sm:$0x1]
      %v2941 = vld [vmem:[%s2738 + $0x9] sm:$0xff]
      %v2942 = vld [vmem:[%s2738 + $0x21] sm:$0xff]
      %v2943 = vld [vmem:[%s2738 + $0x39] sm:$0xff]
      %v2944 = vld [vmem:[%s2738 + $0x51] sm:$0xff]
      %v2945 = vld [vmem:[%s2738 + $0x69] sm:$0xff]
      %v2946 = vld [vmem:[%s2738 + $0x81] sm:$0xff]
      %v2947 = vld [vmem:[%s2738 + $0x99] sm:$0xff]
      %v2948 = vld [vmem:[%s2738 + $0xb1] sm:$0xff]
      %v2949 = vld [vmem:[%s2738 + $0xf9] sm:$0xff]
      %v2950 = vld [vmem:[%s2738 + $0x111] sm:$0xff]
      %v2951 = vld [vmem:[%s2738 + $0x129] sm:$0xff]
      %v2952 = vld [vmem:[%s2738 + $0x141] sm:$0xff]
      %v2953 = vld [vmem:[%s2738 + $0x159] sm:$0xff]
      %v2954 = vld [vmem:[%s2738 + $0x171] sm:$0xff]
      %v2955 = vld [vmem:[%s2738 + $0x189] sm:$0xff]
      %v2956 = vld [vmem:[%s2738 + $0x1a1] sm:$0xff]
      %v2957 = vld [vmem:[%s2738 + $0x1e9] sm:$0xff]
      %v2958 = vld [vmem:[%s2738 + $0x201] sm:$0xff]
      %v2959 = vld [vmem:[%s2738 + $0x219] sm:$0xff]
      %v2960 = vld [vmem:[%s2738 + $0x231] sm:$0xff]
      %v2961 = vld [vmem:[%s2738 + $0x249] sm:$0xff]
      %v2962 = vld [vmem:[%s2738 + $0x261] sm:$0xff]
      %v2963 = vld [vmem:[%s2738 + $0x279] sm:$0xff]
      %v2964 = vld [vmem:[%s2738 + $0x291] sm:$0xff]
      %v2965 = vld [vmem:[%s2738 + $0x2d9] sm:$0xff]
      %v2966 = vld [vmem:[%s2738 + $0x2f1] sm:$0xff]
      %v2967 = vld [vmem:[%s2738 + $0x309] sm:$0xff]
      %v2968 = vld [vmem:[%s2738 + $0x321] sm:$0xff]
      %v2969 = vld [vmem:[%s2738 + $0x339] sm:$0xff]
      %v2970 = vld [vmem:[%s2738 + $0x351] sm:$0xff]
      %v2971 = vld [vmem:[%s2738 + $0x369] sm:$0xff]
      %v2972 = vld [vmem:[%s2738 + $0x381] sm:$0xff]
      %v2973 = vlaneseq
      %v2974 = vshrl.u32 %v2973, 7
      %v2975 = vsub.s32 0, %v2974
      %v2976 = vrot.slane %v2940, %v2975
      %v2977 = vmul.f32 %v2941, %v2976
      %v2978 = vmul.f32 %v2942, %v2976
      %v2979 = vmul.f32 %v2943, %v2976
      %v2980 = vmul.f32 %v2944, %v2976
      %v2981 = vmul.f32 %v2945, %v2976
      %v2982 = vmul.f32 %v2946, %v2976
      %v2983 = vmul.f32 %v2947, %v2976
      %v2984 = vmul.f32 %v2948, %v2976
      %v2985 = vmul.f32 %v2949, %v2976
      %v2986 = vmul.f32 %v2950, %v2976
      %v2987 = vmul.f32 %v2951, %v2976
      %v2988 = vmul.f32 %v2952, %v2976
      %v2989 = vmul.f32 %v2953, %v2976
      %v2990 = vmul.f32 %v2954, %v2976
      %v2991 = vmul.f32 %v2955, %v2976
      %v2992 = vmul.f32 %v2956, %v2976
      %v2993 = vmul.f32 %v2957, %v2976
      %v2994 = vmul.f32 %v2958, %v2976
      %v2995 = vmul.f32 %v2959, %v2976
      %v2996 = vmul.f32 %v2960, %v2976
      %v2997 = vmul.f32 %v2961, %v2976
      %v2998 = vmul.f32 %v2962, %v2976
      %v2999 = vmul.f32 %v2963, %v2976
      %v3000 = vmul.f32 %v2964, %v2976
      %v3001 = vmul.f32 %v2965, %v2976
      %v3002 = vmul.f32 %v2966, %v2976
      %v3003 = vmul.f32 %v2967, %v2976
      %v3004 = vmul.f32 %v2968, %v2976
      %v3005 = vmul.f32 %v2969, %v2976
      %v3006 = vmul.f32 %v2970, %v2976
      %v3007 = vmul.f32 %v2971, %v2976
      %v3008 = vmul.f32 %v2972, %v2976
      %v3009 = vadd.f32 %v2908, %v2977
      %v3010 = vadd.f32 %v2909, %v2978
      %v3011 = vadd.f32 %v2910, %v2979
      %v3012 = vadd.f32 %v2911, %v2980
      %v3013 = vadd.f32 %v2912, %v2981
      %v3014 = vadd.f32 %v2913, %v2982
      %v3015 = vadd.f32 %v2914, %v2983
      %v3016 = vadd.f32 %v2915, %v2984
      %v3017 = vadd.f32 %v2916, %v2985
      %v3018 = vadd.f32 %v2917, %v2986
      %v3019 = vadd.f32 %v2918, %v2987
      %v3020 = vadd.f32 %v2919, %v2988
      %v3021 = vadd.f32 %v2920, %v2989
      %v3022 = vadd.f32 %v2921, %v2990
      %v3023 = vadd.f32 %v2922, %v2991
      %v3024 = vadd.f32 %v2923, %v2992
      %v3025 = vadd.f32 %v2924, %v2993
      %v3026 = vadd.f32 %v2925, %v2994
      %v3027 = vadd.f32 %v2926, %v2995
      %v3028 = vadd.f32 %v2927, %v2996
      %v3029 = vadd.f32 %v2928, %v2997
      %v3030 = vadd.f32 %v2929, %v2998
      %v3031 = vadd.f32 %v2930, %v2999
      %v3032 = vadd.f32 %v2931, %v3000
      %v3033 = vadd.f32 %v2932, %v3001
      %v3034 = vadd.f32 %v2933, %v3002
      %v3035 = vadd.f32 %v2934, %v3003
      %v3036 = vadd.f32 %v2935, %v3004
      %v3037 = vadd.f32 %v2936, %v3005
      %v3038 = vadd.f32 %v2937, %v3006
      %v3039 = vadd.f32 %v2938, %v3007
      %v3040 = vadd.f32 %v2939, %v3008
      %s3041 = scalar_lea.vmem %s2, 28
      %v3042 = vld [vmem:[%s3041] sm:$0x1]
      %s3043 = scalar_lea.vmem [#allocation2], 504
      %v3044 = vld [vmem:[%s3043 + $0x7] sm:$0xff]
      %v3045 = vld [vmem:[%s3043 + $0x1f] sm:$0xff]
      %v3046 = vld [vmem:[%s3043 + $0x37] sm:$0xff]
      %v3047 = vld [vmem:[%s3043 + $0x4f] sm:$0xff]
      %v3048 = vld [vmem:[%s3043 + $0x67] sm:$0xff]
      %v3049 = vld [vmem:[%s3043 + $0x7f] sm:$0xff]
      %v3050 = vld [vmem:[%s3043 + $0x97] sm:$0xff]
      %v3051 = vld [vmem:[%s3043 + $0xaf] sm:$0xff]
      %v3052 = vld [vmem:[%s3043 + $0xf7] sm:$0xff]
      %v3053 = vld [vmem:[%s3043 + $0x10f] sm:$0xff]
      %v3054 = vld [vmem:[%s3043 + $0x127] sm:$0xff]
      %v3055 = vld [vmem:[%s3043 + $0x13f] sm:$0xff]
      %v3056 = vld [vmem:[%s3043 + $0x157] sm:$0xff]
      %v3057 = vld [vmem:[%s3043 + $0x16f] sm:$0xff]
      %v3058 = vld [vmem:[%s3043 + $0x187] sm:$0xff]
      %v3059 = vld [vmem:[%s3043 + $0x19f] sm:$0xff]
      %v3060 = vld [vmem:[%s3043 + $0x1e7] sm:$0xff]
      %v3061 = vld [vmem:[%s3043 + $0x1ff] sm:$0xff]
      %v3062 = vld [vmem:[%s3043 + $0x217] sm:$0xff]
      %v3063 = vld [vmem:[%s3043 + $0x22f] sm:$0xff]
      %v3064 = vld [vmem:[%s3043 + $0x247] sm:$0xff]
      %v3065 = vld [vmem:[%s3043 + $0x25f] sm:$0xff]
      %v3066 = vld [vmem:[%s3043 + $0x277] sm:$0xff]
      %v3067 = vld [vmem:[%s3043 + $0x28f] sm:$0xff]
      %v3068 = vld [vmem:[%s3043 + $0x2d7] sm:$0xff]
      %v3069 = vld [vmem:[%s3043 + $0x2ef] sm:$0xff]
      %v3070 = vld [vmem:[%s3043 + $0x307] sm:$0xff]
      %v3071 = vld [vmem:[%s3043 + $0x31f] sm:$0xff]
      %v3072 = vld [vmem:[%s3043 + $0x337] sm:$0xff]
      %v3073 = vld [vmem:[%s3043 + $0x34f] sm:$0xff]
      %v3074 = vld [vmem:[%s3043 + $0x367] sm:$0xff]
      %v3075 = vld [vmem:[%s3043 + $0x37f] sm:$0xff]
      %v3076 = vlaneseq
      %v3077 = vshrl.u32 %v3076, 7
      %v3078 = vsub.s32 0, %v3077
      %v3079 = vrot.slane %v3042, %v3078
      %v3080 = vmul.f32 %v3044, %v3079
      %v3081 = vmul.f32 %v3045, %v3079
      %v3082 = vmul.f32 %v3046, %v3079
      %v3083 = vmul.f32 %v3047, %v3079
      %v3084 = vmul.f32 %v3048, %v3079
      %v3085 = vmul.f32 %v3049, %v3079
      %v3086 = vmul.f32 %v3050, %v3079
      %v3087 = vmul.f32 %v3051, %v3079
      %v3088 = vmul.f32 %v3052, %v3079
      %v3089 = vmul.f32 %v3053, %v3079
      %v3090 = vmul.f32 %v3054, %v3079
      %v3091 = vmul.f32 %v3055, %v3079
      %v3092 = vmul.f32 %v3056, %v3079
      %v3093 = vmul.f32 %v3057, %v3079
      %v3094 = vmul.f32 %v3058, %v3079
      %v3095 = vmul.f32 %v3059, %v3079
      %v3096 = vmul.f32 %v3060, %v3079
      %v3097 = vmul.f32 %v3061, %v3079
      %v3098 = vmul.f32 %v3062, %v3079
      %v3099 = vmul.f32 %v3063, %v3079
      %v3100 = vmul.f32 %v3064, %v3079
      %v3101 = vmul.f32 %v3065, %v3079
      %v3102 = vmul.f32 %v3066, %v3079
      %v3103 = vmul.f32 %v3067, %v3079
      %v3104 = vmul.f32 %v3068, %v3079
      %v3105 = vmul.f32 %v3069, %v3079
      %v3106 = vmul.f32 %v3070, %v3079
      %v3107 = vmul.f32 %v3071, %v3079
      %v3108 = vmul.f32 %v3072, %v3079
      %v3109 = vmul.f32 %v3073, %v3079
      %v3110 = vmul.f32 %v3074, %v3079
      %v3111 = vmul.f32 %v3075, %v3079
      %v3112 = vadd.f32 %v3009, %v3080
      %v3113 = vadd.f32 %v3010, %v3081
      %v3114 = vadd.f32 %v3011, %v3082
      %v3115 = vadd.f32 %v3012, %v3083
      %v3116 = vadd.f32 %v3013, %v3084
      %v3117 = vadd.f32 %v3014, %v3085
      %v3118 = vadd.f32 %v3015, %v3086
      %v3119 = vadd.f32 %v3016, %v3087
      %v3120 = vadd.f32 %v3017, %v3088
      %v3121 = vadd.f32 %v3018, %v3089
      %v3122 = vadd.f32 %v3019, %v3090
      %v3123 = vadd.f32 %v3020, %v3091
      %v3124 = vadd.f32 %v3021, %v3092
      %v3125 = vadd.f32 %v3022, %v3093
      %v3126 = vadd.f32 %v3023, %v3094
      %v3127 = vadd.f32 %v3024, %v3095
      %v3128 = vadd.f32 %v3025, %v3096
      %v3129 = vadd.f32 %v3026, %v3097
      %v3130 = vadd.f32 %v3027, %v3098
      %v3131 = vadd.f32 %v3028, %v3099
      %v3132 = vadd.f32 %v3029, %v3100
      %v3133 = vadd.f32 %v3030, %v3101
      %v3134 = vadd.f32 %v3031, %v3102
      %v3135 = vadd.f32 %v3032, %v3103
      %v3136 = vadd.f32 %v3033, %v3104
      %v3137 = vadd.f32 %v3034, %v3105
      %v3138 = vadd.f32 %v3035, %v3106
      %v3139 = vadd.f32 %v3036, %v3107
      %v3140 = vadd.f32 %v3037, %v3108
      %v3141 = vadd.f32 %v3038, %v3109
      %v3142 = vadd.f32 %v3039, %v3110
      %v3143 = vadd.f32 %v3040, %v3111
      %v3144 = vld [vmem:[%s3041 + $0x1] sm:$0x1]
      %v3145 = vld [vmem:[%s3043 + $0x8] sm:$0xff]
      %v3146 = vld [vmem:[%s3043 + $0x20] sm:$0xff]
      %v3147 = vld [vmem:[%s3043 + $0x38] sm:$0xff]
      %v3148 = vld [vmem:[%s3043 + $0x50] sm:$0xff]
      %v3149 = vld [vmem:[%s3043 + $0x68] sm:$0xff]
      %v3150 = vld [vmem:[%s3043 + $0x80] sm:$0xff]
      %v3151 = vld [vmem:[%s3043 + $0x98] sm:$0xff]
      %v3152 = vld [vmem:[%s3043 + $0xb0] sm:$0xff]
      %v3153 = vld [vmem:[%s3043 + $0xf8] sm:$0xff]
      %v3154 = vld [vmem:[%s3043 + $0x110] sm:$0xff]
      %v3155 = vld [vmem:[%s3043 + $0x128] sm:$0xff]
      %v3156 = vld [vmem:[%s3043 + $0x140] sm:$0xff]
      %v3157 = vld [vmem:[%s3043 + $0x158] sm:$0xff]
      %v3158 = vld [vmem:[%s3043 + $0x170] sm:$0xff]
      %v3159 = vld [vmem:[%s3043 + $0x188] sm:$0xff]
      %v3160 = vld [vmem:[%s3043 + $0x1a0] sm:$0xff]
      %v3161 = vld [vmem:[%s3043 + $0x1e8] sm:$0xff]
      %v3162 = vld [vmem:[%s3043 + $0x200] sm:$0xff]
      %v3163 = vld [vmem:[%s3043 + $0x218] sm:$0xff]
      %v3164 = vld [vmem:[%s3043 + $0x230] sm:$0xff]
      %v3165 = vld [vmem:[%s3043 + $0x248] sm:$0xff]
      %v3166 = vld [vmem:[%s3043 + $0x260] sm:$0xff]
      %v3167 = vld [vmem:[%s3043 + $0x278] sm:$0xff]
      %v3168 = vld [vmem:[%s3043 + $0x290] sm:$0xff]
      %v3169 = vld [vmem:[%s3043 + $0x2d8] sm:$0xff]
      %v3170 = vld [vmem:[%s3043 + $0x2f0] sm:$0xff]
      %v3171 = vld [vmem:[%s3043 + $0x308] sm:$0xff]
      %v3172 = vld [vmem:[%s3043 + $0x320] sm:$0xff]
      %v3173 = vld [vmem:[%s3043 + $0x338] sm:$0xff]
      %v3174 = vld [vmem:[%s3043 + $0x350] sm:$0xff]
      %v3175 = vld [vmem:[%s3043 + $0x368] sm:$0xff]
      %v3176 = vld [vmem:[%s3043 + $0x380] sm:$0xff]
      %v3177 = vlaneseq
      %v3178 = vshrl.u32 %v3177, 7
      %v3179 = vsub.s32 0, %v3178
      %v3180 = vrot.slane %v3144, %v3179
      %v3181 = vmul.f32 %v3145, %v3180
      %v3182 = vmul.f32 %v3146, %v3180
      %v3183 = vmul.f32 %v3147, %v3180
      %v3184 = vmul.f32 %v3148, %v3180
      %v3185 = vmul.f32 %v3149, %v3180
      %v3186 = vmul.f32 %v3150, %v3180
      %v3187 = vmul.f32 %v3151, %v3180
      %v3188 = vmul.f32 %v3152, %v3180
      %v3189 = vmul.f32 %v3153, %v3180
      %v3190 = vmul.f32 %v3154, %v3180
      %v3191 = vmul.f32 %v3155, %v3180
      %v3192 = vmul.f32 %v3156, %v3180
      %v3193 = vmul.f32 %v3157, %v3180
      %v3194 = vmul.f32 %v3158, %v3180
      %v3195 = vmul.f32 %v3159, %v3180
      %v3196 = vmul.f32 %v3160, %v3180
      %v3197 = vmul.f32 %v3161, %v3180
      %v3198 = vmul.f32 %v3162, %v3180
      %v3199 = vmul.f32 %v3163, %v3180
      %v3200 = vmul.f32 %v3164, %v3180
      %v3201 = vmul.f32 %v3165, %v3180
      %v3202 = vmul.f32 %v3166, %v3180
      %v3203 = vmul.f32 %v3167, %v3180
      %v3204 = vmul.f32 %v3168, %v3180
      %v3205 = vmul.f32 %v3169, %v3180
      %v3206 = vmul.f32 %v3170, %v3180
      %v3207 = vmul.f32 %v3171, %v3180
      %v3208 = vmul.f32 %v3172, %v3180
      %v3209 = vmul.f32 %v3173, %v3180
      %v3210 = vmul.f32 %v3174, %v3180
      %v3211 = vmul.f32 %v3175, %v3180
      %v3212 = vmul.f32 %v3176, %v3180
      %v3213 = vadd.f32 %v3112, %v3181
      %v3214 = vadd.f32 %v3113, %v3182
      %v3215 = vadd.f32 %v3114, %v3183
      %v3216 = vadd.f32 %v3115, %v3184
      %v3217 = vadd.f32 %v3116, %v3185
      %v3218 = vadd.f32 %v3117, %v3186
      %v3219 = vadd.f32 %v3118, %v3187
      %v3220 = vadd.f32 %v3119, %v3188
      %v3221 = vadd.f32 %v3120, %v3189
      %v3222 = vadd.f32 %v3121, %v3190
      %v3223 = vadd.f32 %v3122, %v3191
      %v3224 = vadd.f32 %v3123, %v3192
      %v3225 = vadd.f32 %v3124, %v3193
      %v3226 = vadd.f32 %v3125, %v3194
      %v3227 = vadd.f32 %v3126, %v3195
      %v3228 = vadd.f32 %v3127, %v3196
      %v3229 = vadd.f32 %v3128, %v3197
      %v3230 = vadd.f32 %v3129, %v3198
      %v3231 = vadd.f32 %v3130, %v3199
      %v3232 = vadd.f32 %v3131, %v3200
      %v3233 = vadd.f32 %v3132, %v3201
      %v3234 = vadd.f32 %v3133, %v3202
      %v3235 = vadd.f32 %v3134, %v3203
      %v3236 = vadd.f32 %v3135, %v3204
      %v3237 = vadd.f32 %v3136, %v3205
      %v3238 = vadd.f32 %v3137, %v3206
      %v3239 = vadd.f32 %v3138, %v3207
      %v3240 = vadd.f32 %v3139, %v3208
      %v3241 = vadd.f32 %v3140, %v3209
      %v3242 = vadd.f32 %v3141, %v3210
      %v3243 = vadd.f32 %v3142, %v3211
      %v3244 = vadd.f32 %v3143, %v3212
      %v3245 = vld [vmem:[%s3041 + $0x2] sm:$0x1]
      %v3246 = vld [vmem:[%s3043 + $0x9] sm:$0xff]
      %v3247 = vld [vmem:[%s3043 + $0x21] sm:$0xff]
      %v3248 = vld [vmem:[%s3043 + $0x39] sm:$0xff]
      %v3249 = vld [vmem:[%s3043 + $0x51] sm:$0xff]
      %v3250 = vld [vmem:[%s3043 + $0x69] sm:$0xff]
      %v3251 = vld [vmem:[%s3043 + $0x81] sm:$0xff]
      %v3252 = vld [vmem:[%s3043 + $0x99] sm:$0xff]
      %v3253 = vld [vmem:[%s3043 + $0xb1] sm:$0xff]
      %v3254 = vld [vmem:[%s3043 + $0xf9] sm:$0xff]
      %v3255 = vld [vmem:[%s3043 + $0x111] sm:$0xff]
      %v3256 = vld [vmem:[%s3043 + $0x129] sm:$0xff]
      %v3257 = vld [vmem:[%s3043 + $0x141] sm:$0xff]
      %v3258 = vld [vmem:[%s3043 + $0x159] sm:$0xff]
      %v3259 = vld [vmem:[%s3043 + $0x171] sm:$0xff]
      %v3260 = vld [vmem:[%s3043 + $0x189] sm:$0xff]
      %v3261 = vld [vmem:[%s3043 + $0x1a1] sm:$0xff]
      %v3262 = vld [vmem:[%s3043 + $0x1e9] sm:$0xff]
      %v3263 = vld [vmem:[%s3043 + $0x201] sm:$0xff]
      %v3264 = vld [vmem:[%s3043 + $0x219] sm:$0xff]
      %v3265 = vld [vmem:[%s3043 + $0x231] sm:$0xff]
      %v3266 = vld [vmem:[%s3043 + $0x249] sm:$0xff]
      %v3267 = vld [vmem:[%s3043 + $0x261] sm:$0xff]
      %v3268 = vld [vmem:[%s3043 + $0x279] sm:$0xff]
      %v3269 = vld [vmem:[%s3043 + $0x291] sm:$0xff]
      %v3270 = vld [vmem:[%s3043 + $0x2d9] sm:$0xff]
      %v3271 = vld [vmem:[%s3043 + $0x2f1] sm:$0xff]
      %v3272 = vld [vmem:[%s3043 + $0x309] sm:$0xff]
      %v3273 = vld [vmem:[%s3043 + $0x321] sm:$0xff]
      %v3274 = vld [vmem:[%s3043 + $0x339] sm:$0xff]
      %v3275 = vld [vmem:[%s3043 + $0x351] sm:$0xff]
      %v3276 = vld [vmem:[%s3043 + $0x369] sm:$0xff]
      %v3277 = vld [vmem:[%s3043 + $0x381] sm:$0xff]
      %v3278 = vlaneseq
      %v3279 = vshrl.u32 %v3278, 7
      %v3280 = vsub.s32 0, %v3279
      %v3281 = vrot.slane %v3245, %v3280
      %v3282 = vmul.f32 %v3246, %v3281
      %v3283 = vmul.f32 %v3247, %v3281
      %v3284 = vmul.f32 %v3248, %v3281
      %v3285 = vmul.f32 %v3249, %v3281
      %v3286 = vmul.f32 %v3250, %v3281
      %v3287 = vmul.f32 %v3251, %v3281
      %v3288 = vmul.f32 %v3252, %v3281
      %v3289 = vmul.f32 %v3253, %v3281
      %v3290 = vmul.f32 %v3254, %v3281
      %v3291 = vmul.f32 %v3255, %v3281
      %v3292 = vmul.f32 %v3256, %v3281
      %v3293 = vmul.f32 %v3257, %v3281
      %v3294 = vmul.f32 %v3258, %v3281
      %v3295 = vmul.f32 %v3259, %v3281
      %v3296 = vmul.f32 %v3260, %v3281
      %v3297 = vmul.f32 %v3261, %v3281
      %v3298 = vmul.f32 %v3262, %v3281
      %v3299 = vmul.f32 %v3263, %v3281
      %v3300 = vmul.f32 %v3264, %v3281
      %v3301 = vmul.f32 %v3265, %v3281
      %v3302 = vmul.f32 %v3266, %v3281
      %v3303 = vmul.f32 %v3267, %v3281
      %v3304 = vmul.f32 %v3268, %v3281
      %v3305 = vmul.f32 %v3269, %v3281
      %v3306 = vmul.f32 %v3270, %v3281
      %v3307 = vmul.f32 %v3271, %v3281
      %v3308 = vmul.f32 %v3272, %v3281
      %v3309 = vmul.f32 %v3273, %v3281
      %v3310 = vmul.f32 %v3274, %v3281
      %v3311 = vmul.f32 %v3275, %v3281
      %v3312 = vmul.f32 %v3276, %v3281
      %v3313 = vmul.f32 %v3277, %v3281
      %v3314 = vadd.f32 %v3213, %v3282
      %v3315 = vadd.f32 %v3214, %v3283
      %v3316 = vadd.f32 %v3215, %v3284
      %v3317 = vadd.f32 %v3216, %v3285
      %v3318 = vadd.f32 %v3217, %v3286
      %v3319 = vadd.f32 %v3218, %v3287
      %v3320 = vadd.f32 %v3219, %v3288
      %v3321 = vadd.f32 %v3220, %v3289
      %v3322 = vadd.f32 %v3221, %v3290
      %v3323 = vadd.f32 %v3222, %v3291
      %v3324 = vadd.f32 %v3223, %v3292
      %v3325 = vadd.f32 %v3224, %v3293
      %v3326 = vadd.f32 %v3225, %v3294
      %v3327 = vadd.f32 %v3226, %v3295
      %v3328 = vadd.f32 %v3227, %v3296
      %v3329 = vadd.f32 %v3228, %v3297
      %v3330 = vadd.f32 %v3229, %v3298
      %v3331 = vadd.f32 %v3230, %v3299
      %v3332 = vadd.f32 %v3231, %v3300
      %v3333 = vadd.f32 %v3232, %v3301
      %v3334 = vadd.f32 %v3233, %v3302
      %v3335 = vadd.f32 %v3234, %v3303
      %v3336 = vadd.f32 %v3235, %v3304
      %v3337 = vadd.f32 %v3236, %v3305
      %v3338 = vadd.f32 %v3237, %v3306
      %v3339 = vadd.f32 %v3238, %v3307
      %v3340 = vadd.f32 %v3239, %v3308
      %v3341 = vadd.f32 %v3240, %v3309
      %v3342 = vadd.f32 %v3241, %v3310
      %v3343 = vadd.f32 %v3242, %v3311
      %v3344 = vadd.f32 %v3243, %v3312
      %v3345 = vadd.f32 %v3244, %v3313
      %s3346 = scalar_lea.vmem %s2, 32
      %v3347 = vld [vmem:[%s3346] sm:$0x1]
      %s3348 = scalar_lea.vmem [#allocation2], 528
      %v3349 = vld [vmem:[%s3348 + $0x7] sm:$0xff]
      %v3350 = vld [vmem:[%s3348 + $0x1f] sm:$0xff]
      %v3351 = vld [vmem:[%s3348 + $0x37] sm:$0xff]
      %v3352 = vld [vmem:[%s3348 + $0x4f] sm:$0xff]
      %v3353 = vld [vmem:[%s3348 + $0x67] sm:$0xff]
      %v3354 = vld [vmem:[%s3348 + $0x7f] sm:$0xff]
      %v3355 = vld [vmem:[%s3348 + $0x97] sm:$0xff]
      %v3356 = vld [vmem:[%s3348 + $0xaf] sm:$0xff]
      %v3357 = vld [vmem:[%s3348 + $0xf7] sm:$0xff]
      %v3358 = vld [vmem:[%s3348 + $0x10f] sm:$0xff]
      %v3359 = vld [vmem:[%s3348 + $0x127] sm:$0xff]
      %v3360 = vld [vmem:[%s3348 + $0x13f] sm:$0xff]
      %v3361 = vld [vmem:[%s3348 + $0x157] sm:$0xff]
      %v3362 = vld [vmem:[%s3348 + $0x16f] sm:$0xff]
      %v3363 = vld [vmem:[%s3348 + $0x187] sm:$0xff]
      %v3364 = vld [vmem:[%s3348 + $0x19f] sm:$0xff]
      %v3365 = vld [vmem:[%s3348 + $0x1e7] sm:$0xff]
      %v3366 = vld [vmem:[%s3348 + $0x1ff] sm:$0xff]
      %v3367 = vld [vmem:[%s3348 + $0x217] sm:$0xff]
      %v3368 = vld [vmem:[%s3348 + $0x22f] sm:$0xff]
      %v3369 = vld [vmem:[%s3348 + $0x247] sm:$0xff]
      %v3370 = vld [vmem:[%s3348 + $0x25f] sm:$0xff]
      %v3371 = vld [vmem:[%s3348 + $0x277] sm:$0xff]
      %v3372 = vld [vmem:[%s3348 + $0x28f] sm:$0xff]
      %v3373 = vld [vmem:[%s3348 + $0x2d7] sm:$0xff]
      %v3374 = vld [vmem:[%s3348 + $0x2ef] sm:$0xff]
      %v3375 = vld [vmem:[%s3348 + $0x307] sm:$0xff]
      %v3376 = vld [vmem:[%s3348 + $0x31f] sm:$0xff]
      %v3377 = vld [vmem:[%s3348 + $0x337] sm:$0xff]
      %v3378 = vld [vmem:[%s3348 + $0x34f] sm:$0xff]
      %v3379 = vld [vmem:[%s3348 + $0x367] sm:$0xff]
      %v3380 = vld [vmem:[%s3348 + $0x37f] sm:$0xff]
      %v3381 = vlaneseq
      %v3382 = vshrl.u32 %v3381, 7
      %v3383 = vsub.s32 0, %v3382
      %v3384 = vrot.slane %v3347, %v3383
      %v3385 = vmul.f32 %v3349, %v3384
      %v3386 = vmul.f32 %v3350, %v3384
      %v3387 = vmul.f32 %v3351, %v3384
      %v3388 = vmul.f32 %v3352, %v3384
      %v3389 = vmul.f32 %v3353, %v3384
      %v3390 = vmul.f32 %v3354, %v3384
      %v3391 = vmul.f32 %v3355, %v3384
      %v3392 = vmul.f32 %v3356, %v3384
      %v3393 = vmul.f32 %v3357, %v3384
      %v3394 = vmul.f32 %v3358, %v3384
      %v3395 = vmul.f32 %v3359, %v3384
      %v3396 = vmul.f32 %v3360, %v3384
      %v3397 = vmul.f32 %v3361, %v3384
      %v3398 = vmul.f32 %v3362, %v3384
      %v3399 = vmul.f32 %v3363, %v3384
      %v3400 = vmul.f32 %v3364, %v3384
      %v3401 = vmul.f32 %v3365, %v3384
      %v3402 = vmul.f32 %v3366, %v3384
      %v3403 = vmul.f32 %v3367, %v3384
      %v3404 = vmul.f32 %v3368, %v3384
      %v3405 = vmul.f32 %v3369, %v3384
      %v3406 = vmul.f32 %v3370, %v3384
      %v3407 = vmul.f32 %v3371, %v3384
      %v3408 = vmul.f32 %v3372, %v3384
      %v3409 = vmul.f32 %v3373, %v3384
      %v3410 = vmul.f32 %v3374, %v3384
      %v3411 = vmul.f32 %v3375, %v3384
      %v3412 = vmul.f32 %v3376, %v3384
      %v3413 = vmul.f32 %v3377, %v3384
      %v3414 = vmul.f32 %v3378, %v3384
      %v3415 = vmul.f32 %v3379, %v3384
      %v3416 = vmul.f32 %v3380, %v3384
      %v3417 = vadd.f32 %v3314, %v3385
      %v3418 = vadd.f32 %v3315, %v3386
      %v3419 = vadd.f32 %v3316, %v3387
      %v3420 = vadd.f32 %v3317, %v3388
      %v3421 = vadd.f32 %v3318, %v3389
      %v3422 = vadd.f32 %v3319, %v3390
      %v3423 = vadd.f32 %v3320, %v3391
      %v3424 = vadd.f32 %v3321, %v3392
      %v3425 = vadd.f32 %v3322, %v3393
      %v3426 = vadd.f32 %v3323, %v3394
      %v3427 = vadd.f32 %v3324, %v3395
      %v3428 = vadd.f32 %v3325, %v3396
      %v3429 = vadd.f32 %v3326, %v3397
      %v3430 = vadd.f32 %v3327, %v3398
      %v3431 = vadd.f32 %v3328, %v3399
      %v3432 = vadd.f32 %v3329, %v3400
      %v3433 = vadd.f32 %v3330, %v3401
      %v3434 = vadd.f32 %v3331, %v3402
      %v3435 = vadd.f32 %v3332, %v3403
      %v3436 = vadd.f32 %v3333, %v3404
      %v3437 = vadd.f32 %v3334, %v3405
      %v3438 = vadd.f32 %v3335, %v3406
      %v3439 = vadd.f32 %v3336, %v3407
      %v3440 = vadd.f32 %v3337, %v3408
      %v3441 = vadd.f32 %v3338, %v3409
      %v3442 = vadd.f32 %v3339, %v3410
      %v3443 = vadd.f32 %v3340, %v3411
      %v3444 = vadd.f32 %v3341, %v3412
      %v3445 = vadd.f32 %v3342, %v3413
      %v3446 = vadd.f32 %v3343, %v3414
      %v3447 = vadd.f32 %v3344, %v3415
      %v3448 = vadd.f32 %v3345, %v3416
      %v3449 = vld [vmem:[%s3346 + $0x1] sm:$0x1]
      %v3450 = vld [vmem:[%s3348 + $0x8] sm:$0xff]
      %v3451 = vld [vmem:[%s3348 + $0x20] sm:$0xff]
      %v3452 = vld [vmem:[%s3348 + $0x38] sm:$0xff]
      %v3453 = vld [vmem:[%s3348 + $0x50] sm:$0xff]
      %v3454 = vld [vmem:[%s3348 + $0x68] sm:$0xff]
      %v3455 = vld [vmem:[%s3348 + $0x80] sm:$0xff]
      %v3456 = vld [vmem:[%s3348 + $0x98] sm:$0xff]
      %v3457 = vld [vmem:[%s3348 + $0xb0] sm:$0xff]
      %v3458 = vld [vmem:[%s3348 + $0xf8] sm:$0xff]
      %v3459 = vld [vmem:[%s3348 + $0x110] sm:$0xff]
      %v3460 = vld [vmem:[%s3348 + $0x128] sm:$0xff]
      %v3461 = vld [vmem:[%s3348 + $0x140] sm:$0xff]
      %v3462 = vld [vmem:[%s3348 + $0x158] sm:$0xff]
      %v3463 = vld [vmem:[%s3348 + $0x170] sm:$0xff]
      %v3464 = vld [vmem:[%s3348 + $0x188] sm:$0xff]
      %v3465 = vld [vmem:[%s3348 + $0x1a0] sm:$0xff]
      %v3466 = vld [vmem:[%s3348 + $0x1e8] sm:$0xff]
      %v3467 = vld [vmem:[%s3348 + $0x200] sm:$0xff]
      %v3468 = vld [vmem:[%s3348 + $0x218] sm:$0xff]
      %v3469 = vld [vmem:[%s3348 + $0x230] sm:$0xff]
      %v3470 = vld [vmem:[%s3348 + $0x248] sm:$0xff]
      %v3471 = vld [vmem:[%s3348 + $0x260] sm:$0xff]
      %v3472 = vld [vmem:[%s3348 + $0x278] sm:$0xff]
      %v3473 = vld [vmem:[%s3348 + $0x290] sm:$0xff]
      %v3474 = vld [vmem:[%s3348 + $0x2d8] sm:$0xff]
      %v3475 = vld [vmem:[%s3348 + $0x2f0] sm:$0xff]
      %v3476 = vld [vmem:[%s3348 + $0x308] sm:$0xff]
      %v3477 = vld [vmem:[%s3348 + $0x320] sm:$0xff]
      %v3478 = vld [vmem:[%s3348 + $0x338] sm:$0xff]
      %v3479 = vld [vmem:[%s3348 + $0x350] sm:$0xff]
      %v3480 = vld [vmem:[%s3348 + $0x368] sm:$0xff]
      %v3481 = vld [vmem:[%s3348 + $0x380] sm:$0xff]
      %v3482 = vlaneseq
      %v3483 = vshrl.u32 %v3482, 7
      %v3484 = vsub.s32 0, %v3483
      %v3485 = vrot.slane %v3449, %v3484
      %v3486 = vmul.f32 %v3450, %v3485
      %v3487 = vmul.f32 %v3451, %v3485
      %v3488 = vmul.f32 %v3452, %v3485
      %v3489 = vmul.f32 %v3453, %v3485
      %v3490 = vmul.f32 %v3454, %v3485
      %v3491 = vmul.f32 %v3455, %v3485
      %v3492 = vmul.f32 %v3456, %v3485
      %v3493 = vmul.f32 %v3457, %v3485
      %v3494 = vmul.f32 %v3458, %v3485
      %v3495 = vmul.f32 %v3459, %v3485
      %v3496 = vmul.f32 %v3460, %v3485
      %v3497 = vmul.f32 %v3461, %v3485
      %v3498 = vmul.f32 %v3462, %v3485
      %v3499 = vmul.f32 %v3463, %v3485
      %v3500 = vmul.f32 %v3464, %v3485
      %v3501 = vmul.f32 %v3465, %v3485
      %v3502 = vmul.f32 %v3466, %v3485
      %v3503 = vmul.f32 %v3467, %v3485
      %v3504 = vmul.f32 %v3468, %v3485
      %v3505 = vmul.f32 %v3469, %v3485
      %v3506 = vmul.f32 %v3470, %v3485
      %v3507 = vmul.f32 %v3471, %v3485
      %v3508 = vmul.f32 %v3472, %v3485
      %v3509 = vmul.f32 %v3473, %v3485
      %v3510 = vmul.f32 %v3474, %v3485
      %v3511 = vmul.f32 %v3475, %v3485
      %v3512 = vmul.f32 %v3476, %v3485
      %v3513 = vmul.f32 %v3477, %v3485
      %v3514 = vmul.f32 %v3478, %v3485
      %v3515 = vmul.f32 %v3479, %v3485
      %v3516 = vmul.f32 %v3480, %v3485
      %v3517 = vmul.f32 %v3481, %v3485
      %v3518 = vadd.f32 %v3417, %v3486
      %v3519 = vadd.f32 %v3418, %v3487
      %v3520 = vadd.f32 %v3419, %v3488
      %v3521 = vadd.f32 %v3420, %v3489
      %v3522 = vadd.f32 %v3421, %v3490
      %v3523 = vadd.f32 %v3422, %v3491
      %v3524 = vadd.f32 %v3423, %v3492
      %v3525 = vadd.f32 %v3424, %v3493
      %v3526 = vadd.f32 %v3425, %v3494
      %v3527 = vadd.f32 %v3426, %v3495
      %v3528 = vadd.f32 %v3427, %v3496
      %v3529 = vadd.f32 %v3428, %v3497
      %v3530 = vadd.f32 %v3429, %v3498
      %v3531 = vadd.f32 %v3430, %v3499
      %v3532 = vadd.f32 %v3431, %v3500
      %v3533 = vadd.f32 %v3432, %v3501
      %v3534 = vadd.f32 %v3433, %v3502
      %v3535 = vadd.f32 %v3434, %v3503
      %v3536 = vadd.f32 %v3435, %v3504
      %v3537 = vadd.f32 %v3436, %v3505
      %v3538 = vadd.f32 %v3437, %v3506
      %v3539 = vadd.f32 %v3438, %v3507
      %v3540 = vadd.f32 %v3439, %v3508
      %v3541 = vadd.f32 %v3440, %v3509
      %v3542 = vadd.f32 %v3441, %v3510
      %v3543 = vadd.f32 %v3442, %v3511
      %v3544 = vadd.f32 %v3443, %v3512
      %v3545 = vadd.f32 %v3444, %v3513
      %v3546 = vadd.f32 %v3445, %v3514
      %v3547 = vadd.f32 %v3446, %v3515
      %v3548 = vadd.f32 %v3447, %v3516
      %v3549 = vadd.f32 %v3448, %v3517
      %v3550 = vld [vmem:[%s3346 + $0x2] sm:$0x1]
      %v3551 = vld [vmem:[%s3348 + $0x9] sm:$0xff]
      %v3552 = vld [vmem:[%s3348 + $0x21] sm:$0xff]
      %v3553 = vld [vmem:[%s3348 + $0x39] sm:$0xff]
      %v3554 = vld [vmem:[%s3348 + $0x51] sm:$0xff]
      %v3555 = vld [vmem:[%s3348 + $0x69] sm:$0xff]
      %v3556 = vld [vmem:[%s3348 + $0x81] sm:$0xff]
      %v3557 = vld [vmem:[%s3348 + $0x99] sm:$0xff]
      %v3558 = vld [vmem:[%s3348 + $0xb1] sm:$0xff]
      %v3559 = vld [vmem:[%s3348 + $0xf9] sm:$0xff]
      %v3560 = vld [vmem:[%s3348 + $0x111] sm:$0xff]
      %v3561 = vld [vmem:[%s3348 + $0x129] sm:$0xff]
      %v3562 = vld [vmem:[%s3348 + $0x141] sm:$0xff]
      %v3563 = vld [vmem:[%s3348 + $0x159] sm:$0xff]
      %v3564 = vld [vmem:[%s3348 + $0x171] sm:$0xff]
      %v3565 = vld [vmem:[%s3348 + $0x189] sm:$0xff]
      %v3566 = vld [vmem:[%s3348 + $0x1a1] sm:$0xff]
      %v3567 = vld [vmem:[%s3348 + $0x1e9] sm:$0xff]
      %v3568 = vld [vmem:[%s3348 + $0x201] sm:$0xff]
      %v3569 = vld [vmem:[%s3348 + $0x219] sm:$0xff]
      %v3570 = vld [vmem:[%s3348 + $0x231] sm:$0xff]
      %v3571 = vld [vmem:[%s3348 + $0x249] sm:$0xff]
      %v3572 = vld [vmem:[%s3348 + $0x261] sm:$0xff]
      %v3573 = vld [vmem:[%s3348 + $0x279] sm:$0xff]
      %v3574 = vld [vmem:[%s3348 + $0x291] sm:$0xff]
      %v3575 = vld [vmem:[%s3348 + $0x2d9] sm:$0xff]
      %v3576 = vld [vmem:[%s3348 + $0x2f1] sm:$0xff]
      %v3577 = vld [vmem:[%s3348 + $0x309] sm:$0xff]
      %v3578 = vld [vmem:[%s3348 + $0x321] sm:$0xff]
      %v3579 = vld [vmem:[%s3348 + $0x339] sm:$0xff]
      %v3580 = vld [vmem:[%s3348 + $0x351] sm:$0xff]
      %v3581 = vld [vmem:[%s3348 + $0x369] sm:$0xff]
      %v3582 = vld [vmem:[%s3348 + $0x381] sm:$0xff]
      %v3583 = vlaneseq
      %v3584 = vshrl.u32 %v3583, 7
      %v3585 = vsub.s32 0, %v3584
      %v3586 = vrot.slane %v3550, %v3585
      %v3587 = vmul.f32 %v3551, %v3586
      %v3588 = vmul.f32 %v3552, %v3586
      %v3589 = vmul.f32 %v3553, %v3586
      %v3590 = vmul.f32 %v3554, %v3586
      %v3591 = vmul.f32 %v3555, %v3586
      %v3592 = vmul.f32 %v3556, %v3586
      %v3593 = vmul.f32 %v3557, %v3586
      %v3594 = vmul.f32 %v3558, %v3586
      %v3595 = vmul.f32 %v3559, %v3586
      %v3596 = vmul.f32 %v3560, %v3586
      %v3597 = vmul.f32 %v3561, %v3586
      %v3598 = vmul.f32 %v3562, %v3586
      %v3599 = vmul.f32 %v3563, %v3586
      %v3600 = vmul.f32 %v3564, %v3586
      %v3601 = vmul.f32 %v3565, %v3586
      %v3602 = vmul.f32 %v3566, %v3586
      %v3603 = vmul.f32 %v3567, %v3586
      %v3604 = vmul.f32 %v3568, %v3586
      %v3605 = vmul.f32 %v3569, %v3586
      %v3606 = vmul.f32 %v3570, %v3586
      %v3607 = vmul.f32 %v3571, %v3586
      %v3608 = vmul.f32 %v3572, %v3586
      %v3609 = vmul.f32 %v3573, %v3586
      %v3610 = vmul.f32 %v3574, %v3586
      %v3611 = vmul.f32 %v3575, %v3586
      %v3612 = vmul.f32 %v3576, %v3586
      %v3613 = vmul.f32 %v3577, %v3586
      %v3614 = vmul.f32 %v3578, %v3586
      %v3615 = vmul.f32 %v3579, %v3586
      %v3616 = vmul.f32 %v3580, %v3586
      %v3617 = vmul.f32 %v3581, %v3586
      %v3618 = vmul.f32 %v3582, %v3586
      %v3619 = vadd.f32 %v3518, %v3587
      %v3620 = vadd.f32 %v3519, %v3588
      %v3621 = vadd.f32 %v3520, %v3589
      %v3622 = vadd.f32 %v3521, %v3590
      %v3623 = vadd.f32 %v3522, %v3591
      %v3624 = vadd.f32 %v3523, %v3592
      %v3625 = vadd.f32 %v3524, %v3593
      %v3626 = vadd.f32 %v3525, %v3594
      %v3627 = vadd.f32 %v3526, %v3595
      %v3628 = vadd.f32 %v3527, %v3596
      %v3629 = vadd.f32 %v3528, %v3597
      %v3630 = vadd.f32 %v3529, %v3598
      %v3631 = vadd.f32 %v3530, %v3599
      %v3632 = vadd.f32 %v3531, %v3600
      %v3633 = vadd.f32 %v3532, %v3601
      %v3634 = vadd.f32 %v3533, %v3602
      %v3635 = vadd.f32 %v3534, %v3603
      %v3636 = vadd.f32 %v3535, %v3604
      %v3637 = vadd.f32 %v3536, %v3605
      %v3638 = vadd.f32 %v3537, %v3606
      %v3639 = vadd.f32 %v3538, %v3607
      %v3640 = vadd.f32 %v3539, %v3608
      %v3641 = vadd.f32 %v3540, %v3609
      %v3642 = vadd.f32 %v3541, %v3610
      %v3643 = vadd.f32 %v3542, %v3611
      %v3644 = vadd.f32 %v3543, %v3612
      %v3645 = vadd.f32 %v3544, %v3613
      %v3646 = vadd.f32 %v3545, %v3614
      %v3647 = vadd.f32 %v3546, %v3615
      %v3648 = vadd.f32 %v3547, %v3616
      %v3649 = vadd.f32 %v3548, %v3617
      %v3650 = vadd.f32 %v3549, %v3618
      %v3651 = vsel %vm695, %v3619, 0.0
      %v3652 = vsel %vm695, %v3620, 0.0
      %v3653 = vadd.f32 %v3651, %v3652
      %v3654 = vsel %vm695, %v3621, 0.0
      %v3655 = vadd.f32 %v3653, %v3654
      %v3656 = vsel %vm695, %v3622, 0.0
      %v3657 = vadd.f32 %v3655, %v3656
      %v3658 = vsel %vm695, %v3623, 0.0
      %v3659 = vadd.f32 %v3657, %v3658
      %v3660 = vsel %vm695, %v3624, 0.0
      %v3661 = vadd.f32 %v3659, %v3660
      %v3662 = vsel %vm695, %v3625, 0.0
      %v3663 = vadd.f32 %v3661, %v3662
      %v3664 = vsel %vm695, %v3626, 0.0
      %v3665 = vadd.f32 %v3663, %v3664
      %v3666 = vsel %vm695, %v3627, 0.0
      %v3667 = vadd.f32 %v3665, %v3666
      %v3668 = vsel %vm695, %v3628, 0.0
      %v3669 = vadd.f32 %v3667, %v3668
      %v3670 = vsel %vm695, %v3629, 0.0
      %v3671 = vadd.f32 %v3669, %v3670
      %v3672 = vsel %vm695, %v3630, 0.0
      %v3673 = vadd.f32 %v3671, %v3672
      %v3674 = vsel %vm695, %v3631, 0.0
      %v3675 = vadd.f32 %v3673, %v3674
      %v3676 = vsel %vm695, %v3632, 0.0
      %v3677 = vadd.f32 %v3675, %v3676
      %v3678 = vsel %vm695, %v3633, 0.0
      %v3679 = vadd.f32 %v3677, %v3678
      %v3680 = vsel %vm695, %v3634, 0.0
      %v3681 = vadd.f32 %v3679, %v3680
      %v3682 = vsel %vm695, %v3635, 0.0
      %v3683 = vadd.f32 %v3681, %v3682
      %v3684 = vsel %vm695, %v3636, 0.0
      %v3685 = vadd.f32 %v3683, %v3684
      %v3686 = vsel %vm695, %v3637, 0.0
      %v3687 = vadd.f32 %v3685, %v3686
      %v3688 = vsel %vm695, %v3638, 0.0
      %v3689 = vadd.f32 %v3687, %v3688
      %v3690 = vsel %vm695, %v3639, 0.0
      %v3691 = vadd.f32 %v3689, %v3690
      %v3692 = vsel %vm695, %v3640, 0.0
      %v3693 = vadd.f32 %v3691, %v3692
      %v3694 = vsel %vm695, %v3641, 0.0
      %v3695 = vadd.f32 %v3693, %v3694
      %v3696 = vsel %vm695, %v3642, 0.0
      %v3697 = vadd.f32 %v3695, %v3696
      %v3698 = vsel %vm695, %v3643, 0.0
      %v3699 = vadd.f32 %v3697, %v3698
      %v3700 = vsel %vm695, %v3644, 0.0
      %v3701 = vadd.f32 %v3699, %v3700
      %v3702 = vsel %vm695, %v3645, 0.0
      %v3703 = vadd.f32 %v3701, %v3702
      %v3704 = vsel %vm695, %v3646, 0.0
      %v3705 = vadd.f32 %v3703, %v3704
      %v3706 = vsel %vm695, %v3647, 0.0
      %v3707 = vadd.f32 %v3705, %v3706
      %v3708 = vsel %vm695, %v3648, 0.0
      %v3709 = vadd.f32 %v3707, %v3708
      %v3710 = vsel %vm695, %v3649, 0.0
      %v3711 = vadd.f32 %v3709, %v3710
      %v3712 = vsel %vm695, %v3650, 0.0
      %v3713 = vadd.f32 %v3711, %v3712
      %v3714 = vrot.slane %v3713, 4
      %v3715 = vadd.f32 %v3713, %v3714
      %v3716 = vrot.slane %v3715, 2
      %v3717 = vadd.f32 %v3715, %v3716
      %v3718 = vrot.slane %v3717, 1
      %v3719 = vadd.f32 %v3717, %v3718
      %v3720 = vmul.f32 %v3719, 0.00390625
      %v3721 = vld [vmem:[%s3] sm:$0xff]
      %v3722 = vld [vmem:[%s3 + $0x8] sm:$0xff]
      %v3723 = vld [vmem:[%s3 + $0x10] sm:$0xff]
      %v3724 = vld [vmem:[%s3 + $0x18] sm:$0xff]
      %v3725 = vld [vmem:[%s4] sm:$0x1]
      %v3727 = vsel %vm695, %v3720, 0
      %3729 = vmatprep.subr.mxu0 0.0
      %3730 = vmatpush1.msra.mxu0 0.0
      %3731 = vmatprep.subr.mxu0 0.0
      %3732 = vmatpush1.msra.mxu0 0.0
      %3733 = vmatprep.subr.mxu0 0.0
      %3734 = vmatpush1.msra.mxu0 0.0
      %3735 = vmatprep.subr.mxu0 0.0
      %3736 = vmatpush1.msra.mxu0 0.0
      %3737 = vmatprep.subr.mxu0 0.0
      %3738 = vmatpush1.msra.mxu0 0.0
      %3739 = vmatprep.subr.mxu0 0.0
      %3740 = vmatpush1.msra.mxu0 0.0
      %3741 = vmatprep.subr.mxu0 0.0
      %3742 = vmatpush1.msra.mxu0 0.0
      %3743 = vmatprep.subr.mxu0 0.0
      %3744 = vmatpush1.msra.mxu0 0.0
      %3745 = vmatprep.subr.mxu0 0.0
      %3746 = vmatpush1.msra.mxu0 0.0
      %3747 = vmatprep.subr.mxu0 0.0
      %3748 = vmatpush1.msra.mxu0 0.0
      %3749 = vmatprep.subr.mxu0 0.0
      %3750 = vmatpush1.msra.mxu0 0.0
      %3751 = vmatprep.subr.mxu0 0.0
      %3752 = vmatpush1.msra.mxu0 0.0
      %3753 = vmatprep.subr.mxu0 0.0
      %3754 = vmatpush1.msra.mxu0 %v3724
      %3755 = vmatprep.subr.mxu0 0.0
      %3756 = vmatpush1.msra.mxu0 %v3723
      %3757 = vmatprep.subr.mxu0 0.0
      %3758 = vmatpush1.msra.mxu0 %v3722
      %3759 = vmatprep.subr.mxu0 0.0
      %3760 = vmatpush1.msra.mxu0 %v3721
      %3761 = vmatprep.subr.mxu0 0.0
      %3762 = vmatpush2.msra.mxu0 0.0
      %3763 = vmatprep.subr.mxu0 0.0
      %3764 = vmatpush2.msra.mxu0 0.0
      %3765 = vmatprep.subr.mxu0 0.0
      %3766 = vmatpush2.msra.mxu0 0.0
      %3767 = vmatprep.subr.mxu0 0.0
      %3768 = vmatpush2.msra.mxu0 0.0
      %3769 = vmatprep.subr.mxu0 0.0
      %3770 = vmatpush2.msra.mxu0 0.0
      %3771 = vmatprep.subr.mxu0 0.0
      %3772 = vmatpush2.msra.mxu0 0.0
      %3773 = vmatprep.subr.mxu0 0.0
      %3774 = vmatpush2.msra.mxu0 0.0
      %3775 = vmatprep.subr.mxu0 0.0
      %3776 = vmatpush2.msra.mxu0 0.0
      %3777 = vmatprep.subr.mxu0 0.0
      %3778 = vmatpush2.msra.mxu0 0.0
      %3779 = vmatprep.subr.mxu0 0.0
      %3780 = vmatpush2.msra.mxu0 0.0
      %3781 = vmatprep.subr.mxu0 0.0
      %3782 = vmatpush2.msra.mxu0 0.0
      %3783 = vmatprep.subr.mxu0 0.0
      %3784 = vmatpush2.msra.mxu0 0.0
      %3785 = vmatprep.subr.mxu0 0.0
      %3786 = vmatpush2.msra.mxu0 0.0
      %3787 = vmatprep.subr.mxu0 0.0
      %3788 = vmatpush2.msra.mxu0 0.0
      %3789 = vmatprep.subr.mxu0 0.0
      %3790 = vmatpush2.msra.mxu0 0.0
      %3791 = vmatprep.subr.mxu0 0.0
      %3792 = vmatpush2.msra.mxu0 0.0
      %3793 = vmatprep.mubr.f32.mxu0 0.0
      %3794 = vmatmul.mubr.f32.gmra.mxu0 %v3727
      %v3795 = vpop.f32.mrf.mxu0
      %v3796 = vadd.f32 %v3725, %v3795
      %v3797 = vpop.f32.mrf.mxu0
      %3798 = vdwg.mxu0
      %v3799 = vld [vmem:[%s5] sm:$0xff]
      %v3800 = vld [vmem:[%s6] sm:$0x1]
      %v3802 = vsel %vm373, %v3796, 0
      %3804 = vmatprep.subr.mxu0 0.0
      %3805 = vmatpush1.msra.mxu0 0.0
      %3806 = vmatprep.subr.mxu0 0.0
      %3807 = vmatpush1.msra.mxu0 0.0
      %3808 = vmatprep.subr.mxu0 0.0
      %3809 = vmatpush1.msra.mxu0 0.0
      %3810 = vmatprep.subr.mxu0 0.0
      %3811 = vmatpush1.msra.mxu0 0.0
      %3812 = vmatprep.subr.mxu0 0.0
      %3813 = vmatpush1.msra.mxu0 0.0
      %3814 = vmatprep.subr.mxu0 0.0
      %3815 = vmatpush1.msra.mxu0 0.0
      %3816 = vmatprep.subr.mxu0 0.0
      %3817 = vmatpush1.msra.mxu0 0.0
      %3818 = vmatprep.subr.mxu0 0.0
      %3819 = vmatpush1.msra.mxu0 0.0
      %3820 = vmatprep.subr.mxu0 0.0
      %3821 = vmatpush1.msra.mxu0 0.0
      %3822 = vmatprep.subr.mxu0 0.0
      %3823 = vmatpush1.msra.mxu0 0.0
      %3824 = vmatprep.subr.mxu0 0.0
      %3825 = vmatpush1.msra.mxu0 0.0
      %3826 = vmatprep.subr.mxu0 0.0
      %3827 = vmatpush1.msra.mxu0 0.0
      %3828 = vmatprep.subr.mxu0 0.0
      %3829 = vmatpush1.msra.mxu0 0.0
      %3830 = vmatprep.subr.mxu0 0.0
      %3831 = vmatpush1.msra.mxu0 0.0
      %3832 = vmatprep.subr.mxu0 0.0
      %3833 = vmatpush1.msra.mxu0 0.0
      %3834 = vmatprep.subr.mxu0 0.0
      %3835 = vmatpush1.msra.mxu0 %v3799
      %3836 = vmatprep.subr.mxu0 0.0
      %3837 = vmatpush2.msra.mxu0 0.0
      %3838 = vmatprep.subr.mxu0 0.0
      %3839 = vmatpush2.msra.mxu0 0.0
      %3840 = vmatprep.subr.mxu0 0.0
      %3841 = vmatpush2.msra.mxu0 0.0
      %3842 = vmatprep.subr.mxu0 0.0
      %3843 = vmatpush2.msra.mxu0 0.0
      %3844 = vmatprep.subr.mxu0 0.0
      %3845 = vmatpush2.msra.mxu0 0.0
      %3846 = vmatprep.subr.mxu0 0.0
      %3847 = vmatpush2.msra.mxu0 0.0
      %3848 = vmatprep.subr.mxu0 0.0
      %3849 = vmatpush2.msra.mxu0 0.0
      %3850 = vmatprep.subr.mxu0 0.0
      %3851 = vmatpush2.msra.mxu0 0.0
      %3852 = vmatprep.subr.mxu0 0.0
      %3853 = vmatpush2.msra.mxu0 0.0
      %3854 = vmatprep.subr.mxu0 0.0
      %3855 = vmatpush2.msra.mxu0 0.0
      %3856 = vmatprep.subr.mxu0 0.0
      %3857 = vmatpush2.msra.mxu0 0.0
      %3858 = vmatprep.subr.mxu0 0.0
      %3859 = vmatpush2.msra.mxu0 0.0
      %3860 = vmatprep.subr.mxu0 0.0
      %3861 = vmatpush2.msra.mxu0 0.0
      %3862 = vmatprep.subr.mxu0 0.0
      %3863 = vmatpush2.msra.mxu0 0.0
      %3864 = vmatprep.subr.mxu0 0.0
      %3865 = vmatpush2.msra.mxu0 0.0
      %3866 = vmatprep.subr.mxu0 0.0
      %3867 = vmatpush2.msra.mxu0 0.0
      %3868 = vmatprep.mubr.f32.mxu0 0.0
      %3869 = vmatmul.mubr.f32.gmra.mxu0 %v3802
      %v3870 = vpop.f32.mrf.mxu0
      %v3871 = vadd.f32 %v3800, %v3870
      %v3872 = vpop.f32.mrf.mxu0
      %3873 = vdwg.mxu0
      %v3874 = vxor.u32 %v3871, 2147483648
      %v3875 = vmul.f32 %v3874, 1.442695
      %v3876 = vpow.pop %v3875
      %v3877 = vadd.f32 %v3876, 1.0
      %v3878 = vrcp.pop %v3877
      %v3879 = vmul.f32 1.0, %v3878
      %v3880 = vlaneseq
      %v3881 = vshrl.u32 %v3880, 7
      %v3882 = vsub.s32 0, %v3881
      %v3883 = vrot.slane %v3879, %v3882
      %v3884 = vmul.f32 %v3619, %v3883
      %v3885 = vmul.f32 %v3620, %v3883
      %v3886 = vmul.f32 %v3621, %v3883
      %v3887 = vmul.f32 %v3622, %v3883
      %v3888 = vmul.f32 %v3623, %v3883
      %v3889 = vmul.f32 %v3624, %v3883
      %v3890 = vmul.f32 %v3625, %v3883
      %v3891 = vmul.f32 %v3626, %v3883
      %v3892 = vmul.f32 %v3627, %v3883
      %v3893 = vmul.f32 %v3628, %v3883
      %v3894 = vmul.f32 %v3629, %v3883
      %v3895 = vmul.f32 %v3630, %v3883
      %v3896 = vmul.f32 %v3631, %v3883
      %v3897 = vmul.f32 %v3632, %v3883
      %v3898 = vmul.f32 %v3633, %v3883
      %v3899 = vmul.f32 %v3634, %v3883
      %v3900 = vmul.f32 %v3635, %v3883
      %v3901 = vmul.f32 %v3636, %v3883
      %v3902 = vmul.f32 %v3637, %v3883
      %v3903 = vmul.f32 %v3638, %v3883
      %v3904 = vmul.f32 %v3639, %v3883
      %v3905 = vmul.f32 %v3640, %v3883
      %v3906 = vmul.f32 %v3641, %v3883
      %v3907 = vmul.f32 %v3642, %v3883
      %v3908 = vmul.f32 %v3643, %v3883
      %v3909 = vmul.f32 %v3644, %v3883
      %v3910 = vmul.f32 %v3645, %v3883
      %v3911 = vmul.f32 %v3646, %v3883
      %v3912 = vmul.f32 %v3647, %v3883
      %v3913 = vmul.f32 %v3648, %v3883
      %v3914 = vmul.f32 %v3649, %v3883
      %v3915 = vmul.f32 %v3650, %v3883
      %v3916 = vld [vmem:[%s7] sm:$0xff]
      %v3918 = vsel %vm695, %v3916, 0
      %v3921 = vsel %vm695, %v3884, 0
      %v3924 = vsel %vm695, %v3885, 0
      %v3927 = vsel %vm695, %v3886, 0
      %v3930 = vsel %vm695, %v3887, 0
      %v3933 = vsel %vm695, %v3888, 0
      %v3936 = vsel %vm695, %v3889, 0
      %v3939 = vsel %vm695, %v3890, 0
      %v3942 = vsel %vm695, %v3891, 0
      %v3945 = vsel %vm695, %v3892, 0
      %v3948 = vsel %vm695, %v3893, 0
      %v3951 = vsel %vm695, %v3894, 0
      %v3954 = vsel %vm695, %v3895, 0
      %v3957 = vsel %vm695, %v3896, 0
      %v3960 = vsel %vm695, %v3897, 0
      %v3963 = vsel %vm695, %v3898, 0
      %v3966 = vsel %vm695, %v3899, 0
      %v3969 = vsel %vm695, %v3900, 0
      %v3972 = vsel %vm695, %v3901, 0
      %v3975 = vsel %vm695, %v3902, 0
      %v3978 = vsel %vm695, %v3903, 0
      %v3981 = vsel %vm695, %v3904, 0
      %v3984 = vsel %vm695, %v3905, 0
      %v3987 = vsel %vm695, %v3906, 0
      %v3990 = vsel %vm695, %v3907, 0
      %v3993 = vsel %vm695, %v3908, 0
      %v3996 = vsel %vm695, %v3909, 0
      %v3999 = vsel %vm695, %v3910, 0
      %v4002 = vsel %vm695, %v3911, 0
      %v4005 = vsel %vm695, %v3912, 0
      %v4008 = vsel %vm695, %v3913, 0
      %v4011 = vsel %vm695, %v3914, 0
      %v4014 = vsel %vm695, %v3915, 0
      %4016 = vmatprep.subr.mxu0 0.0
      %4017 = vmatpush1.xpose.msra.mxu0 %v3966
      %4018 = vmatprep.subr.mxu0 0.0
      %4019 = vmatpush1.xpose.msra.mxu0 %v3963
      %4020 = vmatprep.subr.mxu0 0.0
      %4021 = vmatpush1.xpose.msra.mxu0 %v3960
      %4022 = vmatprep.subr.mxu0 0.0
      %4023 = vmatpush1.xpose.msra.mxu0 %v3957
      %4024 = vmatprep.subr.mxu0 0.0
      %4025 = vmatpush1.xpose.msra.mxu0 %v3954
      %4026 = vmatprep.subr.mxu0 0.0
      %4027 = vmatpush1.xpose.msra.mxu0 %v3951
      %4028 = vmatprep.subr.mxu0 0.0
      %4029 = vmatpush1.xpose.msra.mxu0 %v3948
      %4030 = vmatprep.subr.mxu0 0.0
      %4031 = vmatpush1.xpose.msra.mxu0 %v3945
      %4032 = vmatprep.subr.mxu0 0.0
      %4033 = vmatpush1.xpose.msra.mxu0 %v3942
      %4034 = vmatprep.subr.mxu0 0.0
      %4035 = vmatpush1.xpose.msra.mxu0 %v3939
      %4036 = vmatprep.subr.mxu0 0.0
      %4037 = vmatpush1.xpose.msra.mxu0 %v3936
      %4038 = vmatprep.subr.mxu0 0.0
      %4039 = vmatpush1.xpose.msra.mxu0 %v3933
      %4040 = vmatprep.subr.mxu0 0.0
      %4041 = vmatpush1.xpose.msra.mxu0 %v3930
      %4042 = vmatprep.subr.mxu0 0.0
      %4043 = vmatpush1.xpose.msra.mxu0 %v3927
      %4044 = vmatprep.subr.mxu0 0.0
      %4045 = vmatpush1.xpose.msra.mxu0 %v3924
      %4046 = vmatprep.subr.mxu0 0.0
      %4047 = vmatpush1.xpose.msra.mxu0 %v3921
      %4048 = vmatprep.subr.mxu0 0.0
      %4049 = vmatpush2.xpose.msra.mxu0 %v4014
      %4050 = vmatprep.subr.mxu0 0.0
      %4051 = vmatpush2.xpose.msra.mxu0 %v4011
      %4052 = vmatprep.subr.mxu0 0.0
      %4053 = vmatpush2.xpose.msra.mxu0 %v4008
      %4054 = vmatprep.subr.mxu0 0.0
      %4055 = vmatpush2.xpose.msra.mxu0 %v4005
      %4056 = vmatprep.subr.mxu0 0.0
      %4057 = vmatpush2.xpose.msra.mxu0 %v4002
      %4058 = vmatprep.subr.mxu0 0.0
      %4059 = vmatpush2.xpose.msra.mxu0 %v3999
      %4060 = vmatprep.subr.mxu0 0.0
      %4061 = vmatpush2.xpose.msra.mxu0 %v3996
      %4062 = vmatprep.subr.mxu0 0.0
      %4063 = vmatpush2.xpose.msra.mxu0 %v3993
      %4064 = vmatprep.subr.mxu0 0.0
      %4065 = vmatpush2.xpose.msra.mxu0 %v3990
      %4066 = vmatprep.subr.mxu0 0.0
      %4067 = vmatpush2.xpose.msra.mxu0 %v3987
      %4068 = vmatprep.subr.mxu0 0.0
      %4069 = vmatpush2.xpose.msra.mxu0 %v3984
      %4070 = vmatprep.subr.mxu0 0.0
      %4071 = vmatpush2.xpose.msra.mxu0 %v3981
      %4072 = vmatprep.subr.mxu0 0.0
      %4073 = vmatpush2.xpose.msra.mxu0 %v3978
      %4074 = vmatprep.subr.mxu0 0.0
      %4075 = vmatpush2.xpose.msra.mxu0 %v3975
      %4076 = vmatprep.subr.mxu0 0.0
      %4077 = vmatpush2.xpose.msra.mxu0 %v3972
      %4078 = vmatprep.subr.mxu0 0.0
      %4079 = vmatpush2.xpose.msra.mxu0 %v3969
      %4080 = vmatprep.mubr.f32.mxu0 0.0
      %4081 = vmatmul.mubr.f32.gmra.mxu0 %v3918
      %v4082 = vpop.f32.mrf.mxu0
      %v4083 = vadd.f32 0.0, %v4082
      %v4084 = vpop.f32.mrf.mxu0
      %v4085 = vadd.f32 0.0, %v4084
      %4086 = vdwg.mxu0
      %v4087 = vmul.f32 %v4083, 0.5
      %v4088 = vmul.f32 %v4085, 0.5
      %v4089 = vadd.f32 %v306, %v4087
      %v4090 = vadd.f32 %v307, %v4088
      %4091 = vst [vmem:[%s305] sm:$0xff] %v4089
      %4092 = vst [vmem:[%s305 + $0x8] sm:$0xff] %v4090
      %p4093 = scmp.lt.s32.totalorder %s19, 1
      %s4094 = scalar_select %p4093, %s19, 1
      %s4095 = smul.addr %s4094, 2
      %s4096 = smul.addr %s4095, 8
      %s4097 = scalar_lea.vmem %s8, %s4096
      // Predicated region
      $region53: #{basic_bneck_forward.1} parent=51 // pred_check
        %p4098 = pneg %p210
      $region54: #{basic_bneck_forward.1} parent=51 // pred_check_branch
        %4100 = sbr.rel (%p4098) target = $region56
      $region55: #{basic_bneck_forward.1} parent=51 // pred_region
        _
      $region56: #{basic_bneck_forward.1} parent=51 // pred_fallthru
        _
    $region52: #{basic_bneck_forward.1} parent=5 // pred_fallthru
      _
    %p4101 = scmp.le.s32.totalorder 2, %s14
    // Predicated region
    $region57: #{basic_bneck_forward.1} parent=5 // pred_check
      %p4102 = pneg %p4101
    $region58: #{basic_bneck_forward.1} parent=5 // pred_check_branch
      %4104 = sbr.rel (%p4102) target = $region60
    $region59: #{basic_bneck_forward.1} parent=5 // pred_region
      %s4105 = ssub.s32 %s14, 2
      // Predicated region
      $region61: #{basic_bneck_forward.1} parent=59 // pred_check
        %p4106 = pneg %p216
      $region62: #{basic_bneck_forward.1} parent=59 // pred_check_branch
        %4108 = sbr.rel (%p4106) target = $region64
      $region63: #{basic_bneck_forward.1} parent=59 // pred_region
        %p4109 = scmp.lt.s32.totalorder %s20, 1
        %s4110 = scalar_select %p4109, %s20, 1
        %s4111 = smul.addr %s4110, 2
        %s4112 = smul.addr %s4111, 8
        %s4113 = scalar_lea.vmem %s8, %s4112
      $region64: #{basic_bneck_forward.1} parent=59 // pred_fallthru
        _
    $region60: #{basic_bneck_forward.1} parent=5 // pred_fallthru
      _
  $region6: #{basic_bneck_forward.1} parent=0 // loop_footer
    %s18 = sadd.s32 1, %s14
  $region7: #{basic_bneck_forward.1} parent=0 // loop_footer_branch
    %13 = sbr.rel target = $region3
  $region8: #{basic_bneck_forward.1} parent=0 // loop_exit
    _

</llo_original>
